<compile_context>
chip_gen: v7x
topology: tpu7x:2x2x1
jax: 0.10.0
libtpu: 0.0.40
codegen_flags: <defaults>
</compile_context>

<pallas_src>
import functools
import math

import jax
import jax.numpy as jnp
from jax import lax
from jax.experimental import pallas as pl
from jax.experimental.pallas import tpu as pltpu


# ------------------------------ in-kernel helpers ------------------------------

def _layer_norm(x, g, b, eps=1e-5):
    mu = jnp.mean(x, axis=-1, keepdims=True)
    var = jnp.mean(jnp.square(x - mu), axis=-1, keepdims=True)
    return (x - mu) * lax.rsqrt(var + eps) * g + b


def _mm(a_f32, w_bf16):
    """bf16 MXU matmul with f32 accumulation."""
    return jnp.dot(a_f32.astype(jnp.bfloat16), w_bf16,
                   preferred_element_type=jnp.float32)


# --------------------- batched fused TransformerLayer kernel --------------------
# TODO(synk): reference TransformerLayer class not provided; standard AKT-style
# causal multi-head self-attention (kq_same) + residual + LayerNorm (+ FFN when
# apply_pos) is implemented, fused into one kernel invocation per (plane, batch).

def _txl_kernel(q_ref, k_ref, v_ref,
                wqk_ref, bqk_ref, wv_ref, bv_ref, wo_ref, bo_ref,
                g1_ref, be1_ref, *rest, n_heads, apply_pos):
    if apply_pos:
        fw1_ref, fb1_ref, fw2_ref, fb2_ref, g2_ref, be2_ref, out_ref = rest
    else:
        (out_ref,) = rest

    x_in = q_ref[0, 0]                    # [L, D] f32 (also residual source)
    k_in = k_ref[0, 0]
    v_in = v_ref[0, 0]
    L, D = x_in.shape
    Dh = D // n_heads
    scale = 1.0 / math.sqrt(Dh)

    wqk = wqk_ref[0]                      # [D, D] bf16 (shared: kq_same=True)
    bqk = bqk_ref[0]                      # [1, D] f32
    q = _mm(x_in, wqk) + bqk
    k = _mm(k_in, wqk) + bqk
    v = _mm(v_in, wv_ref[0]) + bv_ref[0]

    row_idx = lax.broadcasted_iota(jnp.int32, (L, L), 0)
    col_idx = lax.broadcasted_iota(jnp.int32, (L, L), 1)
    causal = col_idx <= row_idx

    wo = wo_ref[0]                        # [D, D] bf16
    attn_proj = jnp.zeros((L, D), jnp.float32)
    for h in range(n_heads):              # static loop; all slices static
        sl = slice(h * Dh, (h + 1) * Dh)
        qh, kh, vh = q[:, sl], k[:, sl], v[:, sl]
        s = lax.dot_general(qh.astype(jnp.bfloat16), kh.astype(jnp.bfloat16),
                            (((1,), (1,)), ((), ())),
                            preferred_element_type=jnp.float32) * scale
        s = jnp.where(causal, s, -1e30)   # causal mask (mask=1), f32
        m = jnp.max(s, axis=-1, keepdims=True)
        p = jnp.exp(s - m)
        p = p * pl.reciprocal(jnp.sum(p, axis=-1, keepdims=True), approx=True)
        oh = _mm(p, vh.astype(jnp.bfloat16))                  # [L, Dh]
        # fold head-concat directly into the output projection:
        attn_proj = attn_proj + _mm(oh, wo[h * Dh:(h + 1) * Dh, :])
    attn_proj = attn_proj + bo_ref[0]

    x = _layer_norm(x_in + attn_proj, g1_ref[0], be1_ref[0])
    if apply_pos:
        hmid = jnp.maximum(_mm(x, fw1_ref[0]) + fb1_ref[0], 0.0)
        ff = _mm(hmid, fw2_ref[0]) + fb2_ref[0]
        x = _layer_norm(x + ff, g2_ref[0], be2_ref[0])
    out_ref[0, 0] = x.astype(out_ref.dtype)


def transformer_layers(param_list, queries, keys, values, apply_pos=True):
    """Run P independent TransformerLayers in ONE pallas_call.

    queries/keys/values: [B, P, L, D]   (plane axis second)
    returns:             [B, P, L, D]
    """
    B, P, L, D = queries.shape
    H = param_list[0]["n_heads"]
    d_ff = param_list[0]["ff1"]["w"].shape[-1]

    bf = jnp.bfloat16
    stack_w = lambda name: jnp.stack(
        [prm[name]["w"] for prm in param_list]).astype(bf)          # [P, in, out]
    stack_b = lambda name: jnp.stack(
        [prm[name]["b"].reshape(1, -1) for prm in param_list]
    ).astype(jnp.float32)                                           # [P, 1, out]
    stack_ln = lambda name, idx: jnp.stack(
        [prm[name][idx].reshape(1, -1) for prm in param_list]
    ).astype(jnp.float32)                                           # [P, 1, D]

    io_spec = pl.BlockSpec((1, 1, L, D), lambda p, b: (b, p, 0, 0))
    w_spec = lambda ci, co: pl.BlockSpec((1, ci, co), lambda p, b: (p, 0, 0))
    v_spec = lambda co: pl.BlockSpec((1, 1, co), lambda p, b: (p, 0, 0))

    ins = [queries, keys, values,
           stack_w("Wqk"), stack_b("Wqk"),
           stack_w("Wv"), stack_b("Wv"),
           stack_w("Wo"), stack_b("Wo"),
           stack_ln("ln1", 0), stack_ln("ln1", 1)]
    in_specs = [io_spec] * 3 + [
        w_spec(D, D), v_spec(D), w_spec(D, D), v_spec(D),
        w_spec(D, D), v_spec(D), v_spec(D), v_spec(D)]
    if apply_pos:
        ins += [stack_w("ff1"), stack_b("ff1"),
                stack_w("ff2"), stack_b("ff2"),
                stack_ln("ln2", 0), stack_ln("ln2", 1)]
        in_specs += [w_spec(D, d_ff), v_spec(d_ff),
                     w_spec(d_ff, D), v_spec(D),
                     v_spec(D), v_spec(D)]

    return pl.pallas_call(
        functools.partial(_txl_kernel, n_heads=H, apply_pos=apply_pos),
        grid=(P, B),                      # B innermost: weights stay VMEM-resident
        in_specs=in_specs,
        out_specs=io_spec,
        out_shape=jax.ShapeDtypeStruct((B, P, L, D), jnp.float32),
        compiler_params=pltpu.CompilerParams(
            dimension_semantics=("parallel", "parallel")),
    )(*ins)


# -------------------- fused encoder projection (PositionwiseFF) -----------------

def _proj_mlp_kernel(xy_ref, w1x_ref, w1y_ref, b1_ref, w2_ref, b2_ref, o_ref):
    # relu(concat(x, y) @ W1 + b1) @ W2 + b2, with the concat folded into split W1.
    x = xy_ref[0, 0]                      # [L, C]
    y = xy_ref[0, 1]                      # [L, C]
    h = _mm(x, w1x_ref[...]) + _mm(y, w1y_ref[...]) + b1_ref[...]
    h = jnp.maximum(h, 0.0)
    o_ref[0] = (_mm(h, w2_ref[...]) + b2_ref[...]).astype(o_ref.dtype)


def proj_mlp(params, xy_out):
    """xy_out: [B, 2, L, C] — plane 0 = x_out, plane 1 = y_out."""
    B, _, L, C = xy_out.shape
    w1, b1 = params["l1"]["w"], params["l1"]["b"]     # [2C, H1], [H1]
    w2, b2 = params["l2"]["w"], params["l2"]["b"]     # [H1, N2], [N2]
    H1, N2 = w1.shape[-1], w2.shape[-1]
    full = lambda shape: pl.BlockSpec(shape, lambda b: (0,) * len(shape))
    return pl.pallas_call(
        _proj_mlp_kernel,
        grid=(B,),
        in_specs=[pl.BlockSpec((1, 2, L, C), lambda b: (b, 0, 0, 0)),
                  full((C, H1)), full((C, H1)), full((1, H1)),
                  full((H1, N2)), full((1, N2))],
        out_specs=pl.BlockSpec((1, L, N2), lambda b: (b, 0, 0)),
        out_shape=jax.ShapeDtypeStruct((B, L, N2), jnp.float32),
        compiler_params=pltpu.CompilerParams(dimension_semantics=("parallel",)),
    )(xy_out,
      w1[:C].astype(jnp.bfloat16), w1[C:].astype(jnp.bfloat16), b1.reshape(1, H1),
      w2.astype(jnp.bfloat16), b2.reshape(1, N2))


# ----------------------------- fused TCN level kernel ---------------------------
# TODO(synk): TemporalConvNetV4 class not provided; standard causal dilated TCN
# (per-level: causal dilated conv -> ReLU -> residual -> ReLU), returning the list
# of per-level outputs, is implemented instead.

def _tcn_level_kernel(hp_ref, w_ref, b_ref, *rest, k, d, L, has_down):
    if has_down:
        dw_ref, db_ref, o_ref = rest
    else:
        (o_ref,) = rest
    hp = hp_ref[0]                               # [L + (k-1)*d, Cin] f32, pre-padded
    pad = (k - 1) * d
    conv = None
    for j in range(k):                           # accumulate shifted matmuls in VMEM
        tap = hp[j * d: j * d + L, :]            # static slice
        contrib = _mm(tap, w_ref[j])             # [L, Cout]
        conv = contrib if conv is None else conv + contrib
    conv = jnp.maximum(conv + b_ref[...], 0.0)
    res = hp[pad: pad + L, :]
    if has_down:
        res = _mm(res, dw_ref[...]) + db_ref[...]
    o_ref[0] = jnp.maximum(conv + res, 0.0).astype(o_ref.dtype)


def tcn_forward(params, x):
    k = params["kernel_size"]
    outs = []
    h = x
    for lvl in params["levels"]:
        d = lvl["dilation"]
        B, L, Cin = h.shape
        Cout = lvl["conv"]["w"].shape[-1]
        pad = (k - 1) * d
        hp = jnp.pad(h, ((0, 0), (pad, 0), (0, 0)))           # single causal pad
        w3 = lvl["conv"]["w"].reshape(k, Cin, Cout).astype(jnp.bfloat16)
        b = lvl["conv"]["b"].reshape(1, Cout)
        has_down = lvl["down"] is not None
        ins = [hp, w3, b]
        in_specs = [pl.BlockSpec((1, L + pad, Cin), lambda i: (i, 0, 0)),
                    pl.BlockSpec((k, Cin, Cout), lambda i: (0, 0, 0)),
                    pl.BlockSpec((1, Cout), lambda i: (0, 0))]
        if has_down:
            ins += [lvl["down"]["w"].astype(jnp.bfloat16),
                    lvl["down"]["b"].reshape(1, Cout)]
            in_specs += [pl.BlockSpec((Cin, Cout), lambda i: (0, 0)),
                         pl.BlockSpec((1, Cout), lambda i: (0, 0))]
        h = pl.pallas_call(
            functools.partial(_tcn_level_kernel, k=k, d=d, L=L, has_down=has_down),
            grid=(B,),
            in_specs=in_specs,
            out_specs=pl.BlockSpec((1, L, Cout), lambda i: (i, 0, 0)),
            out_shape=jax.ShapeDtypeStruct((B, L, Cout), jnp.float32),
            compiler_params=pltpu.CompilerParams(dimension_semantics=("parallel",)),
        )(*ins)
        outs.append(h)
    return outs


# ------------- fused tail: SE attention + sum over planes + ffc + sigmoid --------
# TODO(synk): SSAttention class not provided; standard squeeze-and-excitation
# channel attention (avg-pool -> FC -> ReLU -> FC -> Sigmoid -> scale) implemented.

def _tail_kernel(xs_ref, sw1_ref, sb1_ref, sw2t_ref, sb2_ref,
                 fw1_ref, fb1_ref, fw2_ref, fb2_ref, o_ref, *, p):
    xs = xs_ref[0]                                             # [p, L, C] f32
    # SE squeeze: per-plane mean over (L, C)  (== mean over (C, L) of permuted view)
    s = jnp.mean(jnp.mean(xs, axis=2), axis=1, keepdims=True)  # [p, 1]
    # fc1 + ReLU   (elementwise broadcast + reduce; avoids degenerate tiny matmuls)
    z1 = jnp.maximum(jnp.sum(sw1_ref[...] * s, axis=0, keepdims=True)
                     + sb1_ref[...], 0.0)                      # [1, hidden]
    # fc2 + Sigmoid
    z2 = jax.nn.sigmoid(jnp.sum(sw2t_ref[...] * z1, axis=1, keepdims=True)
                        + sb2_ref[...])                        # [p, 1]
    # scale each plane by its gate and sum over planes
    acc = jnp.zeros(xs.shape[1:], jnp.float32)                 # [L, C]
    for i in range(p):
        acc = acc + xs[i] * z2[i:i + 1, 0:1]
    # ffc: Linear -> ReLU -> Linear (lane-padded to 128 cols) -> Sigmoid
    h = jnp.maximum(_mm(acc, fw1_ref[...]) + fb1_ref[...], 0.0)
    logits = _mm(h, fw2_ref[...]) + fb2_ref[...]
    o_ref[0] = jax.nn.sigmoid(logits).astype(o_ref.dtype)


def fused_tail(se_params, ffc_params, stacked):
    """stacked: [B, p, L, C] (output of the batched attention kernel)."""
    B, p, L, C = stacked.shape
    sw1, sb1 = se_params["fc1"]["w"], se_params["fc1"]["b"]    # [p, hid], [hid]
    sw2, sb2 = se_params["fc2"]["w"], se_params["fc2"]["b"]    # [hid, p], [p]
    hid = sw1.shape[-1]
    fw1, fb1 = ffc_params["l1"]["w"], ffc_params["l1"]["b"]    # [C, Fh], [Fh]
    fw2, fb2 = ffc_params["l2"]["w"], ffc_params["l2"]["b"]    # [Fh, q_num], [q_num]
    Fh, q_num = fw1.shape[-1], fw2.shape[-1]
    NP = ((q_num + 127) // 128) * 128                          # lane-dense output width
    fw2p = jnp.zeros((Fh, NP), jnp.float32).at[:, :q_num].set(fw2)
    fb2p = jnp.zeros((1, NP), jnp.float32).at[:, :q_num].set(fb2.reshape(1, q_num))
    full = lambda shape: pl.BlockSpec(shape, lambda b: (0,) * len(shape))

    out = pl.pallas_call(
        functools.partial(_tail_kernel, p=p),
        grid=(B,),
        in_specs=[pl.BlockSpec((1, p, L, C), lambda b: (b, 0, 0, 0)),
                  full((p, hid)), full((1, hid)), full((p, hid)), full((p, 1)),
                  full((C, Fh)), full((1, Fh)), full((Fh, NP)), full((1, NP))],
        out_specs=pl.BlockSpec((1, L, NP), lambda b: (b, 0, 0)),
        out_shape=jax.ShapeDtypeStruct((B, L, NP), jnp.float32),
        compiler_params=pltpu.CompilerParams(dimension_semantics=("parallel",)),
    )(stacked, sw1, sb1.reshape(1, hid), sw2.T, sb2.reshape(p, 1),
      fw1.astype(jnp.bfloat16), fb1.reshape(1, Fh),
      fw2p.astype(jnp.bfloat16), fb2p)
    return out[..., :q_num]


# ---------------------------------- parameters ----------------------------------

def init_linear(key, fan_in, fan_out):
    kw, kb = jax.random.split(key)
    w = jax.random.normal(kw, (fan_in, fan_out), jnp.float32) * 0.05
    b = jax.random.normal(kb, (fan_out,), jnp.float32) * 0.01
    return {"w": w, "b": b}


def init_transformer_layer(key, d_model, n_heads, d_ff):
    keys = jax.random.split(key, 5)
    return {
        "n_heads": n_heads,
        "Wqk": init_linear(keys[0], d_model, d_model),   # kq_same=True (shared q/k proj)
        "Wv": init_linear(keys[1], d_model, d_model),
        "Wo": init_linear(keys[2], d_model, d_model),
        "ln1": (jnp.ones((d_model,), jnp.float32), jnp.zeros((d_model,), jnp.float32)),
        "ff1": init_linear(keys[3], d_model, d_ff),
        "ff2": init_linear(keys[4], d_ff, d_model),
        "ln2": (jnp.ones((d_model,), jnp.float32), jnp.zeros((d_model,), jnp.float32)),
    }


def init_context_encoder(key, q_num, d_model, out_size, n_heads, d_ff):
    keys = jax.random.split(key, 7)
    emb = lambda k, n: jax.random.normal(k, (n, d_model), jnp.float32) * 0.05
    return {
        "q_embed": emb(keys[0], q_num),
        "a_embed": emb(keys[1], 2),
        "qa_embed": emb(keys[2], 2 * q_num),
        "tx": init_transformer_layer(keys[3], d_model, n_heads, d_ff),
        "ty": init_transformer_layer(keys[4], d_model, n_heads, d_ff),
        "proj": {"l1": init_linear(keys[5], 2 * out_size, out_size),
                 "l2": init_linear(keys[6], out_size, out_size)},
        "n_question": q_num,
    }


def init_tcn(key, in_ch, num_channels, kernel_size):
    levels = []
    keys = jax.random.split(key, len(num_channels))
    c_in = in_ch
    for i, c_out in enumerate(num_channels):
        lk = jax.random.split(keys[i], 2)
        conv = init_linear(lk[0], kernel_size * c_in, c_out)
        down = None if c_in == c_out else init_linear(lk[1], c_in, c_out)
        levels.append({"conv": conv, "down": down, "dilation": 2 ** i})
        c_in = c_out
    return {"levels": levels, "kernel_size": kernel_size}


def init_se(key, channel, reduction):
    k1, k2 = jax.random.split(key)
    hidden = max(channel // reduction, 1)
    return {"fc1": init_linear(k1, channel, hidden),
            "fc2": init_linear(k2, hidden, channel)}


def init_lsktc(key, kernel_size, num_channels, q_num, d_model, encoder_out,
               ffn_h_num, n=1, d_ff=64, n_heads=2):
    M = len(num_channels)
    p = n * M
    out_size = num_channels[-1]
    keys = jax.random.split(key, 4 + p + n)
    return {
        "encoder": init_context_encoder(keys[0], q_num, d_model, encoder_out, n_heads, d_ff),
        "ffc": {"l1": init_linear(keys[1], out_size, ffn_h_num),
                "l2": init_linear(keys[2], ffn_h_num, q_num)},
        "se": init_se(keys[3], p, n),
        "attens": [init_transformer_layer(keys[4 + i], out_size, n_heads, d_ff)
                   for i in range(p)],
        "tcns": [init_tcn(keys[4 + p + i], encoder_out, num_channels, kernel_size * 2 ** i)
                 for i in range(n)],
    }


# ----------------------------------- forward ------------------------------------

def context_encoder(params, x, y):
    x_embed = jnp.take(params["q_embed"], x, axis=0)            # gathers stay in XLA
    y_embed = jnp.take(params["a_embed"], y, axis=0)
    qa = x + params["n_question"] * y
    qa_embed = jnp.take(params["qa_embed"], qa, axis=0)
    # Both encoder transformer layers run in one batched pallas_call (grid (2, B)).
    q_stack = jnp.stack([x_embed, qa_embed], axis=1)            # [B, 2, L, D]
    v_stack = jnp.stack([x_embed, y_embed], axis=1)             # [B, 2, L, D]
    xy_out = transformer_layers([params["tx"], params["ty"]],
                                q_stack, q_stack, v_stack, apply_pos=False)
    return proj_mlp(params["proj"], xy_out)                     # [B, L, out]


def lsktc_forward(params, x, y):
    enc = context_encoder(params["encoder"], x, y)              # [B, L, encoder_out]
    out_tcns = []
    for tcn_p in params["tcns"]:
        out_tcns.extend(tcn_forward(tcn_p, enc))
    tcn_stack = jnp.stack(out_tcns, axis=1)                     # [B, p, L, C]
    # all p plane-attention layers in a single batched pallas_call (grid (p, B))
    atten_out = transformer_layers(params["attens"], tcn_stack, tcn_stack, tcn_stack,
                                   apply_pos=True)              # [B, p, L, C]
    # fused: permute/SE/permute/sum/ffc/sigmoid (permutes fold away: mean (L,C)==(C,L))
    return fused_tail(params["se"], params["ffc"], atten_out)   # [B, L, q_num]


# ------------------------------------- main --------------------------------------

if __name__ == "__main__":
    key = jax.random.PRNGKey(0)
    B, L = 2, 8
    q_num = 10
    d_model = 32
    encoder_out = 32          # equal to d_model so encoder residual/proj shapes line up
    num_channels = [32, 32]   # M = 2, out_size = 32
    kernel_size = 2
    ffn_h_num = 16
    n = 1
    n_heads = 2
    d_ff = 64

    pk, xk, yk = jax.random.split(key, 3)
    params = init_lsktc(pk, kernel_size, num_channels, q_num, d_model,
                        encoder_out, ffn_h_num, n=n, d_ff=d_ff, n_heads=n_heads)
    x = jax.random.randint(xk, (B, L), 0, q_num, dtype=jnp.int32)
    y = jax.random.randint(yk, (B, L), 0, 2, dtype=jnp.int32)

    out = jax.jit(lambda a, b: lsktc_forward(params, a, b))(x, y)
    jax.block_until_ready(out)
    assert out.shape == (B, L, q_num), out.shape
    assert bool(jnp.all((out >= 0.0) & (out <= 1.0)))
    print("KERNEL_OK")
</pallas_src>

<mosaic_0001>
module attributes {stable_mosaic.version = 11 : i64} {
  func.func @_txl_kernel(%arg0: i32, %arg1: i32, %arg2: memref<1x1x8x32xf32, #tpu.memory_space<vmem>>, %arg3: memref<1x1x8x32xf32, #tpu.memory_space<vmem>>, %arg4: memref<1x1x8x32xf32, #tpu.memory_space<vmem>>, %arg5: memref<1x32x32xbf16, #tpu.memory_space<vmem>>, %arg6: memref<1x1x32xf32, #tpu.memory_space<vmem>>, %arg7: memref<1x32x32xbf16, #tpu.memory_space<vmem>>, %arg8: memref<1x1x32xf32, #tpu.memory_space<vmem>>, %arg9: memref<1x32x32xbf16, #tpu.memory_space<vmem>>, %arg10: memref<1x1x32xf32, #tpu.memory_space<vmem>>, %arg11: memref<1x1x32xf32, #tpu.memory_space<vmem>>, %arg12: memref<1x1x32xf32, #tpu.memory_space<vmem>>, %arg13: memref<1x1x8x32xf32, #tpu.memory_space<vmem>>) attributes {dimension_semantics = [#tpu.dimension_semantics<parallel>, #tpu.dimension_semantics<parallel>], iteration_bounds = array<i64: 2, 2>, scalar_prefetch = 0 : i64, scratch_operands = 0 : i64, tpu.core_type = #tpu.core_type<tc>, window_params = [{transform_indices = @transform_0, window_bounds = array<i64: 1, 1, 8, 32>}, {transform_indices = @transform_1, window_bounds = array<i64: 1, 1, 8, 32>}, {transform_indices = @transform_2, window_bounds = array<i64: 1, 1, 8, 32>}, {transform_indices = @transform_3, window_bounds = array<i64: 1, 32, 32>}, {transform_indices = @transform_4, window_bounds = array<i64: 1, 1, 32>}, {transform_indices = @transform_5, window_bounds = array<i64: 1, 32, 32>}, {transform_indices = @transform_6, window_bounds = array<i64: 1, 1, 32>}, {transform_indices = @transform_7, window_bounds = array<i64: 1, 32, 32>}, {transform_indices = @transform_8, window_bounds = array<i64: 1, 1, 32>}, {transform_indices = @transform_9, window_bounds = array<i64: 1, 1, 32>}, {transform_indices = @transform_10, window_bounds = array<i64: 1, 1, 32>}, {transform_indices = @transform_11, window_bounds = array<i64: 1, 1, 8, 32>}]} {
    %c0 = arith.constant 0 : index
    %c0_0 = arith.constant 0 : index
    %c0_1 = arith.constant 0 : index
    %c0_2 = arith.constant 0 : index
    %0 = vector.load %arg2[%c0, %c0_0, %c0_1, %c0_2] : memref<1x1x8x32xf32, #tpu.memory_space<vmem>>, vector<1x1x8x32xf32>
    %1 = vector.shape_cast %0 : vector<1x1x8x32xf32> to vector<8x32xf32>
    %c0_3 = arith.constant 0 : index
    %c0_4 = arith.constant 0 : index
    %c0_5 = arith.constant 0 : index
    %c0_6 = arith.constant 0 : index
    %2 = vector.load %arg3[%c0_3, %c0_4, %c0_5, %c0_6] : memref<1x1x8x32xf32, #tpu.memory_space<vmem>>, vector<1x1x8x32xf32>
    %3 = vector.shape_cast %2 : vector<1x1x8x32xf32> to vector<8x32xf32>
    %c0_7 = arith.constant 0 : index
    %c0_8 = arith.constant 0 : index
    %c0_9 = arith.constant 0 : index
    %c0_10 = arith.constant 0 : index
    %4 = vector.load %arg4[%c0_7, %c0_8, %c0_9, %c0_10] : memref<1x1x8x32xf32, #tpu.memory_space<vmem>>, vector<1x1x8x32xf32>
    %5 = vector.shape_cast %4 : vector<1x1x8x32xf32> to vector<8x32xf32>
    %c0_11 = arith.constant 0 : index
    %c0_12 = arith.constant 0 : index
    %c0_13 = arith.constant 0 : index
    %6 = vector.load %arg5[%c0_11, %c0_12, %c0_13] : memref<1x32x32xbf16, #tpu.memory_space<vmem>>, vector<1x32x32xbf16>
    %7 = vector.shape_cast %6 : vector<1x32x32xbf16> to vector<32x32xbf16>
    %c0_14 = arith.constant 0 : index
    %c0_15 = arith.constant 0 : index
    %c0_16 = arith.constant 0 : index
    %8 = vector.load %arg6[%c0_14, %c0_15, %c0_16] : memref<1x1x32xf32, #tpu.memory_space<vmem>>, vector<1x1x32xf32>
    %9 = vector.shape_cast %8 : vector<1x1x32xf32> to vector<1x32xf32>
    %10 = arith.truncf %1 : vector<8x32xf32> to vector<8x32xbf16>
    %cst = arith.constant dense<0.000000e+00> : vector<8x32xf32>
    %11 = tpu.matmul %10, %7, %cst {dimension_numbers = #tpu.dot_dimension_numbers<[1], [0], [0], [1], [0, 0, 1, 1], [], []>} : vector<8x32xbf16>, vector<32x32xbf16>, vector<8x32xf32> -> vector<8x32xf32>
    %12 = vector.broadcast %9 : vector<1x32xf32> to vector<8x32xf32>
    %13 = arith.addf %11, %12 : vector<8x32xf32>
    %14 = arith.truncf %3 : vector<8x32xf32> to vector<8x32xbf16>
    %cst_17 = arith.constant dense<0.000000e+00> : vector<8x32xf32>
    %15 = tpu.matmul %14, %7, %cst_17 {dimension_numbers = #tpu.dot_dimension_numbers<[1], [0], [0], [1], [0, 0, 1, 1], [], []>} : vector<8x32xbf16>, vector<32x32xbf16>, vector<8x32xf32> -> vector<8x32xf32>
    %16 = vector.broadcast %9 : vector<1x32xf32> to vector<8x32xf32>
    %17 = arith.addf %15, %16 : vector<8x32xf32>
    %c0_18 = arith.constant 0 : index
    %c0_19 = arith.constant 0 : index
    %c0_20 = arith.constant 0 : index
    %18 = vector.load %arg7[%c0_18, %c0_19, %c0_20] : memref<1x32x32xbf16, #tpu.memory_space<vmem>>, vector<1x32x32xbf16>
    %19 = vector.shape_cast %18 : vector<1x32x32xbf16> to vector<32x32xbf16>
    %20 = arith.truncf %5 : vector<8x32xf32> to vector<8x32xbf16>
    %cst_21 = arith.constant dense<0.000000e+00> : vector<8x32xf32>
    %21 = tpu.matmul %20, %19, %cst_21 {dimension_numbers = #tpu.dot_dimension_numbers<[1], [0], [0], [1], [0, 0, 1, 1], [], []>} : vector<8x32xbf16>, vector<32x32xbf16>, vector<8x32xf32> -> vector<8x32xf32>
    %c0_22 = arith.constant 0 : index
    %c0_23 = arith.constant 0 : index
    %c0_24 = arith.constant 0 : index
    %22 = vector.load %arg8[%c0_22, %c0_23, %c0_24] : memref<1x1x32xf32, #tpu.memory_space<vmem>>, vector<1x1x32xf32>
    %23 = vector.shape_cast %22 : vector<1x1x32xf32> to vector<1x32xf32>
    %24 = vector.broadcast %23 : vector<1x32xf32> to vector<8x32xf32>
    %25 = arith.addf %21, %24 : vector<8x32xf32>
    %26 = tpu.iota {dimensions = array<i32: 0>} : vector<8x8xi32>
    %27 = tpu.iota {dimensions = array<i32: 1>} : vector<8x8xi32>
    %28 = arith.cmpi sle, %27, %26 : vector<8x8xi32>
    %c0_25 = arith.constant 0 : index
    %c0_26 = arith.constant 0 : index
    %c0_27 = arith.constant 0 : index
    %29 = vector.load %arg9[%c0_25, %c0_26, %c0_27] : memref<1x32x32xbf16, #tpu.memory_space<vmem>>, vector<1x32x32xbf16>
    %30 = vector.shape_cast %29 : vector<1x32x32xbf16> to vector<32x32xbf16>
    %cst_28 = arith.constant 0.000000e+00 : f32
    %31 = vector.broadcast %cst_28 : f32 to vector<8x32xf32>
    %32 = vector.extract_strided_slice %13 {offsets = [0, 0], sizes = [8, 16], strides = [1, 1]} : vector<8x32xf32> to vector<8x16xf32>
    %33 = vector.extract_strided_slice %17 {offsets = [0, 0], sizes = [8, 16], strides = [1, 1]} : vector<8x32xf32> to vector<8x16xf32>
    %34 = vector.extract_strided_slice %25 {offsets = [0, 0], sizes = [8, 16], strides = [1, 1]} : vector<8x32xf32> to vector<8x16xf32>
    %35 = arith.truncf %32 : vector<8x16xf32> to vector<8x16xbf16>
    %36 = arith.truncf %33 : vector<8x16xf32> to vector<8x16xbf16>
    %cst_29 = arith.constant dense<0.000000e+00> : vector<8x8xf32>
    %37 = tpu.matmul %35, %36, %cst_29 {dimension_numbers = #tpu.dot_dimension_numbers<[1], [1], [0], [0], [0, 0, 1, 0], [], []>} : vector<8x16xbf16>, vector<8x16xbf16>, vector<8x8xf32> -> vector<8x8xf32>
    %cst_30 = arith.constant 2.500000e-01 : f32
    %38 = vector.broadcast %cst_30 : f32 to vector<8x8xf32>
    %39 = arith.mulf %37, %38 : vector<8x8xf32>
    %cst_31 = arith.constant -1.000000e+30 : f32
    %40 = vector.broadcast %cst_31 : f32 to vector<8x8xf32>
    %41 = arith.select %28, %39, %40 : vector<8x8xi1>, vector<8x8xf32>
    %cst_32 = arith.constant dense<0xFF800000> : vector<8xf32>
    %42 = vector.multi_reduction <maximumf>, %41, %cst_32 [1] : vector<8x8xf32> to vector<8xf32>
    %43 = vector.shape_cast %42 : vector<8xf32> to vector<8x1xf32>
    %44 = vector.broadcast %43 : vector<8x1xf32> to vector<8x8xf32>
    %45 = arith.subf %41, %44 : vector<8x8xf32>
    %46 = math.exp %45 : vector<8x8xf32>
    %cst_33 = arith.constant dense<0.000000e+00> : vector<8xf32>
    %47 = vector.multi_reduction <add>, %46, %cst_33 [1] : vector<8x8xf32> to vector<8xf32>
    %48 = vector.shape_cast %47 : vector<8xf32> to vector<8x1xf32>
    %49 = tpu.reciprocal %48 {approx = true} : vector<8x1xf32> -> vector<8x1xf32>
    %50 = vector.broadcast %49 : vector<8x1xf32> to vector<8x8xf32>
    %51 = arith.mulf %46, %50 : vector<8x8xf32>
    %52 = arith.truncf %34 : vector<8x16xf32> to vector<8x16xbf16>
    %53 = arith.truncf %51 : vector<8x8xf32> to vector<8x8xbf16>
    %cst_34 = arith.constant dense<0.000000e+00> : vector<8x16xf32>
    %54 = tpu.matmul %53, %52, %cst_34 {dimension_numbers = #tpu.dot_dimension_numbers<[1], [0], [0], [1], [0, 0, 1, 1], [], []>} : vector<8x8xbf16>, vector<8x16xbf16>, vector<8x16xf32> -> vector<8x16xf32>
    %55 = vector.extract_strided_slice %30 {offsets = [0, 0], sizes = [16, 32], strides = [1, 1]} : vector<32x32xbf16> to vector<16x32xbf16>
    %56 = arith.truncf %54 : vector<8x16xf32> to vector<8x16xbf16>
    %cst_35 = arith.constant dense<0.000000e+00> : vector<8x32xf32>
    %57 = tpu.matmul %56, %55, %cst_35 {dimension_numbers = #tpu.dot_dimension_numbers<[1], [0], [0], [1], [0, 0, 1, 1], [], []>} : vector<8x16xbf16>, vector<16x32xbf16>, vector<8x32xf32> -> vector<8x32xf32>
    %58 = arith.addf %31, %57 : vector<8x32xf32>
    %59 = vector.extract_strided_slice %13 {offsets = [0, 16], sizes = [8, 16], strides = [1, 1]} : vector<8x32xf32> to vector<8x16xf32>
    %60 = vector.extract_strided_slice %17 {offsets = [0, 16], sizes = [8, 16], strides = [1, 1]} : vector<8x32xf32> to vector<8x16xf32>
    %61 = vector.extract_strided_slice %25 {offsets = [0, 16], sizes = [8, 16], strides = [1, 1]} : vector<8x32xf32> to vector<8x16xf32>
    %62 = arith.truncf %59 : vector<8x16xf32> to vector<8x16xbf16>
    %63 = arith.truncf %60 : vector<8x16xf32> to vector<8x16xbf16>
    %cst_36 = arith.constant dense<0.000000e+00> : vector<8x8xf32>
    %64 = tpu.matmul %62, %63, %cst_36 {dimension_numbers = #tpu.dot_dimension_numbers<[1], [1], [0], [0], [0, 0, 1, 0], [], []>} : vector<8x16xbf16>, vector<8x16xbf16>, vector<8x8xf32> -> vector<8x8xf32>
    %cst_37 = arith.constant 2.500000e-01 : f32
    %65 = vector.broadcast %cst_37 : f32 to vector<8x8xf32>
    %66 = arith.mulf %64, %65 : vector<8x8xf32>
    %cst_38 = arith.constant -1.000000e+30 : f32
    %67 = vector.broadcast %cst_38 : f32 to vector<8x8xf32>
    %68 = arith.select %28, %66, %67 : vector<8x8xi1>, vector<8x8xf32>
    %cst_39 = arith.constant dense<0xFF800000> : vector<8xf32>
    %69 = vector.multi_reduction <maximumf>, %68, %cst_39 [1] : vector<8x8xf32> to vector<8xf32>
    %70 = vector.shape_cast %69 : vector<8xf32> to vector<8x1xf32>
    %71 = vector.broadcast %70 : vector<8x1xf32> to vector<8x8xf32>
    %72 = arith.subf %68, %71 : vector<8x8xf32>
    %73 = math.exp %72 : vector<8x8xf32>
    %cst_40 = arith.constant dense<0.000000e+00> : vector<8xf32>
    %74 = vector.multi_reduction <add>, %73, %cst_40 [1] : vector<8x8xf32> to vector<8xf32>
    %75 = vector.shape_cast %74 : vector<8xf32> to vector<8x1xf32>
    %76 = tpu.reciprocal %75 {approx = true} : vector<8x1xf32> -> vector<8x1xf32>
    %77 = vector.broadcast %76 : vector<8x1xf32> to vector<8x8xf32>
    %78 = arith.mulf %73, %77 : vector<8x8xf32>
    %79 = arith.truncf %61 : vector<8x16xf32> to vector<8x16xbf16>
    %80 = arith.truncf %78 : vector<8x8xf32> to vector<8x8xbf16>
    %cst_41 = arith.constant dense<0.000000e+00> : vector<8x16xf32>
    %81 = tpu.matmul %80, %79, %cst_41 {dimension_numbers = #tpu.dot_dimension_numbers<[1], [0], [0], [1], [0, 0, 1, 1], [], []>} : vector<8x8xbf16>, vector<8x16xbf16>, vector<8x16xf32> -> vector<8x16xf32>
    %82 = vector.extract_strided_slice %30 {offsets = [16, 0], sizes = [16, 32], strides = [1, 1]} : vector<32x32xbf16> to vector<16x32xbf16>
    %83 = arith.truncf %81 : vector<8x16xf32> to vector<8x16xbf16>
    %cst_42 = arith.constant dense<0.000000e+00> : vector<8x32xf32>
    %84 = tpu.matmul %83, %82, %cst_42 {dimension_numbers = #tpu.dot_dimension_numbers<[1], [0], [0], [1], [0, 0, 1, 1], [], []>} : vector<8x16xbf16>, vector<16x32xbf16>, vector<8x32xf32> -> vector<8x32xf32>
    %85 = arith.addf %58, %84 : vector<8x32xf32>
    %c0_43 = arith.constant 0 : index
    %c0_44 = arith.constant 0 : index
    %c0_45 = arith.constant 0 : index
    %86 = vector.load %arg10[%c0_43, %c0_44, %c0_45] : memref<1x1x32xf32, #tpu.memory_space<vmem>>, vector<1x1x32xf32>
    %87 = vector.shape_cast %86 : vector<1x1x32xf32> to vector<1x32xf32>
    %88 = vector.broadcast %87 : vector<1x32xf32> to vector<8x32xf32>
    %89 = arith.addf %85, %88 : vector<8x32xf32>
    %90 = arith.addf %1, %89 : vector<8x32xf32>
    %c0_46 = arith.constant 0 : index
    %c0_47 = arith.constant 0 : index
    %c0_48 = arith.constant 0 : index
    %91 = vector.load %arg11[%c0_46, %c0_47, %c0_48] : memref<1x1x32xf32, #tpu.memory_space<vmem>>, vector<1x1x32xf32>
    %92 = vector.shape_cast %91 : vector<1x1x32xf32> to vector<1x32xf32>
    %c0_49 = arith.constant 0 : index
    %c0_50 = arith.constant 0 : index
    %c0_51 = arith.constant 0 : index
    %93 = vector.load %arg12[%c0_49, %c0_50, %c0_51] : memref<1x1x32xf32, #tpu.memory_space<vmem>>, vector<1x1x32xf32>
    %94 = vector.shape_cast %93 : vector<1x1x32xf32> to vector<1x32xf32>
    %cst_52 = arith.constant dense<0.000000e+00> : vector<8xf32>
    %95 = vector.multi_reduction <add>, %90, %cst_52 [1] : vector<8x32xf32> to vector<8xf32>
    %96 = vector.shape_cast %95 : vector<8xf32> to vector<8x1xf32>
    %cst_53 = arith.constant 3.200000e+01 : f32
    %97 = vector.broadcast %cst_53 : f32 to vector<8x1xf32>
    %98 = arith.divf %96, %97 : vector<8x1xf32>
    %99 = vector.broadcast %98 : vector<8x1xf32> to vector<8x32xf32>
    %100 = arith.subf %90, %99 : vector<8x32xf32>
    %101 = arith.mulf %100, %100 : vector<8x32xf32>
    %cst_54 = arith.constant dense<0.000000e+00> : vector<8xf32>
    %102 = vector.multi_reduction <add>, %101, %cst_54 [1] : vector<8x32xf32> to vector<8xf32>
    %103 = vector.shape_cast %102 : vector<8xf32> to vector<8x1xf32>
    %cst_55 = arith.constant 3.200000e+01 : f32
    %104 = vector.broadcast %cst_55 : f32 to vector<8x1xf32>
    %105 = arith.divf %103, %104 : vector<8x1xf32>
    %106 = vector.broadcast %98 : vector<8x1xf32> to vector<8x32xf32>
    %107 = arith.subf %90, %106 : vector<8x32xf32>
    %cst_56 = arith.constant 9.99999974E-6 : f32
    %108 = vector.broadcast %cst_56 : f32 to vector<8x1xf32>
    %109 = arith.addf %105, %108 : vector<8x1xf32>
    %110 = math.rsqrt %109 : vector<8x1xf32>
    %111 = vector.broadcast %110 : vector<8x1xf32> to vector<8x32xf32>
    %112 = arith.mulf %107, %111 : vector<8x32xf32>
    %113 = vector.broadcast %92 : vector<1x32xf32> to vector<8x32xf32>
    %114 = arith.mulf %112, %113 : vector<8x32xf32>
    %115 = vector.broadcast %94 : vector<1x32xf32> to vector<8x32xf32>
    %116 = arith.addf %114, %115 : vector<8x32xf32>
    %c0_57 = arith.constant 0 : index
    %c0_58 = arith.constant 0 : index
    %c0_59 = arith.constant 0 : index
    %c0_60 = arith.constant 0 : index
    %117 = vector.load %arg13[%c0_57, %c0_58, %c0_59, %c0_60] : memref<1x1x8x32xf32, #tpu.memory_space<vmem>>, vector<1x1x8x32xf32>
    %118 = vector.shape_cast %117 : vector<1x1x8x32xf32> to vector<8x32xf32>
    %119 = vector.shape_cast %116 : vector<8x32xf32> to vector<1x1x8x32xf32>
    tpu.vector_store %arg13[%c0_57, %c0_58, %c0_59, %c0_60], %119 {strides = array<i32>} : memref<1x1x8x32xf32, #tpu.memory_space<vmem>>, vector<1x1x8x32xf32>,
    return
  }
  func.func @transform_0(%arg0: i32, %arg1: i32) -> (i32, i32, i32, i32) {
    %c0_i32 = arith.constant 0 : i32
    %c0_i32_0 = arith.constant 0 : i32
    %c0_i32_1 = arith.constant 0 : i32
    return %arg1, %arg0, %c0_i32, %c0_i32_0 : i32, i32, i32, i32
  }
  func.func @transform_1(%arg0: i32, %arg1: i32) -> (i32, i32, i32, i32) {
    %c0_i32 = arith.constant 0 : i32
    %c0_i32_0 = arith.constant 0 : i32
    %c0_i32_1 = arith.constant 0 : i32
    return %arg1, %arg0, %c0_i32, %c0_i32_0 : i32, i32, i32, i32
  }
  func.func @transform_2(%arg0: i32, %arg1: i32) -> (i32, i32, i32, i32) {
    %c0_i32 = arith.constant 0 : i32
    %c0_i32_0 = arith.constant 0 : i32
    %c0_i32_1 = arith.constant 0 : i32
    return %arg1, %arg0, %c0_i32, %c0_i32_0 : i32, i32, i32, i32
  }
  func.func @transform_3(%arg0: i32, %arg1: i32) -> (i32, i32, i32) {
    %c0_i32 = arith.constant 0 : i32
    %c0_i32_0 = arith.constant 0 : i32
    %c0_i32_1 = arith.constant 0 : i32
    return %arg0, %c0_i32, %c0_i32_0 : i32, i32, i32
  }
  func.func @transform_4(%arg0: i32, %arg1: i32) -> (i32, i32, i32) {
    %c0_i32 = arith.constant 0 : i32
    %c0_i32_0 = arith.constant 0 : i32
    %c0_i32_1 = arith.constant 0 : i32
    return %arg0, %c0_i32, %c0_i32_0 : i32, i32, i32
  }
  func.func @transform_5(%arg0: i32, %arg1: i32) -> (i32, i32, i32) {
    %c0_i32 = arith.constant 0 : i32
    %c0_i32_0 = arith.constant 0 : i32
    %c0_i32_1 = arith.constant 0 : i32
    return %arg0, %c0_i32, %c0_i32_0 : i32, i32, i32
  }
  func.func @transform_6(%arg0: i32, %arg1: i32) -> (i32, i32, i32) {
    %c0_i32 = arith.constant 0 : i32
    %c0_i32_0 = arith.constant 0 : i32
    %c0_i32_1 = arith.constant 0 : i32
    return %arg0, %c0_i32, %c0_i32_0 : i32, i32, i32
  }
  func.func @transform_7(%arg0: i32, %arg1: i32) -> (i32, i32, i32) {
    %c0_i32 = arith.constant 0 : i32
    %c0_i32_0 = arith.constant 0 : i32
    %c0_i32_1 = arith.constant 0 : i32
    return %arg0, %c0_i32, %c0_i32_0 : i32, i32, i32
  }
  func.func @transform_8(%arg0: i32, %arg1: i32) -> (i32, i32, i32) {
    %c0_i32 = arith.constant 0 : i32
    %c0_i32_0 = arith.constant 0 : i32
    %c0_i32_1 = arith.constant 0 : i32
    return %arg0, %c0_i32, %c0_i32_0 : i32, i32, i32
  }
  func.func @transform_9(%arg0: i32, %arg1: i32) -> (i32, i32, i32) {
    %c0_i32 = arith.constant 0 : i32
    %c0_i32_0 = arith.constant 0 : i32
    %c0_i32_1 = arith.constant 0 : i32
    return %arg0, %c0_i32, %c0_i32_0 : i32, i32, i32
  }
  func.func @transform_10(%arg0: i32, %arg1: i32) -> (i32, i32, i32) {
    %c0_i32 = arith.constant 0 : i32
    %c0_i32_0 = arith.constant 0 : i32
    %c0_i32_1 = arith.constant 0 : i32
    return %arg0, %c0_i32, %c0_i32_0 : i32, i32, i32
  }
  func.func @transform_11(%arg0: i32, %arg1: i32) -> (i32, i32, i32, i32) {
    %c0_i32 = arith.constant 0 : i32
    %c0_i32_0 = arith.constant 0 : i32
    %c0_i32_1 = arith.constant 0 : i32
    return %arg1, %arg0, %c0_i32, %c0_i32_0 : i32, i32, i32, i32
  }
}

module attributes {stable_mosaic.version = 11 : i64} {
  func.func @_tcn_level_kernel(%arg0: i32, %arg1: memref<1x9x32xf32, #tpu.memory_space<vmem>>, %arg2: memref<2x32x32xbf16, #tpu.memory_space<vmem>>, %arg3: memref<1x32xf32, #tpu.memory_space<vmem>>, %arg4: memref<1x8x32xf32, #tpu.memory_space<vmem>>) attributes {dimension_semantics = [#tpu.dimension_semantics<parallel>], iteration_bounds = array<i64: 2>, scalar_prefetch = 0 : i64, scratch_operands = 0 : i64, tpu.core_type = #tpu.core_type<tc>, window_params = [{transform_indices = @transform_0, window_bounds = array<i64: 1, 9, 32>}, {pipeline_mode = #tpu.pipeline_mode<synchronous>, transform_indices = @transform_1, window_bounds = array<i64: 2, 32, 32>}, {pipeline_mode = #tpu.pipeline_mode<synchronous>, transform_indices = @transform_2, window_bounds = array<i64: 1, 32>}, {transform_indices = @transform_3, window_bounds = array<i64: 1, 8, 32>}]} {
    %c0 = arith.constant 0 : index
    %c0_0 = arith.constant 0 : index
    %c0_1 = arith.constant 0 : index
    %0 = vector.load %arg1[%c0, %c0_0, %c0_1] : memref<1x9x32xf32, #tpu.memory_space<vmem>>, vector<1x9x32xf32>
    %1 = vector.shape_cast %0 : vector<1x9x32xf32> to vector<9x32xf32>
    %2 = vector.extract_strided_slice %1 {offsets = [0, 0], sizes = [8, 32], strides = [1, 1]} : vector<9x32xf32> to vector<8x32xf32>
    %c0_2 = arith.constant 0 : index
    %c0_3 = arith.constant 0 : index
    %c0_4 = arith.constant 0 : index
    %3 = vector.load %arg2[%c0_2, %c0_3, %c0_4] : memref<2x32x32xbf16, #tpu.memory_space<vmem>>, vector<1x32x32xbf16>
    %4 = vector.shape_cast %3 : vector<1x32x32xbf16> to vector<32x32xbf16>
    %5 = arith.truncf %2 : vector<8x32xf32> to vector<8x32xbf16>
    %cst = arith.constant dense<0.000000e+00> : vector<8x32xf32>
    %6 = tpu.matmul %5, %4, %cst {dimension_numbers = #tpu.dot_dimension_numbers<[1], [0], [0], [1], [0, 0, 1, 1], [], []>} : vector<8x32xbf16>, vector<32x32xbf16>, vector<8x32xf32> -> vector<8x32xf32>
    %7 = vector.extract_strided_slice %1 {offsets = [1, 0], sizes = [8, 32], strides = [1, 1]} : vector<9x32xf32> to vector<8x32xf32>
    %c1 = arith.constant 1 : index
    %c0_5 = arith.constant 0 : index
    %c0_6 = arith.constant 0 : index
    %8 = vector.load %arg2[%c1, %c0_5, %c0_6] : memref<2x32x32xbf16, #tpu.memory_space<vmem>>, vector<1x32x32xbf16>
    %9 = vector.shape_cast %8 : vector<1x32x32xbf16> to vector<32x32xbf16>
    %10 = arith.truncf %7 : vector<8x32xf32> to vector<8x32xbf16>
    %cst_7 = arith.constant dense<0.000000e+00> : vector<8x32xf32>
    %11 = tpu.matmul %10, %9, %cst_7 {dimension_numbers = #tpu.dot_dimension_numbers<[1], [0], [0], [1], [0, 0, 1, 1], [], []>} : vector<8x32xbf16>, vector<32x32xbf16>, vector<8x32xf32> -> vector<8x32xf32>
    %12 = arith.addf %6, %11 : vector<8x32xf32>
    %c0_8 = arith.constant 0 : index
    %c0_9 = arith.constant 0 : index
    %13 = vector.load %arg3[%c0_8, %c0_9] : memref<1x32xf32, #tpu.memory_space<vmem>>, vector<1x32xf32>
    %14 = vector.broadcast %13 : vector<1x32xf32> to vector<8x32xf32>
    %15 = arith.addf %12, %14 : vector<8x32xf32>
    %cst_10 = arith.constant 0.000000e+00 : f32
    %16 = vector.broadcast %cst_10 : f32 to vector<8x32xf32>
    %17 = arith.maximumf %15, %16 : vector<8x32xf32>
    %18 = vector.extract_strided_slice %1 {offsets = [1, 0], sizes = [8, 32], strides = [1, 1]} : vector<9x32xf32> to vector<8x32xf32>
    %19 = arith.addf %17, %18 : vector<8x32xf32>
    %cst_11 = arith.constant 0.000000e+00 : f32
    %20 = vector.broadcast %cst_11 : f32 to vector<8x32xf32>
    %21 = arith.maximumf %19, %20 : vector<8x32xf32>
    %c0_12 = arith.constant 0 : index
    %c0_13 = arith.constant 0 : index
    %c0_14 = arith.constant 0 : index
    %22 = vector.load %arg4[%c0_12, %c0_13, %c0_14] : memref<1x8x32xf32, #tpu.memory_space<vmem>>, vector<1x8x32xf32>
    %23 = vector.shape_cast %22 : vector<1x8x32xf32> to vector<8x32xf32>
    %24 = vector.shape_cast %21 : vector<8x32xf32> to vector<1x8x32xf32>
    tpu.vector_store %arg4[%c0_12, %c0_13, %c0_14], %24 {strides = array<i32>} : memref<1x8x32xf32, #tpu.memory_space<vmem>>, vector<1x8x32xf32>,
    return
  }
  func.func @transform_0(%arg0: i32) -> (i32, i32, i32) {
    %c0_i32 = arith.constant 0 : i32
    %c0_i32_0 = arith.constant 0 : i32
    %c0_i32_1 = arith.constant 0 : i32
    return %arg0, %c0_i32, %c0_i32_0 : i32, i32, i32
  }
  func.func @transform_1(%arg0: i32) -> (i32, i32, i32) {
    %c0_i32 = arith.constant 0 : i32
    %c0_i32_0 = arith.constant 0 : i32
    %c0_i32_1 = arith.constant 0 : i32
    %c0_i32_2 = arith.constant 0 : i32
    return %c0_i32, %c0_i32_0, %c0_i32_1 : i32, i32, i32
  }
  func.func @transform_2(%arg0: i32) -> (i32, i32) {
    %c0_i32 = arith.constant 0 : i32
    %c0_i32_0 = arith.constant 0 : i32
    %c0_i32_1 = arith.constant 0 : i32
    return %c0_i32, %c0_i32_0 : i32, i32
  }
  func.func @transform_3(%arg0: i32) -> (i32, i32, i32) {
    %c0_i32 = arith.constant 0 : i32
    %c0_i32_0 = arith.constant 0 : i32
    %c0_i32_1 = arith.constant 0 : i32
    return %arg0, %c0_i32, %c0_i32_0 : i32, i32, i32
  }
}

module attributes {stable_mosaic.version = 11 : i64} {
  func.func @_tcn_level_kernel(%arg0: i32, %arg1: memref<1x10x32xf32, #tpu.memory_space<vmem>>, %arg2: memref<2x32x32xbf16, #tpu.memory_space<vmem>>, %arg3: memref<1x32xf32, #tpu.memory_space<vmem>>, %arg4: memref<1x8x32xf32, #tpu.memory_space<vmem>>) attributes {dimension_semantics = [#tpu.dimension_semantics<parallel>], iteration_bounds = array<i64: 2>, scalar_prefetch = 0 : i64, scratch_operands = 0 : i64, tpu.core_type = #tpu.core_type<tc>, window_params = [{transform_indices = @transform_0, window_bounds = array<i64: 1, 10, 32>}, {pipeline_mode = #tpu.pipeline_mode<synchronous>, transform_indices = @transform_1, window_bounds = array<i64: 2, 32, 32>}, {pipeline_mode = #tpu.pipeline_mode<synchronous>, transform_indices = @transform_2, window_bounds = array<i64: 1, 32>}, {transform_indices = @transform_3, window_bounds = array<i64: 1, 8, 32>}]} {
    %c0 = arith.constant 0 : index
    %c0_0 = arith.constant 0 : index
    %c0_1 = arith.constant 0 : index
    %0 = vector.load %arg1[%c0, %c0_0, %c0_1] : memref<1x10x32xf32, #tpu.memory_space<vmem>>, vector<1x10x32xf32>
    %1 = vector.shape_cast %0 : vector<1x10x32xf32> to vector<10x32xf32>
    %2 = vector.extract_strided_slice %1 {offsets = [0, 0], sizes = [8, 32], strides = [1, 1]} : vector<10x32xf32> to vector<8x32xf32>
    %c0_2 = arith.constant 0 : index
    %c0_3 = arith.constant 0 : index
    %c0_4 = arith.constant 0 : index
    %3 = vector.load %arg2[%c0_2, %c0_3, %c0_4] : memref<2x32x32xbf16, #tpu.memory_space<vmem>>, vector<1x32x32xbf16>
    %4 = vector.shape_cast %3 : vector<1x32x32xbf16> to vector<32x32xbf16>
    %5 = arith.truncf %2 : vector<8x32xf32> to vector<8x32xbf16>
    %cst = arith.constant dense<0.000000e+00> : vector<8x32xf32>
    %6 = tpu.matmul %5, %4, %cst {dimension_numbers = #tpu.dot_dimension_numbers<[1], [0], [0], [1], [0, 0, 1, 1], [], []>} : vector<8x32xbf16>, vector<32x32xbf16>, vector<8x32xf32> -> vector<8x32xf32>
    %7 = vector.extract_strided_slice %1 {offsets = [2, 0], sizes = [8, 32], strides = [1, 1]} : vector<10x32xf32> to vector<8x32xf32>
    %c1 = arith.constant 1 : index
    %c0_5 = arith.constant 0 : index
    %c0_6 = arith.constant 0 : index
    %8 = vector.load %arg2[%c1, %c0_5, %c0_6] : memref<2x32x32xbf16, #tpu.memory_space<vmem>>, vector<1x32x32xbf16>
    %9 = vector.shape_cast %8 : vector<1x32x32xbf16> to vector<32x32xbf16>
    %10 = arith.truncf %7 : vector<8x32xf32> to vector<8x32xbf16>
    %cst_7 = arith.constant dense<0.000000e+00> : vector<8x32xf32>
    %11 = tpu.matmul %10, %9, %cst_7 {dimension_numbers = #tpu.dot_dimension_numbers<[1], [0], [0], [1], [0, 0, 1, 1], [], []>} : vector<8x32xbf16>, vector<32x32xbf16>, vector<8x32xf32> -> vector<8x32xf32>
    %12 = arith.addf %6, %11 : vector<8x32xf32>
    %c0_8 = arith.constant 0 : index
    %c0_9 = arith.constant 0 : index
    %13 = vector.load %arg3[%c0_8, %c0_9] : memref<1x32xf32, #tpu.memory_space<vmem>>, vector<1x32xf32>
    %14 = vector.broadcast %13 : vector<1x32xf32> to vector<8x32xf32>
    %15 = arith.addf %12, %14 : vector<8x32xf32>
    %cst_10 = arith.constant 0.000000e+00 : f32
    %16 = vector.broadcast %cst_10 : f32 to vector<8x32xf32>
    %17 = arith.maximumf %15, %16 : vector<8x32xf32>
    %18 = vector.extract_strided_slice %1 {offsets = [2, 0], sizes = [8, 32], strides = [1, 1]} : vector<10x32xf32> to vector<8x32xf32>
    %19 = arith.addf %17, %18 : vector<8x32xf32>
    %cst_11 = arith.constant 0.000000e+00 : f32
    %20 = vector.broadcast %cst_11 : f32 to vector<8x32xf32>
    %21 = arith.maximumf %19, %20 : vector<8x32xf32>
    %c0_12 = arith.constant 0 : index
    %c0_13 = arith.constant 0 : index
    %c0_14 = arith.constant 0 : index
    %22 = vector.load %arg4[%c0_12, %c0_13, %c0_14] : memref<1x8x32xf32, #tpu.memory_space<vmem>>, vector<1x8x32xf32>
    %23 = vector.shape_cast %22 : vector<1x8x32xf32> to vector<8x32xf32>
    %24 = vector.shape_cast %21 : vector<8x32xf32> to vector<1x8x32xf32>
    tpu.vector_store %arg4[%c0_12, %c0_13, %c0_14], %24 {strides = array<i32>} : memref<1x8x32xf32, #tpu.memory_space<vmem>>, vector<1x8x32xf32>,
    return
  }
  func.func @transform_0(%arg0: i32) -> (i32, i32, i32) {
    %c0_i32 = arith.constant 0 : i32
    %c0_i32_0 = arith.constant 0 : i32
    %c0_i32_1 = arith.constant 0 : i32
    return %arg0, %c0_i32, %c0_i32_0 : i32, i32, i32
  }
  func.func @transform_1(%arg0: i32) -> (i32, i32, i32) {
    %c0_i32 = arith.constant 0 : i32
    %c0_i32_0 = arith.constant 0 : i32
    %c0_i32_1 = arith.constant 0 : i32
    %c0_i32_2 = arith.constant 0 : i32
    return %c0_i32, %c0_i32_0, %c0_i32_1 : i32, i32, i32
  }
  func.func @transform_2(%arg0: i32) -> (i32, i32) {
    %c0_i32 = arith.constant 0 : i32
    %c0_i32_0 = arith.constant 0 : i32
    %c0_i32_1 = arith.constant 0 : i32
    return %c0_i32, %c0_i32_0 : i32, i32
  }
  func.func @transform_3(%arg0: i32) -> (i32, i32, i32) {
    %c0_i32 = arith.constant 0 : i32
    %c0_i32_0 = arith.constant 0 : i32
    %c0_i32_1 = arith.constant 0 : i32
    return %arg0, %c0_i32, %c0_i32_0 : i32, i32, i32
  }
}

module attributes {stable_mosaic.version = 11 : i64} {
  func.func @_proj_mlp_kernel(%arg0: i32, %arg1: memref<1x2x8x32xf32, #tpu.memory_space<vmem>>, %arg2: memref<32x32xbf16, #tpu.memory_space<vmem>>, %arg3: memref<32x32xbf16, #tpu.memory_space<vmem>>, %arg4: memref<1x32xf32, #tpu.memory_space<vmem>>, %arg5: memref<32x32xbf16, #tpu.memory_space<vmem>>, %arg6: memref<1x32xf32, #tpu.memory_space<vmem>>, %arg7: memref<1x8x32xf32, #tpu.memory_space<vmem>>) attributes {dimension_semantics = [#tpu.dimension_semantics<parallel>], iteration_bounds = array<i64: 2>, scalar_prefetch = 0 : i64, scratch_operands = 0 : i64, tpu.core_type = #tpu.core_type<tc>, window_params = [{transform_indices = @transform_0, window_bounds = array<i64: 1, 2, 8, 32>}, {pipeline_mode = #tpu.pipeline_mode<synchronous>, transform_indices = @transform_1, window_bounds = array<i64: 32, 32>}, {pipeline_mode = #tpu.pipeline_mode<synchronous>, transform_indices = @transform_2, window_bounds = array<i64: 32, 32>}, {pipeline_mode = #tpu.pipeline_mode<synchronous>, transform_indices = @transform_3, window_bounds = array<i64: 1, 32>}, {pipeline_mode = #tpu.pipeline_mode<synchronous>, transform_indices = @transform_4, window_bounds = array<i64: 32, 32>}, {pipeline_mode = #tpu.pipeline_mode<synchronous>, transform_indices = @transform_5, window_bounds = array<i64: 1, 32>}, {transform_indices = @transform_6, window_bounds = array<i64: 1, 8, 32>}]} {
    %c0 = arith.constant 0 : index
    %c0_0 = arith.constant 0 : index
    %c0_1 = arith.constant 0 : index
    %c0_2 = arith.constant 0 : index
    %0 = vector.load %arg1[%c0, %c0_0, %c0_1, %c0_2] : memref<1x2x8x32xf32, #tpu.memory_space<vmem>>, vector<1x1x8x32xf32>
    %1 = vector.shape_cast %0 : vector<1x1x8x32xf32> to vector<8x32xf32>
    %c0_3 = arith.constant 0 : index
    %c1 = arith.constant 1 : index
    %c0_4 = arith.constant 0 : index
    %c0_5 = arith.constant 0 : index
    %2 = vector.load %arg1[%c0_3, %c1, %c0_4, %c0_5] : memref<1x2x8x32xf32, #tpu.memory_space<vmem>>, vector<1x1x8x32xf32>
    %3 = vector.shape_cast %2 : vector<1x1x8x32xf32> to vector<8x32xf32>
    %c0_6 = arith.constant 0 : index
    %c0_7 = arith.constant 0 : index
    %4 = vector.load %arg2[%c0_6, %c0_7] : memref<32x32xbf16, #tpu.memory_space<vmem>>, vector<32x32xbf16>
    %5 = arith.truncf %1 : vector<8x32xf32> to vector<8x32xbf16>
    %cst = arith.constant dense<0.000000e+00> : vector<8x32xf32>
    %6 = tpu.matmul %5, %4, %cst {dimension_numbers = #tpu.dot_dimension_numbers<[1], [0], [0], [1], [0, 0, 1, 1], [], []>} : vector<8x32xbf16>, vector<32x32xbf16>, vector<8x32xf32> -> vector<8x32xf32>
    %c0_8 = arith.constant 0 : index
    %c0_9 = arith.constant 0 : index
    %7 = vector.load %arg3[%c0_8, %c0_9] : memref<32x32xbf16, #tpu.memory_space<vmem>>, vector<32x32xbf16>
    %8 = arith.truncf %3 : vector<8x32xf32> to vector<8x32xbf16>
    %cst_10 = arith.constant dense<0.000000e+00> : vector<8x32xf32>
    %9 = tpu.matmul %8, %7, %cst_10 {dimension_numbers = #tpu.dot_dimension_numbers<[1], [0], [0], [1], [0, 0, 1, 1], [], []>} : vector<8x32xbf16>, vector<32x32xbf16>, vector<8x32xf32> -> vector<8x32xf32>
    %10 = arith.addf %6, %9 : vector<8x32xf32>
    %c0_11 = arith.constant 0 : index
    %c0_12 = arith.constant 0 : index
    %11 = vector.load %arg4[%c0_11, %c0_12] : memref<1x32xf32, #tpu.memory_space<vmem>>, vector<1x32xf32>
    %12 = vector.broadcast %11 : vector<1x32xf32> to vector<8x32xf32>
    %13 = arith.addf %10, %12 : vector<8x32xf32>
    %cst_13 = arith.constant 0.000000e+00 : f32
    %14 = vector.broadcast %cst_13 : f32 to vector<8x32xf32>
    %15 = arith.maximumf %13, %14 : vector<8x32xf32>
    %c0_14 = arith.constant 0 : index
    %c0_15 = arith.constant 0 : index
    %16 = vector.load %arg5[%c0_14, %c0_15] : memref<32x32xbf16, #tpu.memory_space<vmem>>, vector<32x32xbf16>
    %17 = arith.truncf %15 : vector<8x32xf32> to vector<8x32xbf16>
    %cst_16 = arith.constant dense<0.000000e+00> : vector<8x32xf32>
    %18 = tpu.matmul %17, %16, %cst_16 {dimension_numbers = #tpu.dot_dimension_numbers<[1], [0], [0], [1], [0, 0, 1, 1], [], []>} : vector<8x32xbf16>, vector<32x32xbf16>, vector<8x32xf32> -> vector<8x32xf32>
    %c0_17 = arith.constant 0 : index
    %c0_18 = arith.constant 0 : index
    %19 = vector.load %arg6[%c0_17, %c0_18] : memref<1x32xf32, #tpu.memory_space<vmem>>, vector<1x32xf32>
    %20 = vector.broadcast %19 : vector<1x32xf32> to vector<8x32xf32>
    %21 = arith.addf %18, %20 : vector<8x32xf32>
    %c0_19 = arith.constant 0 : index
    %c0_20 = arith.constant 0 : index
    %c0_21 = arith.constant 0 : index
    %22 = vector.load %arg7[%c0_19, %c0_20, %c0_21] : memref<1x8x32xf32, #tpu.memory_space<vmem>>, vector<1x8x32xf32>
    %23 = vector.shape_cast %22 : vector<1x8x32xf32> to vector<8x32xf32>
    %24 = vector.shape_cast %21 : vector<8x32xf32> to vector<1x8x32xf32>
    tpu.vector_store %arg7[%c0_19, %c0_20, %c0_21], %24 {strides = array<i32>} : memref<1x8x32xf32, #tpu.memory_space<vmem>>, vector<1x8x32xf32>,
    return
  }
  func.func @transform_0(%arg0: i32) -> (i32, i32, i32, i32) {
    %c0_i32 = arith.constant 0 : i32
    %c0_i32_0 = arith.constant 0 : i32
    %c0_i32_1 = arith.constant 0 : i32
    %c0_i32_2 = arith.constant 0 : i32
    return %arg0, %c0_i32, %c0_i32_0, %c0_i32_1 : i32, i32, i32, i32
  }
  func.func @transform_1(%arg0: i32) -> (i32, i32) {
    %c0_i32 = arith.constant 0 : i32
    %c0_i32_0 = arith.constant 0 : i32
    %c0_i32_1 = arith.constant 0 : i32
    return %c0_i32, %c0_i32_0 : i32, i32
  }
  func.func @transform_2(%arg0: i32) -> (i32, i32) {
    %c0_i32 = arith.constant 0 : i32
    %c0_i32_0 = arith.constant 0 : i32
    %c0_i32_1 = arith.constant 0 : i32
    return %c0_i32, %c0_i32_0 : i32, i32
  }
  func.func @transform_3(%arg0: i32) -> (i32, i32) {
    %c0_i32 = arith.constant 0 : i32
    %c0_i32_0 = arith.constant 0 : i32
    %c0_i32_1 = arith.constant 0 : i32
    return %c0_i32, %c0_i32_0 : i32, i32
  }
  func.func @transform_4(%arg0: i32) -> (i32, i32) {
    %c0_i32 = arith.constant 0 : i32
    %c0_i32_0 = arith.constant 0 : i32
    %c0_i32_1 = arith.constant 0 : i32
    return %c0_i32, %c0_i32_0 : i32, i32
  }
  func.func @transform_5(%arg0: i32) -> (i32, i32) {
    %c0_i32 = arith.constant 0 : i32
    %c0_i32_0 = arith.constant 0 : i32
    %c0_i32_1 = arith.constant 0 : i32
    return %c0_i32, %c0_i32_0 : i32, i32
  }
  func.func @transform_6(%arg0: i32) -> (i32, i32, i32) {
    %c0_i32 = arith.constant 0 : i32
    %c0_i32_0 = arith.constant 0 : i32
    %c0_i32_1 = arith.constant 0 : i32
    return %arg0, %c0_i32, %c0_i32_0 : i32, i32, i32
  }
}

module attributes {stable_mosaic.version = 11 : i64} {
  func.func @_tail_kernel(%arg0: i32, %arg1: memref<1x2x8x32xf32, #tpu.memory_space<vmem>>, %arg2: memref<2x2xf32, #tpu.memory_space<vmem>>, %arg3: memref<1x2xf32, #tpu.memory_space<vmem>>, %arg4: memref<2x2xf32, #tpu.memory_space<vmem>>, %arg5: memref<2x1xf32, #tpu.memory_space<vmem>>, %arg6: memref<32x16xbf16, #tpu.memory_space<vmem>>, %arg7: memref<1x16xf32, #tpu.memory_space<vmem>>, %arg8: memref<16x128xbf16, #tpu.memory_space<vmem>>, %arg9: memref<1x128xf32, #tpu.memory_space<vmem>>, %arg10: memref<1x8x128xf32, #tpu.memory_space<vmem>>) attributes {dimension_semantics = [#tpu.dimension_semantics<parallel>], iteration_bounds = array<i64: 2>, scalar_prefetch = 0 : i64, scratch_operands = 0 : i64, tpu.core_type = #tpu.core_type<tc>, window_params = [{transform_indices = @transform_0, window_bounds = array<i64: 1, 2, 8, 32>}, {pipeline_mode = #tpu.pipeline_mode<synchronous>, transform_indices = @transform_1, window_bounds = array<i64: 2, 2>}, {pipeline_mode = #tpu.pipeline_mode<synchronous>, transform_indices = @transform_2, window_bounds = array<i64: 1, 2>}, {pipeline_mode = #tpu.pipeline_mode<synchronous>, transform_indices = @transform_3, window_bounds = array<i64: 2, 2>}, {pipeline_mode = #tpu.pipeline_mode<synchronous>, transform_indices = @transform_4, window_bounds = array<i64: 2, 1>}, {pipeline_mode = #tpu.pipeline_mode<synchronous>, transform_indices = @transform_5, window_bounds = array<i64: 32, 16>}, {pipeline_mode = #tpu.pipeline_mode<synchronous>, transform_indices = @transform_6, window_bounds = array<i64: 1, 16>}, {pipeline_mode = #tpu.pipeline_mode<synchronous>, transform_indices = @transform_7, window_bounds = array<i64: 16, 128>}, {pipeline_mode = #tpu.pipeline_mode<synchronous>, transform_indices = @transform_8, window_bounds = array<i64: 1, 128>}, {transform_indices = @transform_9, window_bounds = array<i64: 1, 8, 128>}]} {
    %c0 = arith.constant 0 : index
    %c0_0 = arith.constant 0 : index
    %c0_1 = arith.constant 0 : index
    %c0_2 = arith.constant 0 : index
    %0 = vector.load %arg1[%c0, %c0_0, %c0_1, %c0_2] : memref<1x2x8x32xf32, #tpu.memory_space<vmem>>, vector<1x2x8x32xf32>
    %1 = vector.shape_cast %0 : vector<1x2x8x32xf32> to vector<2x8x32xf32>
    %cst = arith.constant dense<0.000000e+00> : vector<2x8xf32>
    %2 = vector.multi_reduction <add>, %1, %cst [2] : vector<2x8x32xf32> to vector<2x8xf32>
    %cst_3 = arith.constant 3.200000e+01 : f32
    %3 = vector.broadcast %cst_3 : f32 to vector<2x8xf32>
    %4 = arith.divf %2, %3 : vector<2x8xf32>
    %cst_4 = arith.constant dense<0.000000e+00> : vector<2xf32>
    %5 = vector.multi_reduction <add>, %4, %cst_4 [1] : vector<2x8xf32> to vector<2xf32>
    %6 = vector.shape_cast %5 : vector<2xf32> to vector<2x1xf32>
    %cst_5 = arith.constant 8.000000e+00 : f32
    %7 = vector.broadcast %cst_5 : f32 to vector<2x1xf32>
    %8 = arith.divf %6, %7 : vector<2x1xf32>
    %c0_6 = arith.constant 0 : index
    %c0_7 = arith.constant 0 : index
    %9 = vector.load %arg2[%c0_6, %c0_7] : memref<2x2xf32, #tpu.memory_space<vmem>>, vector<2x2xf32>
    %10 = vector.broadcast %8 : vector<2x1xf32> to vector<2x2xf32>
    %11 = arith.mulf %9, %10 : vector<2x2xf32>
    %cst_8 = arith.constant dense<0.000000e+00> : vector<2xf32>
    %12 = vector.multi_reduction <add>, %11, %cst_8 [0] : vector<2x2xf32> to vector<2xf32>
    %13 = vector.shape_cast %12 : vector<2xf32> to vector<1x2xf32>
    %c0_9 = arith.constant 0 : index
    %c0_10 = arith.constant 0 : index
    %14 = vector.load %arg3[%c0_9, %c0_10] : memref<1x2xf32, #tpu.memory_space<vmem>>, vector<1x2xf32>
    %15 = arith.addf %13, %14 : vector<1x2xf32>
    %cst_11 = arith.constant 0.000000e+00 : f32
    %16 = vector.broadcast %cst_11 : f32 to vector<1x2xf32>
    %17 = arith.maximumf %15, %16 : vector<1x2xf32>
    %c0_12 = arith.constant 0 : index
    %c0_13 = arith.constant 0 : index
    %18 = vector.load %arg4[%c0_12, %c0_13] : memref<2x2xf32, #tpu.memory_space<vmem>>, vector<2x2xf32>
    %19 = vector.broadcast %17 : vector<1x2xf32> to vector<2x2xf32>
    %20 = arith.mulf %18, %19 : vector<2x2xf32>
    %cst_14 = arith.constant dense<0.000000e+00> : vector<2xf32>
    %21 = vector.multi_reduction <add>, %20, %cst_14 [1] : vector<2x2xf32> to vector<2xf32>
    %22 = vector.shape_cast %21 : vector<2xf32> to vector<2x1xf32>
    %c0_15 = arith.constant 0 : index
    %c0_16 = arith.constant 0 : index
    %23 = vector.load %arg5[%c0_15, %c0_16] : memref<2x1xf32, #tpu.memory_space<vmem>>, vector<2x1xf32>
    %24 = arith.addf %22, %23 : vector<2x1xf32>
    %25 = arith.negf %24 : vector<2x1xf32>
    %26 = math.exp %25 : vector<2x1xf32>
    %cst_17 = arith.constant 1.000000e+00 : f32
    %27 = vector.broadcast %cst_17 : f32 to vector<2x1xf32>
    %28 = arith.addf %27, %26 : vector<2x1xf32>
    %29 = arith.divf %27, %28 : vector<2x1xf32>
    %cst_18 = arith.constant 0.000000e+00 : f32
    %30 = vector.broadcast %cst_18 : f32 to vector<8x32xf32>
    %31 = vector.extract_strided_slice %1 {offsets = [0, 0, 0], sizes = [1, 8, 32], strides = [1, 1, 1]} : vector<2x8x32xf32> to vector<1x8x32xf32>
    %32 = vector.shape_cast %31 : vector<1x8x32xf32> to vector<8x32xf32>
    %33 = vector.extract_strided_slice %29 {offsets = [0, 0], sizes = [1, 1], strides = [1, 1]} : vector<2x1xf32> to vector<1x1xf32>
    %34 = vector.broadcast %33 : vector<1x1xf32> to vector<8x32xf32>
    %35 = arith.mulf %32, %34 : vector<8x32xf32>
    %36 = arith.addf %30, %35 : vector<8x32xf32>
    %37 = vector.extract_strided_slice %1 {offsets = [1, 0, 0], sizes = [1, 8, 32], strides = [1, 1, 1]} : vector<2x8x32xf32> to vector<1x8x32xf32>
    %38 = vector.shape_cast %37 : vector<1x8x32xf32> to vector<8x32xf32>
    %39 = vector.extract_strided_slice %29 {offsets = [1, 0], sizes = [1, 1], strides = [1, 1]} : vector<2x1xf32> to vector<1x1xf32>
    %40 = vector.broadcast %39 : vector<1x1xf32> to vector<8x32xf32>
    %41 = arith.mulf %38, %40 : vector<8x32xf32>
    %42 = arith.addf %36, %41 : vector<8x32xf32>
    %c0_19 = arith.constant 0 : index
    %c0_20 = arith.constant 0 : index
    %43 = vector.load %arg6[%c0_19, %c0_20] : memref<32x16xbf16, #tpu.memory_space<vmem>>, vector<32x16xbf16>
    %44 = arith.truncf %42 : vector<8x32xf32> to vector<8x32xbf16>
    %cst_21 = arith.constant dense<0.000000e+00> : vector<8x16xf32>
    %45 = tpu.matmul %44, %43, %cst_21 {dimension_numbers = #tpu.dot_dimension_numbers<[1], [0], [0], [1], [0, 0, 1, 1], [], []>} : vector<8x32xbf16>, vector<32x16xbf16>, vector<8x16xf32> -> vector<8x16xf32>
    %c0_22 = arith.constant 0 : index
    %c0_23 = arith.constant 0 : index
    %46 = vector.load %arg7[%c0_22, %c0_23] : memref<1x16xf32, #tpu.memory_space<vmem>>, vector<1x16xf32>
    %47 = vector.broadcast %46 : vector<1x16xf32> to vector<8x16xf32>
    %48 = arith.addf %45, %47 : vector<8x16xf32>
    %cst_24 = arith.constant 0.000000e+00 : f32
    %49 = vector.broadcast %cst_24 : f32 to vector<8x16xf32>
    %50 = arith.maximumf %48, %49 : vector<8x16xf32>
    %c0_25 = arith.constant 0 : index
    %c0_26 = arith.constant 0 : index
    %51 = vector.load %arg8[%c0_25, %c0_26] : memref<16x128xbf16, #tpu.memory_space<vmem>>, vector<16x128xbf16>
    %52 = arith.truncf %50 : vector<8x16xf32> to vector<8x16xbf16>
    %cst_27 = arith.constant dense<0.000000e+00> : vector<8x128xf32>
    %53 = tpu.matmul %52, %51, %cst_27 {dimension_numbers = #tpu.dot_dimension_numbers<[1], [0], [0], [1], [0, 0, 1, 1], [], []>} : vector<8x16xbf16>, vector<16x128xbf16>, vector<8x128xf32> -> vector<8x128xf32>
    %c0_28 = arith.constant 0 : index
    %c0_29 = arith.constant 0 : index
    %54 = vector.load %arg9[%c0_28, %c0_29] : memref<1x128xf32, #tpu.memory_space<vmem>>, vector<1x128xf32>
    %55 = vector.broadcast %54 : vector<1x128xf32> to vector<8x128xf32>
    %56 = arith.addf %53, %55 : vector<8x128xf32>
    %57 = arith.negf %56 : vector<8x128xf32>
    %58 = math.exp %57 : vector<8x128xf32>
    %cst_30 = arith.constant 1.000000e+00 : f32
    %59 = vector.broadcast %cst_30 : f32 to vector<8x128xf32>
    %60 = arith.addf %59, %58 : vector<8x128xf32>
    %61 = arith.divf %59, %60 : vector<8x128xf32>
    %c0_31 = arith.constant 0 : index
    %c0_32 = arith.constant 0 : index
    %c0_33 = arith.constant 0 : index
    %62 = vector.load %arg10[%c0_31, %c0_32, %c0_33] : memref<1x8x128xf32, #tpu.memory_space<vmem>>, vector<1x8x128xf32>
    %63 = vector.shape_cast %62 : vector<1x8x128xf32> to vector<8x128xf32>
    %64 = vector.shape_cast %61 : vector<8x128xf32> to vector<1x8x128xf32>
    tpu.vector_store %arg10[%c0_31, %c0_32, %c0_33], %64 {strides = array<i32>} : memref<1x8x128xf32, #tpu.memory_space<vmem>>, vector<1x8x128xf32>,
    return
  }
  func.func @transform_0(%arg0: i32) -> (i32, i32, i32, i32) {
    %c0_i32 = arith.constant 0 : i32
    %c0_i32_0 = arith.constant 0 : i32
    %c0_i32_1 = arith.constant 0 : i32
    %c0_i32_2 = arith.constant 0 : i32
    return %arg0, %c0_i32, %c0_i32_0, %c0_i32_1 : i32, i32, i32, i32
  }
  func.func @transform_1(%arg0: i32) -> (i32, i32) {
    %c0_i32 = arith.constant 0 : i32
    %c0_i32_0 = arith.constant 0 : i32
    %c0_i32_1 = arith.constant 0 : i32
    return %c0_i32, %c0_i32_0 : i32, i32
  }
  func.func @transform_2(%arg0: i32) -> (i32, i32) {
    %c0_i32 = arith.constant 0 : i32
    %c0_i32_0 = arith.constant 0 : i32
    %c0_i32_1 = arith.constant 0 : i32
    return %c0_i32, %c0_i32_0 : i32, i32
  }
  func.func @transform_3(%arg0: i32) -> (i32, i32) {
    %c0_i32 = arith.constant 0 : i32
    %c0_i32_0 = arith.constant 0 : i32
    %c0_i32_1 = arith.constant 0 : i32
    return %c0_i32, %c0_i32_0 : i32, i32
  }
  func.func @transform_4(%arg0: i32) -> (i32, i32) {
    %c0_i32 = arith.constant 0 : i32
    %c0_i32_0 = arith.constant 0 : i32
    %c0_i32_1 = arith.constant 0 : i32
    return %c0_i32, %c0_i32_0 : i32, i32
  }
  func.func @transform_5(%arg0: i32) -> (i32, i32) {
    %c0_i32 = arith.constant 0 : i32
    %c0_i32_0 = arith.constant 0 : i32
    %c0_i32_1 = arith.constant 0 : i32
    return %c0_i32, %c0_i32_0 : i32, i32
  }
  func.func @transform_6(%arg0: i32) -> (i32, i32) {
    %c0_i32 = arith.constant 0 : i32
    %c0_i32_0 = arith.constant 0 : i32
    %c0_i32_1 = arith.constant 0 : i32
    return %c0_i32, %c0_i32_0 : i32, i32
  }
  func.func @transform_7(%arg0: i32) -> (i32, i32) {
    %c0_i32 = arith.constant 0 : i32
    %c0_i32_0 = arith.constant 0 : i32
    %c0_i32_1 = arith.constant 0 : i32
    return %c0_i32, %c0_i32_0 : i32, i32
  }
  func.func @transform_8(%arg0: i32) -> (i32, i32) {
    %c0_i32 = arith.constant 0 : i32
    %c0_i32_0 = arith.constant 0 : i32
    %c0_i32_1 = arith.constant 0 : i32
    return %c0_i32, %c0_i32_0 : i32, i32
  }
  func.func @transform_9(%arg0: i32) -> (i32, i32, i32) {
    %c0_i32 = arith.constant 0 : i32
    %c0_i32_0 = arith.constant 0 : i32
    %c0_i32_1 = arith.constant 0 : i32
    return %arg0, %c0_i32, %c0_i32_0 : i32, i32, i32
  }
}

module attributes {stable_mosaic.version = 11 : i64} {
  func.func @_txl_kernel(%arg0: i32, %arg1: i32, %arg2: memref<1x1x8x32xf32, #tpu.memory_space<vmem>>, %arg3: memref<1x1x8x32xf32, #tpu.memory_space<vmem>>, %arg4: memref<1x1x8x32xf32, #tpu.memory_space<vmem>>, %arg5: memref<1x32x32xbf16, #tpu.memory_space<vmem>>, %arg6: memref<1x1x32xf32, #tpu.memory_space<vmem>>, %arg7: memref<1x32x32xbf16, #tpu.memory_space<vmem>>, %arg8: memref<1x1x32xf32, #tpu.memory_space<vmem>>, %arg9: memref<1x32x32xbf16, #tpu.memory_space<vmem>>, %arg10: memref<1x1x32xf32, #tpu.memory_space<vmem>>, %arg11: memref<1x1x32xf32, #tpu.memory_space<vmem>>, %arg12: memref<1x1x32xf32, #tpu.memory_space<vmem>>, %arg13: memref<1x32x64xbf16, #tpu.memory_space<vmem>>, %arg14: memref<1x1x64xf32, #tpu.memory_space<vmem>>, %arg15: memref<1x64x32xbf16, #tpu.memory_space<vmem>>, %arg16: memref<1x1x32xf32, #tpu.memory_space<vmem>>, %arg17: memref<1x1x32xf32, #tpu.memory_space<vmem>>, %arg18: memref<1x1x32xf32, #tpu.memory_space<vmem>>, %arg19: memref<1x1x8x32xf32, #tpu.memory_space<vmem>>) attributes {dimension_semantics = [#tpu.dimension_semantics<parallel>, #tpu.dimension_semantics<parallel>], iteration_bounds = array<i64: 2, 2>, scalar_prefetch = 0 : i64, scratch_operands = 0 : i64, tpu.core_type = #tpu.core_type<tc>, window_params = [{transform_indices = @transform_0, window_bounds = array<i64: 1, 1, 8, 32>}, {transform_indices = @transform_1, window_bounds = array<i64: 1, 1, 8, 32>}, {transform_indices = @transform_2, window_bounds = array<i64: 1, 1, 8, 32>}, {transform_indices = @transform_3, window_bounds = array<i64: 1, 32, 32>}, {transform_indices = @transform_4, window_bounds = array<i64: 1, 1, 32>}, {transform_indices = @transform_5, window_bounds = array<i64: 1, 32, 32>}, {transform_indices = @transform_6, window_bounds = array<i64: 1, 1, 32>}, {transform_indices = @transform_7, window_bounds = array<i64: 1, 32, 32>}, {transform_indices = @transform_8, window_bounds = array<i64: 1, 1, 32>}, {transform_indices = @transform_9, window_bounds = array<i64: 1, 1, 32>}, {transform_indices = @transform_10, window_bounds = array<i64: 1, 1, 32>}, {transform_indices = @transform_11, window_bounds = array<i64: 1, 32, 64>}, {transform_indices = @transform_12, window_bounds = array<i64: 1, 1, 64>}, {transform_indices = @transform_13, window_bounds = array<i64: 1, 64, 32>}, {transform_indices = @transform_14, window_bounds = array<i64: 1, 1, 32>}, {transform_indices = @transform_15, window_bounds = array<i64: 1, 1, 32>}, {transform_indices = @transform_16, window_bounds = array<i64: 1, 1, 32>}, {transform_indices = @transform_17, window_bounds = array<i64: 1, 1, 8, 32>}]} {
    %c0 = arith.constant 0 : index
    %c0_0 = arith.constant 0 : index
    %c0_1 = arith.constant 0 : index
    %c0_2 = arith.constant 0 : index
    %0 = vector.load %arg2[%c0, %c0_0, %c0_1, %c0_2] : memref<1x1x8x32xf32, #tpu.memory_space<vmem>>, vector<1x1x8x32xf32>
    %1 = vector.shape_cast %0 : vector<1x1x8x32xf32> to vector<8x32xf32>
    %c0_3 = arith.constant 0 : index
    %c0_4 = arith.constant 0 : index
    %c0_5 = arith.constant 0 : index
    %c0_6 = arith.constant 0 : index
    %2 = vector.load %arg3[%c0_3, %c0_4, %c0_5, %c0_6] : memref<1x1x8x32xf32, #tpu.memory_space<vmem>>, vector<1x1x8x32xf32>
    %3 = vector.shape_cast %2 : vector<1x1x8x32xf32> to vector<8x32xf32>
    %c0_7 = arith.constant 0 : index
    %c0_8 = arith.constant 0 : index
    %c0_9 = arith.constant 0 : index
    %c0_10 = arith.constant 0 : index
    %4 = vector.load %arg4[%c0_7, %c0_8, %c0_9, %c0_10] : memref<1x1x8x32xf32, #tpu.memory_space<vmem>>, vector<1x1x8x32xf32>
    %5 = vector.shape_cast %4 : vector<1x1x8x32xf32> to vector<8x32xf32>
    %c0_11 = arith.constant 0 : index
    %c0_12 = arith.constant 0 : index
    %c0_13 = arith.constant 0 : index
    %6 = vector.load %arg5[%c0_11, %c0_12, %c0_13] : memref<1x32x32xbf16, #tpu.memory_space<vmem>>, vector<1x32x32xbf16>
    %7 = vector.shape_cast %6 : vector<1x32x32xbf16> to vector<32x32xbf16>
    %c0_14 = arith.constant 0 : index
    %c0_15 = arith.constant 0 : index
    %c0_16 = arith.constant 0 : index
    %8 = vector.load %arg6[%c0_14, %c0_15, %c0_16] : memref<1x1x32xf32, #tpu.memory_space<vmem>>, vector<1x1x32xf32>
    %9 = vector.shape_cast %8 : vector<1x1x32xf32> to vector<1x32xf32>
    %10 = arith.truncf %1 : vector<8x32xf32> to vector<8x32xbf16>
    %cst = arith.constant dense<0.000000e+00> : vector<8x32xf32>
    %11 = tpu.matmul %10, %7, %cst {dimension_numbers = #tpu.dot_dimension_numbers<[1], [0], [0], [1], [0, 0, 1, 1], [], []>} : vector<8x32xbf16>, vector<32x32xbf16>, vector<8x32xf32> -> vector<8x32xf32>
    %12 = vector.broadcast %9 : vector<1x32xf32> to vector<8x32xf32>
    %13 = arith.addf %11, %12 : vector<8x32xf32>
    %14 = arith.truncf %3 : vector<8x32xf32> to vector<8x32xbf16>
    %cst_17 = arith.constant dense<0.000000e+00> : vector<8x32xf32>
    %15 = tpu.matmul %14, %7, %cst_17 {dimension_numbers = #tpu.dot_dimension_numbers<[1], [0], [0], [1], [0, 0, 1, 1], [], []>} : vector<8x32xbf16>, vector<32x32xbf16>, vector<8x32xf32> -> vector<8x32xf32>
    %16 = vector.broadcast %9 : vector<1x32xf32> to vector<8x32xf32>
    %17 = arith.addf %15, %16 : vector<8x32xf32>
    %c0_18 = arith.constant 0 : index
    %c0_19 = arith.constant 0 : index
    %c0_20 = arith.constant 0 : index
    %18 = vector.load %arg7[%c0_18, %c0_19, %c0_20] : memref<1x32x32xbf16, #tpu.memory_space<vmem>>, vector<1x32x32xbf16>
    %19 = vector.shape_cast %18 : vector<1x32x32xbf16> to vector<32x32xbf16>
    %20 = arith.truncf %5 : vector<8x32xf32> to vector<8x32xbf16>
    %cst_21 = arith.constant dense<0.000000e+00> : vector<8x32xf32>
    %21 = tpu.matmul %20, %19, %cst_21 {dimension_numbers = #tpu.dot_dimension_numbers<[1], [0], [0], [1], [0, 0, 1, 1], [], []>} : vector<8x32xbf16>, vector<32x32xbf16>, vector<8x32xf32> -> vector<8x32xf32>
    %c0_22 = arith.constant 0 : index
    %c0_23 = arith.constant 0 : index
    %c0_24 = arith.constant 0 : index
    %22 = vector.load %arg8[%c0_22, %c0_23, %c0_24] : memref<1x1x32xf32, #tpu.memory_space<vmem>>, vector<1x1x32xf32>
    %23 = vector.shape_cast %22 : vector<1x1x32xf32> to vector<1x32xf32>
    %24 = vector.broadcast %23 : vector<1x32xf32> to vector<8x32xf32>
    %25 = arith.addf %21, %24 : vector<8x32xf32>
    %26 = tpu.iota {dimensions = array<i32: 0>} : vector<8x8xi32>
    %27 = tpu.iota {dimensions = array<i32: 1>} : vector<8x8xi32>
    %28 = arith.cmpi sle, %27, %26 : vector<8x8xi32>
    %c0_25 = arith.constant 0 : index
    %c0_26 = arith.constant 0 : index
    %c0_27 = arith.constant 0 : index
    %29 = vector.load %arg9[%c0_25, %c0_26, %c0_27] : memref<1x32x32xbf16, #tpu.memory_space<vmem>>, vector<1x32x32xbf16>
    %30 = vector.shape_cast %29 : vector<1x32x32xbf16> to vector<32x32xbf16>
    %cst_28 = arith.constant 0.000000e+00 : f32
    %31 = vector.broadcast %cst_28 : f32 to vector<8x32xf32>
    %32 = vector.extract_strided_slice %13 {offsets = [0, 0], sizes = [8, 16], strides = [1, 1]} : vector<8x32xf32> to vector<8x16xf32>
    %33 = vector.extract_strided_slice %17 {offsets = [0, 0], sizes = [8, 16], strides = [1, 1]} : vector<8x32xf32> to vector<8x16xf32>
    %34 = vector.extract_strided_slice %25 {offsets = [0, 0], sizes = [8, 16], strides = [1, 1]} : vector<8x32xf32> to vector<8x16xf32>
    %35 = arith.truncf %32 : vector<8x16xf32> to vector<8x16xbf16>
    %36 = arith.truncf %33 : vector<8x16xf32> to vector<8x16xbf16>
    %cst_29 = arith.constant dense<0.000000e+00> : vector<8x8xf32>
    %37 = tpu.matmul %35, %36, %cst_29 {dimension_numbers = #tpu.dot_dimension_numbers<[1], [1], [0], [0], [0, 0, 1, 0], [], []>} : vector<8x16xbf16>, vector<8x16xbf16>, vector<8x8xf32> -> vector<8x8xf32>
    %cst_30 = arith.constant 2.500000e-01 : f32
    %38 = vector.broadcast %cst_30 : f32 to vector<8x8xf32>
    %39 = arith.mulf %37, %38 : vector<8x8xf32>
    %cst_31 = arith.constant -1.000000e+30 : f32
    %40 = vector.broadcast %cst_31 : f32 to vector<8x8xf32>
    %41 = arith.select %28, %39, %40 : vector<8x8xi1>, vector<8x8xf32>
    %cst_32 = arith.constant dense<0xFF800000> : vector<8xf32>
    %42 = vector.multi_reduction <maximumf>, %41, %cst_32 [1] : vector<8x8xf32> to vector<8xf32>
    %43 = vector.shape_cast %42 : vector<8xf32> to vector<8x1xf32>
    %44 = vector.broadcast %43 : vector<8x1xf32> to vector<8x8xf32>
    %45 = arith.subf %41, %44 : vector<8x8xf32>
    %46 = math.exp %45 : vector<8x8xf32>
    %cst_33 = arith.constant dense<0.000000e+00> : vector<8xf32>
    %47 = vector.multi_reduction <add>, %46, %cst_33 [1] : vector<8x8xf32> to vector<8xf32>
    %48 = vector.shape_cast %47 : vector<8xf32> to vector<8x1xf32>
    %49 = tpu.reciprocal %48 {approx = true} : vector<8x1xf32> -> vector<8x1xf32>
    %50 = vector.broadcast %49 : vector<8x1xf32> to vector<8x8xf32>
    %51 = arith.mulf %46, %50 : vector<8x8xf32>
    %52 = arith.truncf %34 : vector<8x16xf32> to vector<8x16xbf16>
    %53 = arith.truncf %51 : vector<8x8xf32> to vector<8x8xbf16>
    %cst_34 = arith.constant dense<0.000000e+00> : vector<8x16xf32>
    %54 = tpu.matmul %53, %52, %cst_34 {dimension_numbers = #tpu.dot_dimension_numbers<[1], [0], [0], [1], [0, 0, 1, 1], [], []>} : vector<8x8xbf16>, vector<8x16xbf16>, vector<8x16xf32> -> vector<8x16xf32>
    %55 = vector.extract_strided_slice %30 {offsets = [0, 0], sizes = [16, 32], strides = [1, 1]} : vector<32x32xbf16> to vector<16x32xbf16>
    %56 = arith.truncf %54 : vector<8x16xf32> to vector<8x16xbf16>
    %cst_35 = arith.constant dense<0.000000e+00> : vector<8x32xf32>
    %57 = tpu.matmul %56, %55, %cst_35 {dimension_numbers = #tpu.dot_dimension_numbers<[1], [0], [0], [1], [0, 0, 1, 1], [], []>} : vector<8x16xbf16>, vector<16x32xbf16>, vector<8x32xf32> -> vector<8x32xf32>
    %58 = arith.addf %31, %57 : vector<8x32xf32>
    %59 = vector.extract_strided_slice %13 {offsets = [0, 16], sizes = [8, 16], strides = [1, 1]} : vector<8x32xf32> to vector<8x16xf32>
    %60 = vector.extract_strided_slice %17 {offsets = [0, 16], sizes = [8, 16], strides = [1, 1]} : vector<8x32xf32> to vector<8x16xf32>
    %61 = vector.extract_strided_slice %25 {offsets = [0, 16], sizes = [8, 16], strides = [1, 1]} : vector<8x32xf32> to vector<8x16xf32>
    %62 = arith.truncf %59 : vector<8x16xf32> to vector<8x16xbf16>
    %63 = arith.truncf %60 : vector<8x16xf32> to vector<8x16xbf16>
    %cst_36 = arith.constant dense<0.000000e+00> : vector<8x8xf32>
    %64 = tpu.matmul %62, %63, %cst_36 {dimension_numbers = #tpu.dot_dimension_numbers<[1], [1], [0], [0], [0, 0, 1, 0], [], []>} : vector<8x16xbf16>, vector<8x16xbf16>, vector<8x8xf32> -> vector<8x8xf32>
    %cst_37 = arith.constant 2.500000e-01 : f32
    %65 = vector.broadcast %cst_37 : f32 to vector<8x8xf32>
    %66 = arith.mulf %64, %65 : vector<8x8xf32>
    %cst_38 = arith.constant -1.000000e+30 : f32
    %67 = vector.broadcast %cst_38 : f32 to vector<8x8xf32>
    %68 = arith.select %28, %66, %67 : vector<8x8xi1>, vector<8x8xf32>
    %cst_39 = arith.constant dense<0xFF800000> : vector<8xf32>
    %69 = vector.multi_reduction <maximumf>, %68, %cst_39 [1] : vector<8x8xf32> to vector<8xf32>
    %70 = vector.shape_cast %69 : vector<8xf32> to vector<8x1xf32>
    %71 = vector.broadcast %70 : vector<8x1xf32> to vector<8x8xf32>
    %72 = arith.subf %68, %71 : vector<8x8xf32>
    %73 = math.exp %72 : vector<8x8xf32>
    %cst_40 = arith.constant dense<0.000000e+00> : vector<8xf32>
    %74 = vector.multi_reduction <add>, %73, %cst_40 [1] : vector<8x8xf32> to vector<8xf32>
    %75 = vector.shape_cast %74 : vector<8xf32> to vector<8x1xf32>
    %76 = tpu.reciprocal %75 {approx = true} : vector<8x1xf32> -> vector<8x1xf32>
    %77 = vector.broadcast %76 : vector<8x1xf32> to vector<8x8xf32>
    %78 = arith.mulf %73, %77 : vector<8x8xf32>
    %79 = arith.truncf %61 : vector<8x16xf32> to vector<8x16xbf16>
    %80 = arith.truncf %78 : vector<8x8xf32> to vector<8x8xbf16>
    %cst_41 = arith.constant dense<0.000000e+00> : vector<8x16xf32>
    %81 = tpu.matmul %80, %79, %cst_41 {dimension_numbers = #tpu.dot_dimension_numbers<[1], [0], [0], [1], [0, 0, 1, 1], [], []>} : vector<8x8xbf16>, vector<8x16xbf16>, vector<8x16xf32> -> vector<8x16xf32>
    %82 = vector.extract_strided_slice %30 {offsets = [16, 0], sizes = [16, 32], strides = [1, 1]} : vector<32x32xbf16> to vector<16x32xbf16>
    %83 = arith.truncf %81 : vector<8x16xf32> to vector<8x16xbf16>
    %cst_42 = arith.constant dense<0.000000e+00> : vector<8x32xf32>
    %84 = tpu.matmul %83, %82, %cst_42 {dimension_numbers = #tpu.dot_dimension_numbers<[1], [0], [0], [1], [0, 0, 1, 1], [], []>} : vector<8x16xbf16>, vector<16x32xbf16>, vector<8x32xf32> -> vector<8x32xf32>
    %85 = arith.addf %58, %84 : vector<8x32xf32>
    %c0_43 = arith.constant 0 : index
    %c0_44 = arith.constant 0 : index
    %c0_45 = arith.constant 0 : index
    %86 = vector.load %arg10[%c0_43, %c0_44, %c0_45] : memref<1x1x32xf32, #tpu.memory_space<vmem>>, vector<1x1x32xf32>
    %87 = vector.shape_cast %86 : vector<1x1x32xf32> to vector<1x32xf32>
    %88 = vector.broadcast %87 : vector<1x32xf32> to vector<8x32xf32>
    %89 = arith.addf %85, %88 : vector<8x32xf32>
    %90 = arith.addf %1, %89 : vector<8x32xf32>
    %c0_46 = arith.constant 0 : index
    %c0_47 = arith.constant 0 : index
    %c0_48 = arith.constant 0 : index
    %91 = vector.load %arg11[%c0_46, %c0_47, %c0_48] : memref<1x1x32xf32, #tpu.memory_space<vmem>>, vector<1x1x32xf32>
    %92 = vector.shape_cast %91 : vector<1x1x32xf32> to vector<1x32xf32>
    %c0_49 = arith.constant 0 : index
    %c0_50 = arith.constant 0 : index
    %c0_51 = arith.constant 0 : index
    %93 = vector.load %arg12[%c0_49, %c0_50, %c0_51] : memref<1x1x32xf32, #tpu.memory_space<vmem>>, vector<1x1x32xf32>
    %94 = vector.shape_cast %93 : vector<1x1x32xf32> to vector<1x32xf32>
    %cst_52 = arith.constant dense<0.000000e+00> : vector<8xf32>
    %95 = vector.multi_reduction <add>, %90, %cst_52 [1] : vector<8x32xf32> to vector<8xf32>
    %96 = vector.shape_cast %95 : vector<8xf32> to vector<8x1xf32>
    %cst_53 = arith.constant 3.200000e+01 : f32
    %97 = vector.broadcast %cst_53 : f32 to vector<8x1xf32>
    %98 = arith.divf %96, %97 : vector<8x1xf32>
    %99 = vector.broadcast %98 : vector<8x1xf32> to vector<8x32xf32>
    %100 = arith.subf %90, %99 : vector<8x32xf32>
    %101 = arith.mulf %100, %100 : vector<8x32xf32>
    %cst_54 = arith.constant dense<0.000000e+00> : vector<8xf32>
    %102 = vector.multi_reduction <add>, %101, %cst_54 [1] : vector<8x32xf32> to vector<8xf32>
    %103 = vector.shape_cast %102 : vector<8xf32> to vector<8x1xf32>
    %cst_55 = arith.constant 3.200000e+01 : f32
    %104 = vector.broadcast %cst_55 : f32 to vector<8x1xf32>
    %105 = arith.divf %103, %104 : vector<8x1xf32>
    %106 = vector.broadcast %98 : vector<8x1xf32> to vector<8x32xf32>
    %107 = arith.subf %90, %106 : vector<8x32xf32>
    %cst_56 = arith.constant 9.99999974E-6 : f32
    %108 = vector.broadcast %cst_56 : f32 to vector<8x1xf32>
    %109 = arith.addf %105, %108 : vector<8x1xf32>
    %110 = math.rsqrt %109 : vector<8x1xf32>
    %111 = vector.broadcast %110 : vector<8x1xf32> to vector<8x32xf32>
    %112 = arith.mulf %107, %111 : vector<8x32xf32>
    %113 = vector.broadcast %92 : vector<1x32xf32> to vector<8x32xf32>
    %114 = arith.mulf %112, %113 : vector<8x32xf32>
    %115 = vector.broadcast %94 : vector<1x32xf32> to vector<8x32xf32>
    %116 = arith.addf %114, %115 : vector<8x32xf32>
    %c0_57 = arith.constant 0 : index
    %c0_58 = arith.constant 0 : index
    %c0_59 = arith.constant 0 : index
    %117 = vector.load %arg13[%c0_57, %c0_58, %c0_59] : memref<1x32x64xbf16, #tpu.memory_space<vmem>>, vector<1x32x64xbf16>
    %118 = vector.shape_cast %117 : vector<1x32x64xbf16> to vector<32x64xbf16>
    %119 = arith.truncf %116 : vector<8x32xf32> to vector<8x32xbf16>
    %cst_60 = arith.constant dense<0.000000e+00> : vector<8x64xf32>
    %120 = tpu.matmul %119, %118, %cst_60 {dimension_numbers = #tpu.dot_dimension_numbers<[1], [0], [0], [1], [0, 0, 1, 1], [], []>} : vector<8x32xbf16>, vector<32x64xbf16>, vector<8x64xf32> -> vector<8x64xf32>
    %c0_61 = arith.constant 0 : index
    %c0_62 = arith.constant 0 : index
    %c0_63 = arith.constant 0 : index
    %121 = vector.load %arg14[%c0_61, %c0_62, %c0_63] : memref<1x1x64xf32, #tpu.memory_space<vmem>>, vector<1x1x64xf32>
    %122 = vector.shape_cast %121 : vector<1x1x64xf32> to vector<1x64xf32>
    %123 = vector.broadcast %122 : vector<1x64xf32> to vector<8x64xf32>
    %124 = arith.addf %120, %123 : vector<8x64xf32>
    %cst_64 = arith.constant 0.000000e+00 : f32
    %125 = vector.broadcast %cst_64 : f32 to vector<8x64xf32>
    %126 = arith.maximumf %124, %125 : vector<8x64xf32>
    %c0_65 = arith.constant 0 : index
    %c0_66 = arith.constant 0 : index
    %c0_67 = arith.constant 0 : index
    %127 = vector.load %arg15[%c0_65, %c0_66, %c0_67] : memref<1x64x32xbf16, #tpu.memory_space<vmem>>, vector<1x64x32xbf16>
    %128 = vector.shape_cast %127 : vector<1x64x32xbf16> to vector<64x32xbf16>
    %129 = arith.truncf %126 : vector<8x64xf32> to vector<8x64xbf16>
    %cst_68 = arith.constant dense<0.000000e+00> : vector<8x32xf32>
    %130 = tpu.matmul %129, %128, %cst_68 {dimension_numbers = #tpu.dot_dimension_numbers<[1], [0], [0], [1], [0, 0, 1, 1], [], []>} : vector<8x64xbf16>, vector<64x32xbf16>, vector<8x32xf32> -> vector<8x32xf32>
    %c0_69 = arith.constant 0 : index
    %c0_70 = arith.constant 0 : index
    %c0_71 = arith.constant 0 : index
    %131 = vector.load %arg16[%c0_69, %c0_70, %c0_71] : memref<1x1x32xf32, #tpu.memory_space<vmem>>, vector<1x1x32xf32>
    %132 = vector.shape_cast %131 : vector<1x1x32xf32> to vector<1x32xf32>
    %133 = vector.broadcast %132 : vector<1x32xf32> to vector<8x32xf32>
    %134 = arith.addf %130, %133 : vector<8x32xf32>
    %135 = arith.addf %116, %134 : vector<8x32xf32>
    %c0_72 = arith.constant 0 : index
    %c0_73 = arith.constant 0 : index
    %c0_74 = arith.constant 0 : index
    %136 = vector.load %arg17[%c0_72, %c0_73, %c0_74] : memref<1x1x32xf32, #tpu.memory_space<vmem>>, vector<1x1x32xf32>
    %137 = vector.shape_cast %136 : vector<1x1x32xf32> to vector<1x32xf32>
    %c0_75 = arith.constant 0 : index
    %c0_76 = arith.constant 0 : index
    %c0_77 = arith.constant 0 : index
    %138 = vector.load %arg18[%c0_75, %c0_76, %c0_77] : memref<1x1x32xf32, #tpu.memory_space<vmem>>, vector<1x1x32xf32>
    %139 = vector.shape_cast %138 : vector<1x1x32xf32> to vector<1x32xf32>
    %cst_78 = arith.constant dense<0.000000e+00> : vector<8xf32>
    %140 = vector.multi_reduction <add>, %135, %cst_78 [1] : vector<8x32xf32> to vector<8xf32>
    %141 = vector.shape_cast %140 : vector<8xf32> to vector<8x1xf32>
    %cst_79 = arith.constant 3.200000e+01 : f32
    %142 = vector.broadcast %cst_79 : f32 to vector<8x1xf32>
    %143 = arith.divf %141, %142 : vector<8x1xf32>
    %144 = vector.broadcast %143 : vector<8x1xf32> to vector<8x32xf32>
    %145 = arith.subf %135, %144 : vector<8x32xf32>
    %146 = arith.mulf %145, %145 : vector<8x32xf32>
    %cst_80 = arith.constant dense<0.000000e+00> : vector<8xf32>
    %147 = vector.multi_reduction <add>, %146, %cst_80 [1] : vector<8x32xf32> to vector<8xf32>
    %148 = vector.shape_cast %147 : vector<8xf32> to vector<8x1xf32>
    %cst_81 = arith.constant 3.200000e+01 : f32
    %149 = vector.broadcast %cst_81 : f32 to vector<8x1xf32>
    %150 = arith.divf %148, %149 : vector<8x1xf32>
    %151 = vector.broadcast %143 : vector<8x1xf32> to vector<8x32xf32>
    %152 = arith.subf %135, %151 : vector<8x32xf32>
    %cst_82 = arith.constant 9.99999974E-6 : f32
    %153 = vector.broadcast %cst_82 : f32 to vector<8x1xf32>
    %154 = arith.addf %150, %153 : vector<8x1xf32>
    %155 = math.rsqrt %154 : vector<8x1xf32>
    %156 = vector.broadcast %155 : vector<8x1xf32> to vector<8x32xf32>
    %157 = arith.mulf %152, %156 : vector<8x32xf32>
    %158 = vector.broadcast %137 : vector<1x32xf32> to vector<8x32xf32>
    %159 = arith.mulf %157, %158 : vector<8x32xf32>
    %160 = vector.broadcast %139 : vector<1x32xf32> to vector<8x32xf32>
    %161 = arith.addf %159, %160 : vector<8x32xf32>
    %c0_83 = arith.constant 0 : index
    %c0_84 = arith.constant 0 : index
    %c0_85 = arith.constant 0 : index
    %c0_86 = arith.constant 0 : index
    %162 = vector.load %arg19[%c0_83, %c0_84, %c0_85, %c0_86] : memref<1x1x8x32xf32, #tpu.memory_space<vmem>>, vector<1x1x8x32xf32>
    %163 = vector.shape_cast %162 : vector<1x1x8x32xf32> to vector<8x32xf32>
    %164 = vector.shape_cast %161 : vector<8x32xf32> to vector<1x1x8x32xf32>
    tpu.vector_store %arg19[%c0_83, %c0_84, %c0_85, %c0_86], %164 {strides = array<i32>} : memref<1x1x8x32xf32, #tpu.memory_space<vmem>>, vector<1x1x8x32xf32>,
    return
  }
  func.func @transform_0(%arg0: i32, %arg1: i32) -> (i32, i32, i32, i32) {
    %c0_i32 = arith.constant 0 : i32
    %c0_i32_0 = arith.constant 0 : i32
    %c0_i32_1 = arith.constant 0 : i32
    return %arg1, %arg0, %c0_i32, %c0_i32_0 : i32, i32, i32, i32
  }
  func.func @transform_1(%arg0: i32, %arg1: i32) -> (i32, i32, i32, i32) {
    %c0_i32 = arith.constant 0 : i32
    %c0_i32_0 = arith.constant 0 : i32
    %c0_i32_1 = arith.constant 0 : i32
    return %arg1, %arg0, %c0_i32, %c0_i32_0 : i32, i32, i32, i32
  }
  func.func @transform_2(%arg0: i32, %arg1: i32) -> (i32, i32, i32, i32) {
    %c0_i32 = arith.constant 0 : i32
    %c0_i32_0 = arith.constant 0 : i32
    %c0_i32_1 = arith.constant 0 : i32
    return %arg1, %arg0, %c0_i32, %c0_i32_0 : i32, i32, i32, i32
  }
  func.func @transform_3(%arg0: i32, %arg1: i32) -> (i32, i32, i32) {
    %c0_i32 = arith.constant 0 : i32
    %c0_i32_0 = arith.constant 0 : i32
    %c0_i32_1 = arith.constant 0 : i32
    return %arg0, %c0_i32, %c0_i32_0 : i32, i32, i32
  }
  func.func @transform_4(%arg0: i32, %arg1: i32) -> (i32, i32, i32) {
    %c0_i32 = arith.constant 0 : i32
    %c0_i32_0 = arith.constant 0 : i32
    %c0_i32_1 = arith.constant 0 : i32
    return %arg0, %c0_i32, %c0_i32_0 : i32, i32, i32
  }
  func.func @transform_5(%arg0: i32, %arg1: i32) -> (i32, i32, i32) {
    %c0_i32 = arith.constant 0 : i32
    %c0_i32_0 = arith.constant 0 : i32
    %c0_i32_1 = arith.constant 0 : i32
    return %arg0, %c0_i32, %c0_i32_0 : i32, i32, i32
  }
  func.func @transform_6(%arg0: i32, %arg1: i32) -> (i32, i32, i32) {
    %c0_i32 = arith.constant 0 : i32
    %c0_i32_0 = arith.constant 0 : i32
    %c0_i32_1 = arith.constant 0 : i32
    return %arg0, %c0_i32, %c0_i32_0 : i32, i32, i32
  }
  func.func @transform_7(%arg0: i32, %arg1: i32) -> (i32, i32, i32) {
    %c0_i32 = arith.constant 0 : i32
    %c0_i32_0 = arith.constant 0 : i32
    %c0_i32_1 = arith.constant 0 : i32
    return %arg0, %c0_i32, %c0_i32_0 : i32, i32, i32
  }
  func.func @transform_8(%arg0: i32, %arg1: i32) -> (i32, i32, i32) {
    %c0_i32 = arith.constant 0 : i32
    %c0_i32_0 = arith.constant 0 : i32
    %c0_i32_1 = arith.constant 0 : i32
    return %arg0, %c0_i32, %c0_i32_0 : i32, i32, i32
  }
  func.func @transform_9(%arg0: i32, %arg1: i32) -> (i32, i32, i32) {
    %c0_i32 = arith.constant 0 : i32
    %c0_i32_0 = arith.constant 0 : i32
    %c0_i32_1 = arith.constant 0 : i32
    return %arg0, %c0_i32, %c0_i32_0 : i32, i32, i32
  }
  func.func @transform_10(%arg0: i32, %arg1: i32) -> (i32, i32, i32) {
    %c0_i32 = arith.constant 0 : i32
    %c0_i32_0 = arith.constant 0 : i32
    %c0_i32_1 = arith.constant 0 : i32
    return %arg0, %c0_i32, %c0_i32_0 : i32, i32, i32
  }
  func.func @transform_11(%arg0: i32, %arg1: i32) -> (i32, i32, i32) {
    %c0_i32 = arith.constant 0 : i32
    %c0_i32_0 = arith.constant 0 : i32
    %c0_i32_1 = arith.constant 0 : i32
    return %arg0, %c0_i32, %c0_i32_0 : i32, i32, i32
  }
  func.func @transform_12(%arg0: i32, %arg1: i32) -> (i32, i32, i32) {
    %c0_i32 = arith.constant 0 : i32
    %c0_i32_0 = arith.constant 0 : i32
    %c0_i32_1 = arith.constant 0 : i32
    return %arg0, %c0_i32, %c0_i32_0 : i32, i32, i32
  }
  func.func @transform_13(%arg0: i32, %arg1: i32) -> (i32, i32, i32) {
    %c0_i32 = arith.constant 0 : i32
    %c0_i32_0 = arith.constant 0 : i32
    %c0_i32_1 = arith.constant 0 : i32
    return %arg0, %c0_i32, %c0_i32_0 : i32, i32, i32
  }
  func.func @transform_14(%arg0: i32, %arg1: i32) -> (i32, i32, i32) {
    %c0_i32 = arith.constant 0 : i32
    %c0_i32_0 = arith.constant 0 : i32
    %c0_i32_1 = arith.constant 0 : i32
    return %arg0, %c0_i32, %c0_i32_0 : i32, i32, i32
  }
  func.func @transform_15(%arg0: i32, %arg1: i32) -> (i32, i32, i32) {
    %c0_i32 = arith.constant 0 : i32
    %c0_i32_0 = arith.constant 0 : i32
    %c0_i32_1 = arith.constant 0 : i32
    return %arg0, %c0_i32, %c0_i32_0 : i32, i32, i32
  }
  func.func @transform_16(%arg0: i32, %arg1: i32) -> (i32, i32, i32) {
    %c0_i32 = arith.constant 0 : i32
    %c0_i32_0 = arith.constant 0 : i32
    %c0_i32_1 = arith.constant 0 : i32
    return %arg0, %c0_i32, %c0_i32_0 : i32, i32, i32
  }
  func.func @transform_17(%arg0: i32, %arg1: i32) -> (i32, i32, i32, i32) {
    %c0_i32 = arith.constant 0 : i32
    %c0_i32_0 = arith.constant 0 : i32
    %c0_i32_1 = arith.constant 0 : i32
    return %arg1, %arg0, %c0_i32, %c0_i32_0 : i32, i32, i32, i32
  }
}

</mosaic_0001>

<llo_original>
// kernel: _lambda_.8
$region0: #{_lambda_.8}
  #allocation0 [shape = 'u32[]', space=smem, size = 0x4, offset = 0x4, fixed_abs, tag = 'smem constant byte address 0x4 - core index']
  #allocation1 [shape = 'u32[144,128]{1,0:T(1,128)}', space=vmem, size = 0x12000, scoped, tag = 'internal scratch']
  %s0 = inlined_call_operand.vmem [shape: f32[2,9,32], index: 0, kind: input, shape index: {}]
  %s1 = inlined_call_operand.vmem [shape: bf16[2,32,32], index: 1, kind: input, shape index: {}]
  %s2 = inlined_call_operand.vmem [shape: f32[1,32], index: 2, kind: input, shape index: {}]
  %s3 = inlined_call_operand.vmem [shape: f32[2,8,32], index: 3, kind: output, shape index: {}]
  %s4 = sld [smem:[#allocation0]]
  $region45: #{_lambda_.8} parent=0
    _
  %s6 = ssub.s32 1, %s4
  %s7 = scalar_select 0, %s6, %s4
  loop: start=0, step=1, limit=4
  $region2: #{_lambda_.8} parent=0 // loop_pre_header
    _
  $region3: #{_lambda_.8} parent=0 // loop_header
    %s9 = sphi 0, %s13
    %p10 = scmp.ge.s32.totalorder %s9, 4
    %s19 = sphi 0, %s21
    %s22 = sphi 0, %s19
    %s23 = sphi 0, %s22
    %s39 = sphi 0, %s23
    %s43 = sphi 0, %s43
    %s45 = sphi 0, %s43
    %s46 = sphi 0, %s45
    %s60 = sphi 0, %s46
    %s64 = sphi 0, %s64
    %s66 = sphi 0, %s64
    %s67 = sphi 0, %s66
    %s81 = sphi 0, %s67
    %s87 = sphi 0, %s89
    %s90 = sphi 0, %s87
    %s91 = sphi 0, %s90
    %s107 = sphi 0, %s91
  $region4: #{_lambda_.8} parent=0 // loop_header_branch
    %12 = sbr.rel (%p10) target = $region8
  $region5: #{_lambda_.8} parent=0 // loop_body
    %s14 = ssub.s32 %s9, 1
    %s15 = ssub.s32 %s9, 2
    %s16 = sadd.s32 %s9, 1
    %s17 = ssub.s32 %s9, %s16
    %p18 = scmp.eq.s32.totalorder %s17, 0
    %s20 = sadd.s32 %s19, 1
    %s21 = scalar_select %p18, %s19, %s20
    %p24 = pneg %p18
    %p25 = scmp.eq.s32.totalorder %s9, 1
    %p26 = por %p24, %p25
    %p27 = scmp.ne.s32.totalorder %s19, %s22
    %p28 = scmp.eq.s32.totalorder %s9, 0
    %p29 = por %p27, %p28
    %p30 = scmp.ne.s32.totalorder %s19, %s22
    %p31 = scmp.eq.s32.totalorder %s14, 1
    %p32 = por %p30, %p31
    %p33 = scmp.ne.s32.totalorder %s22, %s23
    %p34 = scmp.eq.s32.totalorder %s14, 0
    %p35 = por %p33, %p34
    %p36 = scmp.ne.s32.totalorder %s22, %s23
    %p37 = scmp.eq.s32.totalorder %s15, 1
    %p38 = por %p36, %p37
    %p40 = scmp.ne.s32.totalorder %s23, %s39
    %p41 = scmp.eq.s32.totalorder %s15, 0
    %p42 = por %p40, %p41
    %s44 = sadd.s32 %s43, 1
    %p47 = scmp.eq.s32.totalorder %s9, 1
    %p48 = scmp.ne.s32.totalorder %s43, %s45
    %p49 = scmp.eq.s32.totalorder %s9, 0
    %p50 = por %p48, %p49
    %p51 = scmp.ne.s32.totalorder %s43, %s45
    %p52 = scmp.eq.s32.totalorder %s14, 1
    %p53 = por %p51, %p52
    %p54 = scmp.ne.s32.totalorder %s45, %s46
    %p55 = scmp.eq.s32.totalorder %s14, 0
    %p56 = por %p54, %p55
    %p57 = scmp.ne.s32.totalorder %s45, %s46
    %p58 = scmp.eq.s32.totalorder %s15, 1
    %p59 = por %p57, %p58
    %p61 = scmp.ne.s32.totalorder %s46, %s60
    %p62 = scmp.eq.s32.totalorder %s15, 0
    %p63 = por %p61, %p62
    %s65 = sadd.s32 %s64, 1
    %p68 = scmp.eq.s32.totalorder %s9, 1
    %p69 = scmp.ne.s32.totalorder %s64, %s66
    %p70 = scmp.eq.s32.totalorder %s9, 0
    %p71 = por %p69, %p70
    %p72 = scmp.ne.s32.totalorder %s64, %s66
    %p73 = scmp.eq.s32.totalorder %s14, 1
    %p74 = por %p72, %p73
    %p75 = scmp.ne.s32.totalorder %s66, %s67
    %p76 = scmp.eq.s32.totalorder %s14, 0
    %p77 = por %p75, %p76
    %p78 = scmp.ne.s32.totalorder %s66, %s67
    %p79 = scmp.eq.s32.totalorder %s15, 1
    %p80 = por %p78, %p79
    %p82 = scmp.ne.s32.totalorder %s67, %s81
    %p83 = scmp.eq.s32.totalorder %s15, 0
    %p84 = por %p82, %p83
    %s85 = ssub.s32 %s9, %s16
    %p86 = scmp.eq.s32.totalorder %s85, 0
    %s88 = sadd.s32 %s87, 1
    %s89 = scalar_select %p86, %s87, %s88
    %p92 = pneg %p86
    %p93 = scmp.eq.s32.totalorder %s9, 1
    %p94 = por %p92, %p93
    %p95 = scmp.ne.s32.totalorder %s87, %s90
    %p96 = scmp.eq.s32.totalorder %s9, 0
    %p97 = por %p95, %p96
    %p98 = scmp.ne.s32.totalorder %s87, %s90
    %p99 = scmp.eq.s32.totalorder %s14, 1
    %p100 = por %p98, %p99
    %p101 = scmp.ne.s32.totalorder %s90, %s91
    %p102 = scmp.eq.s32.totalorder %s14, 0
    %p103 = por %p101, %p102
    %p104 = scmp.ne.s32.totalorder %s90, %s91
    %p105 = scmp.eq.s32.totalorder %s15, 1
    %p106 = por %p104, %p105
    %p108 = scmp.ne.s32.totalorder %s91, %s107
    %p109 = scmp.eq.s32.totalorder %s15, 0
    %p110 = por %p108, %p109
    %p111 = scmp.le.s32.totalorder 1, %s9
    %p112 = scmp.lt.s32.totalorder %s9, 3
    %p113 = pnand %p111, %p112
    %p114 = pneg %p113
    // Predicated region
    $region9: #{_lambda_.8} parent=5 // pred_check
      _
    $region10: #{_lambda_.8} parent=5 // pred_check_branch
      %116 = sbr.rel (%p113) target = $region12
    $region11: #{_lambda_.8} parent=5 // pred_region
      %s117 = ssub.s32 %s9, 1
      // Predicated region
      $region13: #{_lambda_.8} parent=11 // pred_check
        %p118 = pneg %p56
      $region14: #{_lambda_.8} parent=11 // pred_check_branch
        %120 = sbr.rel (%p118) target = $region16
      $region15: #{_lambda_.8} parent=11 // pred_region
        _
      $region16: #{_lambda_.8} parent=11 // pred_fallthru
        _
      // Predicated region
      $region17: #{_lambda_.8} parent=11 // pred_check
        %p121 = pneg %p77
      $region18: #{_lambda_.8} parent=11 // pred_check_branch
        %123 = sbr.rel (%p121) target = $region20
      $region19: #{_lambda_.8} parent=11 // pred_region
        _
      $region20: #{_lambda_.8} parent=11 // pred_fallthru
        _
    $region12: #{_lambda_.8} parent=5 // pred_fallthru
      _
    %p124 = scmp.lt.s32.totalorder %s9, 2
    // Predicated region
    $region21: #{_lambda_.8} parent=5 // pred_check
      %p125 = pneg %p124
    $region22: #{_lambda_.8} parent=5 // pred_check_branch
      %127 = sbr.rel (%p125) target = $region24
    $region23: #{_lambda_.8} parent=5 // pred_region
      // Predicated region
      $region25: #{_lambda_.8} parent=23 // pred_check
        %p128 = pneg %p29
      $region26: #{_lambda_.8} parent=23 // pred_check_branch
        %130 = sbr.rel (%p128) target = $region28
      $region27: #{_lambda_.8} parent=23 // pred_region
        %p131 = scmp.lt.s32.totalorder %s9, 1
        %s132 = scalar_select %p131, %s9, 1
        %s133 = smul.addr %s132, 2
        %s134 = smul.addr %s133, 8
        %s135 = scalar_lea.vmem %s0, %s134
      $region28: #{_lambda_.8} parent=23 // pred_fallthru
        _
    $region24: #{_lambda_.8} parent=5 // pred_fallthru
      _
    %p136 = scmp.le.s32.totalorder 1, %s9
    %p137 = scmp.lt.s32.totalorder %s9, 3
    %p138 = pnand %p136, %p137
    %p139 = pneg %p138
    // Predicated region
    $region29: #{_lambda_.8} parent=5 // pred_check
      _
    $region30: #{_lambda_.8} parent=5 // pred_check_branch
      %141 = sbr.rel (%p138) target = $region32
    $region31: #{_lambda_.8} parent=5 // pred_region
      %s142 = ssub.s32 %s9, 1
      %p143 = scmp.lt.s32.totalorder %s14, 1
      %s144 = scalar_select %p143, %s14, 1
      %s145 = smul.addr %s144, 2
      %s146 = smul.addr %s145, 8
      %s147 = scalar_lea.vmem %s0, %s146
      %p148 = pneg %p35
      %p149 = pneg %p32
      %p150 = pneg %p56
      %p151 = pneg %p53
      %p152 = pneg %p77
      %p153 = pneg %p74
      %p154 = pneg %p103
      %p155 = pneg %p100
      %p156 = scmp.lt.s32.totalorder %s14, 1
      %s157 = scalar_select %p156, %s14, 1
      %s158 = smul.addr %s157, 8
      %s159 = scalar_lea.vmem %s3, %s158
      %p160 = scmp.lt.s32.totalorder %s14, 1
      %s161 = scalar_select %p160, %s14, 1
      %s162 = smul.addr %s161, 2
      %s163 = smul.addr %s162, 8
      %s164 = scalar_lea.vmem %s0, %s163
      %p165 = scmp.lt.s32.totalorder %s14, 1
      %s166 = scalar_select %p165, %s14, 1
      %s167 = smul.addr %s166, 8
      %s168 = scalar_lea.vmem %s3, %s167
      %v170 = vld [vmem:[%s164] sm:$0xff]
      %v171 = vld [vmem:[%s164 + $0x8] sm:$0x1]
      %v172 = vld [vmem:[%s1] sm:$0xf]
      %v173 = vld [vmem:[%s1 + $0x4] sm:$0xf]
      %v174 = vld [vmem:[%s1 + $0x8] sm:$0xf]
      %v175 = vld [vmem:[%s1 + $0xc] sm:$0xf]
      %v176 = vpack.c.bf16 %v170, %v170
      %s177 = scalar_lea.vmem %s1, 16
      %v178 = vld [vmem:[%s177] sm:$0xf]
      %v179 = vld [vmem:[%s177 + $0x4] sm:$0xf]
      %v180 = vld [vmem:[%s177 + $0x8] sm:$0xf]
      %v181 = vld [vmem:[%s177 + $0xc] sm:$0xf]
      %v182 = vpack.c.bf16 %v171, %v170
      %v184 = vshrl.u32 %v182, 16
      %v186 = vshll.u32 %v182, 16
      %v188 = vrot.slane %v186, 1
      %v189 = vor.u32 %v184, %v188
      %v194 = vunpack.c.l.b16 %v178
      %v195 = vunpack.c.l.b16 %v179
      %v196 = vunpack.c.l.b16 %v180
      %v197 = vunpack.c.l.b16 %v181
      %v198 = vpack.c.b16 %v195, %v194
      %v199 = vpack.c.b16 %v197, %v196
      %vm202 = vcmask 261120
      %v204 = vsel %vm202, %v189, 0
      %206 = vmatprep.subr.bf16.mxu0 0
      %207 = vmatpush1.bf16.msra.mxu0 %v198
      %208 = vmatprep.subr.bf16.mxu0 0
      %209 = vmatpush1.bf16.msra.mxu0 %v199
      %210 = vmatprep.subr.bf16.mxu0 0
      %211 = vmatpush1.bf16.msra.mxu0 0
      %212 = vmatprep.subr.bf16.mxu0 0
      %213 = vmatpush1.bf16.msra.mxu0 0
      %214 = vmatprep.subr.bf16.mxu0 0
      %215 = vmatpush1.bf16.msra.mxu0 0
      %216 = vmatprep.subr.bf16.mxu0 0
      %217 = vmatpush1.bf16.msra.mxu0 0
      %218 = vmatprep.subr.bf16.mxu0 0
      %219 = vmatpush1.bf16.msra.mxu0 0
      %220 = vmatprep.subr.bf16.mxu0 0
      %221 = vmatpush1.bf16.msra.mxu0 0
      %222 = vmatprep.subr.bf16.mxu0 0
      %223 = vmatpush1.bf16.msra.mxu0 0
      %224 = vmatprep.subr.bf16.mxu0 0
      %225 = vmatpush1.bf16.msra.mxu0 0
      %226 = vmatprep.subr.bf16.mxu0 0
      %227 = vmatpush1.bf16.msra.mxu0 0
      %228 = vmatprep.subr.bf16.mxu0 0
      %229 = vmatpush1.bf16.msra.mxu0 0
      %230 = vmatprep.subr.bf16.mxu0 0
      %231 = vmatpush1.bf16.msra.mxu0 0
      %232 = vmatprep.subr.bf16.mxu0 0
      %233 = vmatpush1.bf16.msra.mxu0 0
      %234 = vmatprep.subr.bf16.mxu0 0
      %235 = vmatpush1.bf16.msra.mxu0 0
      %236 = vmatprep.subr.bf16.mxu0 0
      %237 = vmatpush1.bf16.msra.mxu0 0
      %238 = vmatprep.mubr.bf16.mxu0 0
      %239 = vmatmul.mubr.bf16.gmra.mrb[0].mxu0 %v204
      %v240 = vpop.f32.mrb[0].mxu0
      %v241 = vadd.f32 0.0, %v240
      %v242 = vpop.f32.mrb[0].mxu0
      %v243 = vpop.f32.mrb[0].mxu0
      %v244 = vpop.f32.mrb[0].mxu0
      %245 = vdwg.mxu0
      %v250 = vunpack.c.l.b16 %v172
      %v251 = vunpack.c.l.b16 %v173
      %v252 = vunpack.c.l.b16 %v174
      %v253 = vunpack.c.l.b16 %v175
      %v254 = vpack.c.b16 %v251, %v250
      %v255 = vpack.c.b16 %v253, %v252
      %v259 = vsel %vm202, %v176, 0
      %261 = vmatprep.subr.bf16.mxu0 0
      %262 = vmatpush1.bf16.msra.mxu0 %v254
      %263 = vmatprep.subr.bf16.mxu0 0
      %264 = vmatpush1.bf16.msra.mxu0 %v255
      %265 = vmatprep.subr.bf16.mxu0 0
      %266 = vmatpush1.bf16.msra.mxu0 0
      %267 = vmatprep.subr.bf16.mxu0 0
      %268 = vmatpush1.bf16.msra.mxu0 0
      %269 = vmatprep.subr.bf16.mxu0 0
      %270 = vmatpush1.bf16.msra.mxu0 0
      %271 = vmatprep.subr.bf16.mxu0 0
      %272 = vmatpush1.bf16.msra.mxu0 0
      %273 = vmatprep.subr.bf16.mxu0 0
      %274 = vmatpush1.bf16.msra.mxu0 0
      %275 = vmatprep.subr.bf16.mxu0 0
      %276 = vmatpush1.bf16.msra.mxu0 0
      %277 = vmatprep.subr.bf16.mxu0 0
      %278 = vmatpush1.bf16.msra.mxu0 0
      %279 = vmatprep.subr.bf16.mxu0 0
      %280 = vmatpush1.bf16.msra.mxu0 0
      %281 = vmatprep.subr.bf16.mxu0 0
      %282 = vmatpush1.bf16.msra.mxu0 0
      %283 = vmatprep.subr.bf16.mxu0 0
      %284 = vmatpush1.bf16.msra.mxu0 0
      %285 = vmatprep.subr.bf16.mxu0 0
      %286 = vmatpush1.bf16.msra.mxu0 0
      %287 = vmatprep.subr.bf16.mxu0 0
      %288 = vmatpush1.bf16.msra.mxu0 0
      %289 = vmatprep.subr.bf16.mxu0 0
      %290 = vmatpush1.bf16.msra.mxu0 0
      %291 = vmatprep.subr.bf16.mxu0 0
      %292 = vmatpush1.bf16.msra.mxu0 0
      %293 = vmatprep.mubr.bf16.mxu0 0
      %294 = vmatmul.mubr.bf16.gmra.mrb[0].mxu0 %v259
      %v295 = vpop.f32.mrb[0].mxu0
      %v296 = vadd.f32 %v241, %v295
      %v297 = vpop.f32.mrb[0].mxu0
      %v298 = vpop.f32.mrb[0].mxu0
      %v299 = vpop.f32.mrb[0].mxu0
      %300 = vdwg.mxu0
      %v301 = vld [vmem:[%s2] sm:$0x1]
      %v303 = vlaneseq
      %v304 = vshrl.u32 %v303, 7
      %v305 = vsub.s32 0, %v304
      %v306 = vrot.slane %v301, %v305
      %v308 = vadd.f32 %v296, %v306
      %v309 = vmax.f32 %v308, 0.0
      %vm312 = vcmask 1046528
      %v313 = vrot.slane %v170, 1
      %v314 = vrot.slane %v171, 1
      %v315 = vsel %vm312, %v313, %v314
      %v317 = vadd.f32 %v309, %v315
      %v318 = vmax.f32 %v317, 0.0
      %319 = vst.msk [vmem:[%s168] sm:$0xff] %vm202, %v318
      %p320 = scmp.lt.s32.totalorder %s14, 1
      %s321 = scalar_select %p320, %s14, 1
      %s322 = smul.addr %s321, 8
      %s323 = scalar_lea.vmem %s3, %s322
      // Predicated region
      $region33: #{_lambda_.8} parent=31 // pred_check
        %p324 = pneg %p100
      $region34: #{_lambda_.8} parent=31 // pred_check_branch
        %326 = sbr.rel (%p324) target = $region36
      $region35: #{_lambda_.8} parent=31 // pred_region
        _
      $region36: #{_lambda_.8} parent=31 // pred_fallthru
        _
    $region32: #{_lambda_.8} parent=5 // pred_fallthru
      _
    %p327 = scmp.le.s32.totalorder 2, %s9
    // Predicated region
    $region37: #{_lambda_.8} parent=5 // pred_check
      %p328 = pneg %p327
    $region38: #{_lambda_.8} parent=5 // pred_check_branch
      %330 = sbr.rel (%p328) target = $region40
    $region39: #{_lambda_.8} parent=5 // pred_region
      %s331 = ssub.s32 %s9, 2
      // Predicated region
      $region41: #{_lambda_.8} parent=39 // pred_check
        %p332 = pneg %p106
      $region42: #{_lambda_.8} parent=39 // pred_check_branch
        %334 = sbr.rel (%p332) target = $region44
      $region43: #{_lambda_.8} parent=39 // pred_region
        %p335 = scmp.lt.s32.totalorder %s15, 1
        %s336 = scalar_select %p335, %s15, 1
        %s337 = smul.addr %s336, 8
        %s338 = scalar_lea.vmem %s3, %s337
      $region44: #{_lambda_.8} parent=39 // pred_fallthru
        _
    $region40: #{_lambda_.8} parent=5 // pred_fallthru
      _
  $region6: #{_lambda_.8} parent=0 // loop_footer
    %s13 = sadd.s32 1, %s9
  $region7: #{_lambda_.8} parent=0 // loop_footer_branch
    %8 = sbr.rel target = $region3
  $region8: #{_lambda_.8} parent=0 // loop_exit
    _

// kernel: _lambda_.9
$region0: #{_lambda_.9}
  #allocation0 [shape = 'u32[]', space=smem, size = 0x4, offset = 0x4, fixed_abs, tag = 'smem constant byte address 0x4 - core index']
  #allocation1 [shape = 'u32[144,128]{1,0:T(1,128)}', space=vmem, size = 0x12000, scoped, tag = 'internal scratch']
  %s0 = inlined_call_operand.vmem [shape: f32[2,10,32], index: 0, kind: input, shape index: {}]
  %s1 = inlined_call_operand.vmem [shape: bf16[2,32,32], index: 1, kind: input, shape index: {}]
  %s2 = inlined_call_operand.vmem [shape: f32[1,32], index: 2, kind: input, shape index: {}]
  %s3 = inlined_call_operand.vmem [shape: f32[2,8,32], index: 3, kind: output, shape index: {}]
  %s4 = sld [smem:[#allocation0]]
  $region45: #{_lambda_.9} parent=0
    _
  %s6 = ssub.s32 1, %s4
  %s7 = scalar_select 0, %s6, %s4
  loop: start=0, step=1, limit=4
  $region2: #{_lambda_.9} parent=0 // loop_pre_header
    _
  $region3: #{_lambda_.9} parent=0 // loop_header
    %s9 = sphi 0, %s13
    %p10 = scmp.ge.s32.totalorder %s9, 4
    %s19 = sphi 0, %s21
    %s22 = sphi 0, %s19
    %s23 = sphi 0, %s22
    %s39 = sphi 0, %s23
    %s43 = sphi 0, %s43
    %s45 = sphi 0, %s43
    %s46 = sphi 0, %s45
    %s60 = sphi 0, %s46
    %s64 = sphi 0, %s64
    %s66 = sphi 0, %s64
    %s67 = sphi 0, %s66
    %s81 = sphi 0, %s67
    %s87 = sphi 0, %s89
    %s90 = sphi 0, %s87
    %s91 = sphi 0, %s90
    %s107 = sphi 0, %s91
  $region4: #{_lambda_.9} parent=0 // loop_header_branch
    %12 = sbr.rel (%p10) target = $region8
  $region5: #{_lambda_.9} parent=0 // loop_body
    %s14 = ssub.s32 %s9, 1
    %s15 = ssub.s32 %s9, 2
    %s16 = sadd.s32 %s9, 1
    %s17 = ssub.s32 %s9, %s16
    %p18 = scmp.eq.s32.totalorder %s17, 0
    %s20 = sadd.s32 %s19, 1
    %s21 = scalar_select %p18, %s19, %s20
    %p24 = pneg %p18
    %p25 = scmp.eq.s32.totalorder %s9, 1
    %p26 = por %p24, %p25
    %p27 = scmp.ne.s32.totalorder %s19, %s22
    %p28 = scmp.eq.s32.totalorder %s9, 0
    %p29 = por %p27, %p28
    %p30 = scmp.ne.s32.totalorder %s19, %s22
    %p31 = scmp.eq.s32.totalorder %s14, 1
    %p32 = por %p30, %p31
    %p33 = scmp.ne.s32.totalorder %s22, %s23
    %p34 = scmp.eq.s32.totalorder %s14, 0
    %p35 = por %p33, %p34
    %p36 = scmp.ne.s32.totalorder %s22, %s23
    %p37 = scmp.eq.s32.totalorder %s15, 1
    %p38 = por %p36, %p37
    %p40 = scmp.ne.s32.totalorder %s23, %s39
    %p41 = scmp.eq.s32.totalorder %s15, 0
    %p42 = por %p40, %p41
    %s44 = sadd.s32 %s43, 1
    %p47 = scmp.eq.s32.totalorder %s9, 1
    %p48 = scmp.ne.s32.totalorder %s43, %s45
    %p49 = scmp.eq.s32.totalorder %s9, 0
    %p50 = por %p48, %p49
    %p51 = scmp.ne.s32.totalorder %s43, %s45
    %p52 = scmp.eq.s32.totalorder %s14, 1
    %p53 = por %p51, %p52
    %p54 = scmp.ne.s32.totalorder %s45, %s46
    %p55 = scmp.eq.s32.totalorder %s14, 0
    %p56 = por %p54, %p55
    %p57 = scmp.ne.s32.totalorder %s45, %s46
    %p58 = scmp.eq.s32.totalorder %s15, 1
    %p59 = por %p57, %p58
    %p61 = scmp.ne.s32.totalorder %s46, %s60
    %p62 = scmp.eq.s32.totalorder %s15, 0
    %p63 = por %p61, %p62
    %s65 = sadd.s32 %s64, 1
    %p68 = scmp.eq.s32.totalorder %s9, 1
    %p69 = scmp.ne.s32.totalorder %s64, %s66
    %p70 = scmp.eq.s32.totalorder %s9, 0
    %p71 = por %p69, %p70
    %p72 = scmp.ne.s32.totalorder %s64, %s66
    %p73 = scmp.eq.s32.totalorder %s14, 1
    %p74 = por %p72, %p73
    %p75 = scmp.ne.s32.totalorder %s66, %s67
    %p76 = scmp.eq.s32.totalorder %s14, 0
    %p77 = por %p75, %p76
    %p78 = scmp.ne.s32.totalorder %s66, %s67
    %p79 = scmp.eq.s32.totalorder %s15, 1
    %p80 = por %p78, %p79
    %p82 = scmp.ne.s32.totalorder %s67, %s81
    %p83 = scmp.eq.s32.totalorder %s15, 0
    %p84 = por %p82, %p83
    %s85 = ssub.s32 %s9, %s16
    %p86 = scmp.eq.s32.totalorder %s85, 0
    %s88 = sadd.s32 %s87, 1
    %s89 = scalar_select %p86, %s87, %s88
    %p92 = pneg %p86
    %p93 = scmp.eq.s32.totalorder %s9, 1
    %p94 = por %p92, %p93
    %p95 = scmp.ne.s32.totalorder %s87, %s90
    %p96 = scmp.eq.s32.totalorder %s9, 0
    %p97 = por %p95, %p96
    %p98 = scmp.ne.s32.totalorder %s87, %s90
    %p99 = scmp.eq.s32.totalorder %s14, 1
    %p100 = por %p98, %p99
    %p101 = scmp.ne.s32.totalorder %s90, %s91
    %p102 = scmp.eq.s32.totalorder %s14, 0
    %p103 = por %p101, %p102
    %p104 = scmp.ne.s32.totalorder %s90, %s91
    %p105 = scmp.eq.s32.totalorder %s15, 1
    %p106 = por %p104, %p105
    %p108 = scmp.ne.s32.totalorder %s91, %s107
    %p109 = scmp.eq.s32.totalorder %s15, 0
    %p110 = por %p108, %p109
    %p111 = scmp.le.s32.totalorder 1, %s9
    %p112 = scmp.lt.s32.totalorder %s9, 3
    %p113 = pnand %p111, %p112
    %p114 = pneg %p113
    // Predicated region
    $region9: #{_lambda_.9} parent=5 // pred_check
      _
    $region10: #{_lambda_.9} parent=5 // pred_check_branch
      %116 = sbr.rel (%p113) target = $region12
    $region11: #{_lambda_.9} parent=5 // pred_region
      %s117 = ssub.s32 %s9, 1
      // Predicated region
      $region13: #{_lambda_.9} parent=11 // pred_check
        %p118 = pneg %p56
      $region14: #{_lambda_.9} parent=11 // pred_check_branch
        %120 = sbr.rel (%p118) target = $region16
      $region15: #{_lambda_.9} parent=11 // pred_region
        _
      $region16: #{_lambda_.9} parent=11 // pred_fallthru
        _
      // Predicated region
      $region17: #{_lambda_.9} parent=11 // pred_check
        %p121 = pneg %p77
      $region18: #{_lambda_.9} parent=11 // pred_check_branch
        %123 = sbr.rel (%p121) target = $region20
      $region19: #{_lambda_.9} parent=11 // pred_region
        _
      $region20: #{_lambda_.9} parent=11 // pred_fallthru
        _
    $region12: #{_lambda_.9} parent=5 // pred_fallthru
      _
    %p124 = scmp.lt.s32.totalorder %s9, 2
    // Predicated region
    $region21: #{_lambda_.9} parent=5 // pred_check
      %p125 = pneg %p124
    $region22: #{_lambda_.9} parent=5 // pred_check_branch
      %127 = sbr.rel (%p125) target = $region24
    $region23: #{_lambda_.9} parent=5 // pred_region
      // Predicated region
      $region25: #{_lambda_.9} parent=23 // pred_check
        %p128 = pneg %p29
      $region26: #{_lambda_.9} parent=23 // pred_check_branch
        %130 = sbr.rel (%p128) target = $region28
      $region27: #{_lambda_.9} parent=23 // pred_region
        %p131 = scmp.lt.s32.totalorder %s9, 1
        %s132 = scalar_select %p131, %s9, 1
        %s133 = smul.addr %s132, 2
        %s134 = smul.addr %s133, 8
        %s135 = scalar_lea.vmem %s0, %s134
      $region28: #{_lambda_.9} parent=23 // pred_fallthru
        _
    $region24: #{_lambda_.9} parent=5 // pred_fallthru
      _
    %p136 = scmp.le.s32.totalorder 1, %s9
    %p137 = scmp.lt.s32.totalorder %s9, 3
    %p138 = pnand %p136, %p137
    %p139 = pneg %p138
    // Predicated region
    $region29: #{_lambda_.9} parent=5 // pred_check
      _
    $region30: #{_lambda_.9} parent=5 // pred_check_branch
      %141 = sbr.rel (%p138) target = $region32
    $region31: #{_lambda_.9} parent=5 // pred_region
      %s142 = ssub.s32 %s9, 1
      %p143 = scmp.lt.s32.totalorder %s14, 1
      %s144 = scalar_select %p143, %s14, 1
      %s145 = smul.addr %s144, 2
      %s146 = smul.addr %s145, 8
      %s147 = scalar_lea.vmem %s0, %s146
      %p148 = pneg %p35
      %p149 = pneg %p32
      %p150 = pneg %p56
      %p151 = pneg %p53
      %p152 = pneg %p77
      %p153 = pneg %p74
      %p154 = pneg %p103
      %p155 = pneg %p100
      %p156 = scmp.lt.s32.totalorder %s14, 1
      %s157 = scalar_select %p156, %s14, 1
      %s158 = smul.addr %s157, 8
      %s159 = scalar_lea.vmem %s3, %s158
      %p160 = scmp.lt.s32.totalorder %s14, 1
      %s161 = scalar_select %p160, %s14, 1
      %s162 = smul.addr %s161, 2
      %s163 = smul.addr %s162, 8
      %s164 = scalar_lea.vmem %s0, %s163
      %p165 = scmp.lt.s32.totalorder %s14, 1
      %s166 = scalar_select %p165, %s14, 1
      %s167 = smul.addr %s166, 8
      %s168 = scalar_lea.vmem %s3, %s167
      %v170 = vld [vmem:[%s164] sm:$0xff]
      %v171 = vld [vmem:[%s164 + $0x8] sm:$0x3]
      %v172 = vld [vmem:[%s1] sm:$0xf]
      %v173 = vld [vmem:[%s1 + $0x4] sm:$0xf]
      %v174 = vld [vmem:[%s1 + $0x8] sm:$0xf]
      %v175 = vld [vmem:[%s1 + $0xc] sm:$0xf]
      %v176 = vpack.c.bf16 %v170, %v170
      %s177 = scalar_lea.vmem %s1, 16
      %v178 = vld [vmem:[%s177] sm:$0xf]
      %v179 = vld [vmem:[%s177 + $0x4] sm:$0xf]
      %v180 = vld [vmem:[%s177 + $0x8] sm:$0xf]
      %v181 = vld [vmem:[%s177 + $0xc] sm:$0xf]
      %v182 = vpack.c.bf16 %v171, %v170
      %v184 = vrot.slane %v182, 1
      %v189 = vunpack.c.l.b16 %v178
      %v190 = vunpack.c.l.b16 %v179
      %v191 = vunpack.c.l.b16 %v180
      %v192 = vunpack.c.l.b16 %v181
      %v193 = vpack.c.b16 %v190, %v189
      %v194 = vpack.c.b16 %v192, %v191
      %vm197 = vcmask 261120
      %v199 = vsel %vm197, %v184, 0
      %201 = vmatprep.subr.bf16.mxu0 0
      %202 = vmatpush1.bf16.msra.mxu0 %v193
      %203 = vmatprep.subr.bf16.mxu0 0
      %204 = vmatpush1.bf16.msra.mxu0 %v194
      %205 = vmatprep.subr.bf16.mxu0 0
      %206 = vmatpush1.bf16.msra.mxu0 0
      %207 = vmatprep.subr.bf16.mxu0 0
      %208 = vmatpush1.bf16.msra.mxu0 0
      %209 = vmatprep.subr.bf16.mxu0 0
      %210 = vmatpush1.bf16.msra.mxu0 0
      %211 = vmatprep.subr.bf16.mxu0 0
      %212 = vmatpush1.bf16.msra.mxu0 0
      %213 = vmatprep.subr.bf16.mxu0 0
      %214 = vmatpush1.bf16.msra.mxu0 0
      %215 = vmatprep.subr.bf16.mxu0 0
      %216 = vmatpush1.bf16.msra.mxu0 0
      %217 = vmatprep.subr.bf16.mxu0 0
      %218 = vmatpush1.bf16.msra.mxu0 0
      %219 = vmatprep.subr.bf16.mxu0 0
      %220 = vmatpush1.bf16.msra.mxu0 0
      %221 = vmatprep.subr.bf16.mxu0 0
      %222 = vmatpush1.bf16.msra.mxu0 0
      %223 = vmatprep.subr.bf16.mxu0 0
      %224 = vmatpush1.bf16.msra.mxu0 0
      %225 = vmatprep.subr.bf16.mxu0 0
      %226 = vmatpush1.bf16.msra.mxu0 0
      %227 = vmatprep.subr.bf16.mxu0 0
      %228 = vmatpush1.bf16.msra.mxu0 0
      %229 = vmatprep.subr.bf16.mxu0 0
      %230 = vmatpush1.bf16.msra.mxu0 0
      %231 = vmatprep.subr.bf16.mxu0 0
      %232 = vmatpush1.bf16.msra.mxu0 0
      %233 = vmatprep.mubr.bf16.mxu0 0
      %234 = vmatmul.mubr.bf16.gmra.mrb[0].mxu0 %v199
      %v235 = vpop.f32.mrb[0].mxu0
      %v236 = vadd.f32 0.0, %v235
      %v237 = vpop.f32.mrb[0].mxu0
      %v238 = vpop.f32.mrb[0].mxu0
      %v239 = vpop.f32.mrb[0].mxu0
      %240 = vdwg.mxu0
      %v245 = vunpack.c.l.b16 %v172
      %v246 = vunpack.c.l.b16 %v173
      %v247 = vunpack.c.l.b16 %v174
      %v248 = vunpack.c.l.b16 %v175
      %v249 = vpack.c.b16 %v246, %v245
      %v250 = vpack.c.b16 %v248, %v247
      %v254 = vsel %vm197, %v176, 0
      %256 = vmatprep.subr.bf16.mxu0 0
      %257 = vmatpush1.bf16.msra.mxu0 %v249
      %258 = vmatprep.subr.bf16.mxu0 0
      %259 = vmatpush1.bf16.msra.mxu0 %v250
      %260 = vmatprep.subr.bf16.mxu0 0
      %261 = vmatpush1.bf16.msra.mxu0 0
      %262 = vmatprep.subr.bf16.mxu0 0
      %263 = vmatpush1.bf16.msra.mxu0 0
      %264 = vmatprep.subr.bf16.mxu0 0
      %265 = vmatpush1.bf16.msra.mxu0 0
      %266 = vmatprep.subr.bf16.mxu0 0
      %267 = vmatpush1.bf16.msra.mxu0 0
      %268 = vmatprep.subr.bf16.mxu0 0
      %269 = vmatpush1.bf16.msra.mxu0 0
      %270 = vmatprep.subr.bf16.mxu0 0
      %271 = vmatpush1.bf16.msra.mxu0 0
      %272 = vmatprep.subr.bf16.mxu0 0
      %273 = vmatpush1.bf16.msra.mxu0 0
      %274 = vmatprep.subr.bf16.mxu0 0
      %275 = vmatpush1.bf16.msra.mxu0 0
      %276 = vmatprep.subr.bf16.mxu0 0
      %277 = vmatpush1.bf16.msra.mxu0 0
      %278 = vmatprep.subr.bf16.mxu0 0
      %279 = vmatpush1.bf16.msra.mxu0 0
      %280 = vmatprep.subr.bf16.mxu0 0
      %281 = vmatpush1.bf16.msra.mxu0 0
      %282 = vmatprep.subr.bf16.mxu0 0
      %283 = vmatpush1.bf16.msra.mxu0 0
      %284 = vmatprep.subr.bf16.mxu0 0
      %285 = vmatpush1.bf16.msra.mxu0 0
      %286 = vmatprep.subr.bf16.mxu0 0
      %287 = vmatpush1.bf16.msra.mxu0 0
      %288 = vmatprep.mubr.bf16.mxu0 0
      %289 = vmatmul.mubr.bf16.gmra.mrb[0].mxu0 %v254
      %v290 = vpop.f32.mrb[0].mxu0
      %v291 = vadd.f32 %v236, %v290
      %v292 = vpop.f32.mrb[0].mxu0
      %v293 = vpop.f32.mrb[0].mxu0
      %v294 = vpop.f32.mrb[0].mxu0
      %295 = vdwg.mxu0
      %v296 = vld [vmem:[%s2] sm:$0x1]
      %v298 = vlaneseq
      %v299 = vshrl.u32 %v298, 7
      %v300 = vsub.s32 0, %v299
      %v301 = vrot.slane %v296, %v300
      %v303 = vadd.f32 %v291, %v301
      %v304 = vmax.f32 %v303, 0.0
      %vm307 = vcmask 1045504
      %v308 = vrot.slane %v170, 2
      %v309 = vrot.slane %v171, 2
      %v310 = vsel %vm307, %v308, %v309
      %v312 = vadd.f32 %v304, %v310
      %v313 = vmax.f32 %v312, 0.0
      %314 = vst.msk [vmem:[%s168] sm:$0xff] %vm197, %v313
      %p315 = scmp.lt.s32.totalorder %s14, 1
      %s316 = scalar_select %p315, %s14, 1
      %s317 = smul.addr %s316, 8
      %s318 = scalar_lea.vmem %s3, %s317
      // Predicated region
      $region33: #{_lambda_.9} parent=31 // pred_check
        %p319 = pneg %p100
      $region34: #{_lambda_.9} parent=31 // pred_check_branch
        %321 = sbr.rel (%p319) target = $region36
      $region35: #{_lambda_.9} parent=31 // pred_region
        _
      $region36: #{_lambda_.9} parent=31 // pred_fallthru
        _
    $region32: #{_lambda_.9} parent=5 // pred_fallthru
      _
    %p322 = scmp.le.s32.totalorder 2, %s9
    // Predicated region
    $region37: #{_lambda_.9} parent=5 // pred_check
      %p323 = pneg %p322
    $region38: #{_lambda_.9} parent=5 // pred_check_branch
      %325 = sbr.rel (%p323) target = $region40
    $region39: #{_lambda_.9} parent=5 // pred_region
      %s326 = ssub.s32 %s9, 2
      // Predicated region
      $region41: #{_lambda_.9} parent=39 // pred_check
        %p327 = pneg %p106
      $region42: #{_lambda_.9} parent=39 // pred_check_branch
        %329 = sbr.rel (%p327) target = $region44
      $region43: #{_lambda_.9} parent=39 // pred_region
        %p330 = scmp.lt.s32.totalorder %s15, 1
        %s331 = scalar_select %p330, %s15, 1
        %s332 = smul.addr %s331, 8
        %s333 = scalar_lea.vmem %s3, %s332
      $region44: #{_lambda_.9} parent=39 // pred_fallthru
        _
    $region40: #{_lambda_.9} parent=5 // pred_fallthru
      _
  $region6: #{_lambda_.9} parent=0 // loop_footer
    %s13 = sadd.s32 1, %s9
  $region7: #{_lambda_.9} parent=0 // loop_footer_branch
    %8 = sbr.rel target = $region3
  $region8: #{_lambda_.9} parent=0 // loop_exit
    _

// kernel: _lambda_.6
$region0: #{_lambda_.6}
  #allocation0 [shape = 'u32[]', space=smem, size = 0x4, offset = 0x4, fixed_abs, tag = 'smem constant byte address 0x4 - core index']
  #allocation1 [shape = 'u32[144,128]{1,0:T(1,128)}', space=vmem, size = 0x12000, scoped, tag = 'internal scratch']
  %s0 = inlined_call_operand.vmem [shape: f32[2,2,8,32], index: 0, kind: input, shape index: {}, may-alias: {0,1}]
  %s1 = inlined_call_operand.vmem [shape: f32[2,2,8,32], index: 1, kind: input, shape index: {}, may-alias: {0,1}]
  %s2 = inlined_call_operand.vmem [shape: f32[2,2,8,32], index: 2, kind: input, shape index: {}]
  %s3 = inlined_call_operand.vmem [shape: bf16[2,32,32], index: 3, kind: input, shape index: {}]
  %s4 = inlined_call_operand.vmem [shape: f32[2,1,32], index: 4, kind: input, shape index: {}]
  %s5 = inlined_call_operand.vmem [shape: bf16[2,32,32], index: 5, kind: input, shape index: {}]
  %s6 = inlined_call_operand.vmem [shape: f32[2,1,32], index: 6, kind: input, shape index: {}]
  %s7 = inlined_call_operand.vmem [shape: bf16[2,32,32], index: 7, kind: input, shape index: {}]
  %s8 = inlined_call_operand.vmem [shape: f32[2,1,32], index: 8, kind: input, shape index: {}]
  %s9 = inlined_call_operand.vmem [shape: f32[2,1,32], index: 9, kind: input, shape index: {}]
  %s10 = inlined_call_operand.vmem [shape: f32[2,1,32], index: 10, kind: input, shape index: {}]
  %s11 = inlined_call_operand.vmem [shape: f32[2,2,8,32], index: 11, kind: output, shape index: {}]
  %s12 = sld [smem:[#allocation0]]
  $region77: #{_lambda_.6} parent=0
    _
  %s14 = ssub.s32 1, %s12
  %s15 = scalar_select 0, %s14, %s12
  loop: start=0, step=1, limit=6
  $region2: #{_lambda_.6} parent=0 // loop_pre_header
    _
  $region3: #{_lambda_.6} parent=0 // loop_header
    %s17 = sphi 0, %s21
    %p18 = scmp.ge.s32.totalorder %s17, 6
    %s24 = sphi 0, %s36
    %s25 = sphi 0, %s32
    %s26 = sphi 0, %s24
    %s27 = sphi 0, %s25
    %s28 = sphi 0, %s26
    %s29 = sphi 0, %s27
    %s41 = sphi 0, %s43
    %s44 = sphi 0, %s41
    %s45 = sphi 0, %s44
    %s61 = sphi 0, %s45
    %s69 = sphi 0, %s71
    %s72 = sphi 0, %s69
    %s73 = sphi 0, %s72
    %s89 = sphi 0, %s73
    %s97 = sphi 0, %s99
    %s100 = sphi 0, %s97
    %s101 = sphi 0, %s100
    %s117 = sphi 0, %s101
    %s123 = sphi 0, %s125
    %s126 = sphi 0, %s123
    %s127 = sphi 0, %s126
    %s143 = sphi 0, %s127
    %s149 = sphi 0, %s151
    %s152 = sphi 0, %s149
    %s153 = sphi 0, %s152
    %s169 = sphi 0, %s153
    %s175 = sphi 0, %s177
    %s178 = sphi 0, %s175
    %s179 = sphi 0, %s178
    %s195 = sphi 0, %s179
    %s201 = sphi 0, %s203
    %s204 = sphi 0, %s201
    %s205 = sphi 0, %s204
    %s221 = sphi 0, %s205
    %s227 = sphi 0, %s229
    %s230 = sphi 0, %s227
    %s231 = sphi 0, %s230
    %s247 = sphi 0, %s231
    %s253 = sphi 0, %s255
    %s256 = sphi 0, %s253
    %s257 = sphi 0, %s256
    %s273 = sphi 0, %s257
    %s279 = sphi 0, %s281
    %s282 = sphi 0, %s279
    %s283 = sphi 0, %s282
    %s299 = sphi 0, %s283
    %s305 = sphi 0, %s307
    %s308 = sphi 0, %s305
    %s309 = sphi 0, %s308
    %s325 = sphi 0, %s309
    %s333 = sphi 0, %s335
    %s336 = sphi 0, %s333
    %s337 = sphi 0, %s336
    %s353 = sphi 0, %s337
  $region4: #{_lambda_.6} parent=0 // loop_header_branch
    %20 = sbr.rel (%p18) target = $region8
  $region5: #{_lambda_.6} parent=0 // loop_body
    %s22 = ssub.s32 %s17, 1
    %s23 = ssub.s32 %s17, 2
    %s30 = sadd.s32 1, %s25
    %p31 = scmp.ge.s32.totalorder %s30, 2
    %s32 = scalar_select %p31, 0, %s30
    %s33 = sadd.s32 1, %s24
    %s34 = scalar_select %p31, %s33, %s24
    %p35 = scmp.ge.s32.totalorder %s34, 2
    %s36 = scalar_select %p35, 0, %s34
    %s37 = ssub.s32 %s25, %s32
    %s38 = ssub.s32 %s24, %s36
    %s39 = sor.u32 %s37, %s38
    %p40 = scmp.eq.s32.totalorder %s39, 0
    %s42 = sadd.s32 %s41, 1
    %s43 = scalar_select %p40, %s41, %s42
    %p46 = pneg %p40
    %p47 = scmp.eq.s32.totalorder %s17, 3
    %p48 = por %p46, %p47
    %p49 = scmp.ne.s32.totalorder %s41, %s44
    %p50 = scmp.eq.s32.totalorder %s17, 0
    %p51 = por %p49, %p50
    %p52 = scmp.ne.s32.totalorder %s41, %s44
    %p53 = scmp.eq.s32.totalorder %s22, 3
    %p54 = por %p52, %p53
    %p55 = scmp.ne.s32.totalorder %s44, %s45
    %p56 = scmp.eq.s32.totalorder %s22, 0
    %p57 = por %p55, %p56
    %p58 = scmp.ne.s32.totalorder %s44, %s45
    %p59 = scmp.eq.s32.totalorder %s23, 3
    %p60 = por %p58, %p59
    %p62 = scmp.ne.s32.totalorder %s45, %s61
    %p63 = scmp.eq.s32.totalorder %s23, 0
    %p64 = por %p62, %p63
    %s65 = ssub.s32 %s25, %s32
    %s66 = ssub.s32 %s24, %s36
    %s67 = sor.u32 %s65, %s66
    %p68 = scmp.eq.s32.totalorder %s67, 0
    %s70 = sadd.s32 %s69, 1
    %s71 = scalar_select %p68, %s69, %s70
    %p74 = pneg %p68
    %p75 = scmp.eq.s32.totalorder %s17, 3
    %p76 = por %p74, %p75
    %p77 = scmp.ne.s32.totalorder %s69, %s72
    %p78 = scmp.eq.s32.totalorder %s17, 0
    %p79 = por %p77, %p78
    %p80 = scmp.ne.s32.totalorder %s69, %s72
    %p81 = scmp.eq.s32.totalorder %s22, 3
    %p82 = por %p80, %p81
    %p83 = scmp.ne.s32.totalorder %s72, %s73
    %p84 = scmp.eq.s32.totalorder %s22, 0
    %p85 = por %p83, %p84
    %p86 = scmp.ne.s32.totalorder %s72, %s73
    %p87 = scmp.eq.s32.totalorder %s23, 3
    %p88 = por %p86, %p87
    %p90 = scmp.ne.s32.totalorder %s73, %s89
    %p91 = scmp.eq.s32.totalorder %s23, 0
    %p92 = por %p90, %p91
    %s93 = ssub.s32 %s25, %s32
    %s94 = ssub.s32 %s24, %s36
    %s95 = sor.u32 %s93, %s94
    %p96 = scmp.eq.s32.totalorder %s95, 0
    %s98 = sadd.s32 %s97, 1
    %s99 = scalar_select %p96, %s97, %s98
    %p102 = pneg %p96
    %p103 = scmp.eq.s32.totalorder %s17, 3
    %p104 = por %p102, %p103
    %p105 = scmp.ne.s32.totalorder %s97, %s100
    %p106 = scmp.eq.s32.totalorder %s17, 0
    %p107 = por %p105, %p106
    %p108 = scmp.ne.s32.totalorder %s97, %s100
    %p109 = scmp.eq.s32.totalorder %s22, 3
    %p110 = por %p108, %p109
    %p111 = scmp.ne.s32.totalorder %s100, %s101
    %p112 = scmp.eq.s32.totalorder %s22, 0
    %p113 = por %p111, %p112
    %p114 = scmp.ne.s32.totalorder %s100, %s101
    %p115 = scmp.eq.s32.totalorder %s23, 3
    %p116 = por %p114, %p115
    %p118 = scmp.ne.s32.totalorder %s101, %s117
    %p119 = scmp.eq.s32.totalorder %s23, 0
    %p120 = por %p118, %p119
    %s121 = ssub.s32 %s24, %s36
    %p122 = scmp.eq.s32.totalorder %s121, 0
    %s124 = sadd.s32 %s123, 1
    %s125 = scalar_select %p122, %s123, %s124
    %p128 = pneg %p122
    %p129 = scmp.eq.s32.totalorder %s17, 3
    %p130 = por %p128, %p129
    %p131 = scmp.ne.s32.totalorder %s123, %s126
    %p132 = scmp.eq.s32.totalorder %s17, 0
    %p133 = por %p131, %p132
    %p134 = scmp.ne.s32.totalorder %s123, %s126
    %p135 = scmp.eq.s32.totalorder %s22, 3
    %p136 = por %p134, %p135
    %p137 = scmp.ne.s32.totalorder %s126, %s127
    %p138 = scmp.eq.s32.totalorder %s22, 0
    %p139 = por %p137, %p138
    %p140 = scmp.ne.s32.totalorder %s126, %s127
    %p141 = scmp.eq.s32.totalorder %s23, 3
    %p142 = por %p140, %p141
    %p144 = scmp.ne.s32.totalorder %s127, %s143
    %p145 = scmp.eq.s32.totalorder %s23, 0
    %p146 = por %p144, %p145
    %s147 = ssub.s32 %s24, %s36
    %p148 = scmp.eq.s32.totalorder %s147, 0
    %s150 = sadd.s32 %s149, 1
    %s151 = scalar_select %p148, %s149, %s150
    %p154 = pneg %p148
    %p155 = scmp.eq.s32.totalorder %s17, 3
    %p156 = por %p154, %p155
    %p157 = scmp.ne.s32.totalorder %s149, %s152
    %p158 = scmp.eq.s32.totalorder %s17, 0
    %p159 = por %p157, %p158
    %p160 = scmp.ne.s32.totalorder %s149, %s152
    %p161 = scmp.eq.s32.totalorder %s22, 3
    %p162 = por %p160, %p161
    %p163 = scmp.ne.s32.totalorder %s152, %s153
    %p164 = scmp.eq.s32.totalorder %s22, 0
    %p165 = por %p163, %p164
    %p166 = scmp.ne.s32.totalorder %s152, %s153
    %p167 = scmp.eq.s32.totalorder %s23, 3
    %p168 = por %p166, %p167
    %p170 = scmp.ne.s32.totalorder %s153, %s169
    %p171 = scmp.eq.s32.totalorder %s23, 0
    %p172 = por %p170, %p171
    %s173 = ssub.s32 %s24, %s36
    %p174 = scmp.eq.s32.totalorder %s173, 0
    %s176 = sadd.s32 %s175, 1
    %s177 = scalar_select %p174, %s175, %s176
    %p180 = pneg %p174
    %p181 = scmp.eq.s32.totalorder %s17, 3
    %p182 = por %p180, %p181
    %p183 = scmp.ne.s32.totalorder %s175, %s178
    %p184 = scmp.eq.s32.totalorder %s17, 0
    %p185 = por %p183, %p184
    %p186 = scmp.ne.s32.totalorder %s175, %s178
    %p187 = scmp.eq.s32.totalorder %s22, 3
    %p188 = por %p186, %p187
    %p189 = scmp.ne.s32.totalorder %s178, %s179
    %p190 = scmp.eq.s32.totalorder %s22, 0
    %p191 = por %p189, %p190
    %p192 = scmp.ne.s32.totalorder %s178, %s179
    %p193 = scmp.eq.s32.totalorder %s23, 3
    %p194 = por %p192, %p193
    %p196 = scmp.ne.s32.totalorder %s179, %s195
    %p197 = scmp.eq.s32.totalorder %s23, 0
    %p198 = por %p196, %p197
    %s199 = ssub.s32 %s24, %s36
    %p200 = scmp.eq.s32.totalorder %s199, 0
    %s202 = sadd.s32 %s201, 1
    %s203 = scalar_select %p200, %s201, %s202
    %p206 = pneg %p200
    %p207 = scmp.eq.s32.totalorder %s17, 3
    %p208 = por %p206, %p207
    %p209 = scmp.ne.s32.totalorder %s201, %s204
    %p210 = scmp.eq.s32.totalorder %s17, 0
    %p211 = por %p209, %p210
    %p212 = scmp.ne.s32.totalorder %s201, %s204
    %p213 = scmp.eq.s32.totalorder %s22, 3
    %p214 = por %p212, %p213
    %p215 = scmp.ne.s32.totalorder %s204, %s205
    %p216 = scmp.eq.s32.totalorder %s22, 0
    %p217 = por %p215, %p216
    %p218 = scmp.ne.s32.totalorder %s204, %s205
    %p219 = scmp.eq.s32.totalorder %s23, 3
    %p220 = por %p218, %p219
    %p222 = scmp.ne.s32.totalorder %s205, %s221
    %p223 = scmp.eq.s32.totalorder %s23, 0
    %p224 = por %p222, %p223
    %s225 = ssub.s32 %s24, %s36
    %p226 = scmp.eq.s32.totalorder %s225, 0
    %s228 = sadd.s32 %s227, 1
    %s229 = scalar_select %p226, %s227, %s228
    %p232 = pneg %p226
    %p233 = scmp.eq.s32.totalorder %s17, 3
    %p234 = por %p232, %p233
    %p235 = scmp.ne.s32.totalorder %s227, %s230
    %p236 = scmp.eq.s32.totalorder %s17, 0
    %p237 = por %p235, %p236
    %p238 = scmp.ne.s32.totalorder %s227, %s230
    %p239 = scmp.eq.s32.totalorder %s22, 3
    %p240 = por %p238, %p239
    %p241 = scmp.ne.s32.totalorder %s230, %s231
    %p242 = scmp.eq.s32.totalorder %s22, 0
    %p243 = por %p241, %p242
    %p244 = scmp.ne.s32.totalorder %s230, %s231
    %p245 = scmp.eq.s32.totalorder %s23, 3
    %p246 = por %p244, %p245
    %p248 = scmp.ne.s32.totalorder %s231, %s247
    %p249 = scmp.eq.s32.totalorder %s23, 0
    %p250 = por %p248, %p249
    %s251 = ssub.s32 %s24, %s36
    %p252 = scmp.eq.s32.totalorder %s251, 0
    %s254 = sadd.s32 %s253, 1
    %s255 = scalar_select %p252, %s253, %s254
    %p258 = pneg %p252
    %p259 = scmp.eq.s32.totalorder %s17, 3
    %p260 = por %p258, %p259
    %p261 = scmp.ne.s32.totalorder %s253, %s256
    %p262 = scmp.eq.s32.totalorder %s17, 0
    %p263 = por %p261, %p262
    %p264 = scmp.ne.s32.totalorder %s253, %s256
    %p265 = scmp.eq.s32.totalorder %s22, 3
    %p266 = por %p264, %p265
    %p267 = scmp.ne.s32.totalorder %s256, %s257
    %p268 = scmp.eq.s32.totalorder %s22, 0
    %p269 = por %p267, %p268
    %p270 = scmp.ne.s32.totalorder %s256, %s257
    %p271 = scmp.eq.s32.totalorder %s23, 3
    %p272 = por %p270, %p271
    %p274 = scmp.ne.s32.totalorder %s257, %s273
    %p275 = scmp.eq.s32.totalorder %s23, 0
    %p276 = por %p274, %p275
    %s277 = ssub.s32 %s24, %s36
    %p278 = scmp.eq.s32.totalorder %s277, 0
    %s280 = sadd.s32 %s279, 1
    %s281 = scalar_select %p278, %s279, %s280
    %p284 = pneg %p278
    %p285 = scmp.eq.s32.totalorder %s17, 3
    %p286 = por %p284, %p285
    %p287 = scmp.ne.s32.totalorder %s279, %s282
    %p288 = scmp.eq.s32.totalorder %s17, 0
    %p289 = por %p287, %p288
    %p290 = scmp.ne.s32.totalorder %s279, %s282
    %p291 = scmp.eq.s32.totalorder %s22, 3
    %p292 = por %p290, %p291
    %p293 = scmp.ne.s32.totalorder %s282, %s283
    %p294 = scmp.eq.s32.totalorder %s22, 0
    %p295 = por %p293, %p294
    %p296 = scmp.ne.s32.totalorder %s282, %s283
    %p297 = scmp.eq.s32.totalorder %s23, 3
    %p298 = por %p296, %p297
    %p300 = scmp.ne.s32.totalorder %s283, %s299
    %p301 = scmp.eq.s32.totalorder %s23, 0
    %p302 = por %p300, %p301
    %s303 = ssub.s32 %s24, %s36
    %p304 = scmp.eq.s32.totalorder %s303, 0
    %s306 = sadd.s32 %s305, 1
    %s307 = scalar_select %p304, %s305, %s306
    %p310 = pneg %p304
    %p311 = scmp.eq.s32.totalorder %s17, 3
    %p312 = por %p310, %p311
    %p313 = scmp.ne.s32.totalorder %s305, %s308
    %p314 = scmp.eq.s32.totalorder %s17, 0
    %p315 = por %p313, %p314
    %p316 = scmp.ne.s32.totalorder %s305, %s308
    %p317 = scmp.eq.s32.totalorder %s22, 3
    %p318 = por %p316, %p317
    %p319 = scmp.ne.s32.totalorder %s308, %s309
    %p320 = scmp.eq.s32.totalorder %s22, 0
    %p321 = por %p319, %p320
    %p322 = scmp.ne.s32.totalorder %s308, %s309
    %p323 = scmp.eq.s32.totalorder %s23, 3
    %p324 = por %p322, %p323
    %p326 = scmp.ne.s32.totalorder %s309, %s325
    %p327 = scmp.eq.s32.totalorder %s23, 0
    %p328 = por %p326, %p327
    %s329 = ssub.s32 %s25, %s32
    %s330 = ssub.s32 %s24, %s36
    %s331 = sor.u32 %s329, %s330
    %p332 = scmp.eq.s32.totalorder %s331, 0
    %s334 = sadd.s32 %s333, 1
    %s335 = scalar_select %p332, %s333, %s334
    %p338 = pneg %p332
    %p339 = scmp.eq.s32.totalorder %s17, 3
    %p340 = por %p338, %p339
    %p341 = scmp.ne.s32.totalorder %s333, %s336
    %p342 = scmp.eq.s32.totalorder %s17, 0
    %p343 = por %p341, %p342
    %p344 = scmp.ne.s32.totalorder %s333, %s336
    %p345 = scmp.eq.s32.totalorder %s22, 3
    %p346 = por %p344, %p345
    %p347 = scmp.ne.s32.totalorder %s336, %s337
    %p348 = scmp.eq.s32.totalorder %s22, 0
    %p349 = por %p347, %p348
    %p350 = scmp.ne.s32.totalorder %s336, %s337
    %p351 = scmp.eq.s32.totalorder %s23, 3
    %p352 = por %p350, %p351
    %p354 = scmp.ne.s32.totalorder %s337, %s353
    %p355 = scmp.eq.s32.totalorder %s23, 0
    %p356 = por %p354, %p355
    %p357 = scmp.le.s32.totalorder 1, %s17
    %p358 = scmp.lt.s32.totalorder %s17, 5
    %p359 = pnand %p357, %p358
    %p360 = pneg %p359
    // Predicated region
    $region9: #{_lambda_.6} parent=5 // pred_check
      _
    $region10: #{_lambda_.6} parent=5 // pred_check_branch
      %362 = sbr.rel (%p359) target = $region12
    $region11: #{_lambda_.6} parent=5 // pred_region
      %s363 = ssub.s32 %s17, 1
    $region12: #{_lambda_.6} parent=5 // pred_fallthru
      _
    %p364 = scmp.lt.s32.totalorder %s17, 4
    // Predicated region
    $region13: #{_lambda_.6} parent=5 // pred_check
      %p365 = pneg %p364
    $region14: #{_lambda_.6} parent=5 // pred_check_branch
      %367 = sbr.rel (%p365) target = $region16
    $region15: #{_lambda_.6} parent=5 // pred_region
      // Predicated region
      $region17: #{_lambda_.6} parent=15 // pred_check
        %p368 = pneg %p51
      $region18: #{_lambda_.6} parent=15 // pred_check_branch
        %370 = sbr.rel (%p368) target = $region20
      $region19: #{_lambda_.6} parent=15 // pred_region
        %p371 = scmp.lt.s32.totalorder %s25, 1
        %s372 = scalar_select %p371, %s25, 1
        %p373 = scmp.lt.s32.totalorder %s24, 1
        %s374 = scalar_select %p373, %s24, 1
        %s375 = smul.addr %s372, 2
        %s376 = sadd.s32 %s374, %s375
        %s377 = smul.addr %s376, 8
        %s378 = scalar_lea.vmem %s0, %s377
      $region20: #{_lambda_.6} parent=15 // pred_fallthru
        _
      // Predicated region
      $region21: #{_lambda_.6} parent=15 // pred_check
        %p379 = pneg %p79
      $region22: #{_lambda_.6} parent=15 // pred_check_branch
        %381 = sbr.rel (%p379) target = $region24
      $region23: #{_lambda_.6} parent=15 // pred_region
        %p382 = scmp.lt.s32.totalorder %s25, 1
        %s383 = scalar_select %p382, %s25, 1
        %p384 = scmp.lt.s32.totalorder %s24, 1
        %s385 = scalar_select %p384, %s24, 1
        %s386 = smul.addr %s383, 2
        %s387 = sadd.s32 %s385, %s386
        %s388 = smul.addr %s387, 8
        %s389 = scalar_lea.vmem %s1, %s388
      $region24: #{_lambda_.6} parent=15 // pred_fallthru
        _
      // Predicated region
      $region25: #{_lambda_.6} parent=15 // pred_check
        %p390 = pneg %p107
      $region26: #{_lambda_.6} parent=15 // pred_check_branch
        %392 = sbr.rel (%p390) target = $region28
      $region27: #{_lambda_.6} parent=15 // pred_region
        %p393 = scmp.lt.s32.totalorder %s25, 1
        %s394 = scalar_select %p393, %s25, 1
        %p395 = scmp.lt.s32.totalorder %s24, 1
        %s396 = scalar_select %p395, %s24, 1
        %s397 = smul.addr %s394, 2
        %s398 = sadd.s32 %s396, %s397
        %s399 = smul.addr %s398, 8
        %s400 = scalar_lea.vmem %s2, %s399
      $region28: #{_lambda_.6} parent=15 // pred_fallthru
        _
      // Predicated region
      $region29: #{_lambda_.6} parent=15 // pred_check
        %p401 = pneg %p133
      $region30: #{_lambda_.6} parent=15 // pred_check_branch
        %403 = sbr.rel (%p401) target = $region32
      $region31: #{_lambda_.6} parent=15 // pred_region
        %p404 = scmp.lt.s32.totalorder %s24, 1
        %s405 = scalar_select %p404, %s24, 1
        %s406 = smul.addr %s405, 4
        %s407 = smul.addr %s406, 4
        %s408 = scalar_lea.vmem %s3, %s407
      $region32: #{_lambda_.6} parent=15 // pred_fallthru
        _
      // Predicated region
      $region33: #{_lambda_.6} parent=15 // pred_check
        %p409 = pneg %p159
      $region34: #{_lambda_.6} parent=15 // pred_check_branch
        %411 = sbr.rel (%p409) target = $region36
      $region35: #{_lambda_.6} parent=15 // pred_region
        %p412 = scmp.lt.s32.totalorder %s24, 1
        %s413 = scalar_select %p412, %s24, 1
        %s414 = scalar_lea.vmem %s4, %s413
      $region36: #{_lambda_.6} parent=15 // pred_fallthru
        _
      // Predicated region
      $region37: #{_lambda_.6} parent=15 // pred_check
        %p415 = pneg %p185
      $region38: #{_lambda_.6} parent=15 // pred_check_branch
        %417 = sbr.rel (%p415) target = $region40
      $region39: #{_lambda_.6} parent=15 // pred_region
        %p418 = scmp.lt.s32.totalorder %s24, 1
        %s419 = scalar_select %p418, %s24, 1
        %s420 = smul.addr %s419, 4
        %s421 = smul.addr %s420, 4
        %s422 = scalar_lea.vmem %s5, %s421
      $region40: #{_lambda_.6} parent=15 // pred_fallthru
        _
      // Predicated region
      $region41: #{_lambda_.6} parent=15 // pred_check
        %p423 = pneg %p211
      $region42: #{_lambda_.6} parent=15 // pred_check_branch
        %425 = sbr.rel (%p423) target = $region44
      $region43: #{_lambda_.6} parent=15 // pred_region
        %p426 = scmp.lt.s32.totalorder %s24, 1
        %s427 = scalar_select %p426, %s24, 1
        %s428 = scalar_lea.vmem %s6, %s427
      $region44: #{_lambda_.6} parent=15 // pred_fallthru
        _
      // Predicated region
      $region45: #{_lambda_.6} parent=15 // pred_check
        %p429 = pneg %p237
      $region46: #{_lambda_.6} parent=15 // pred_check_branch
        %431 = sbr.rel (%p429) target = $region48
      $region47: #{_lambda_.6} parent=15 // pred_region
        %p432 = scmp.lt.s32.totalorder %s24, 1
        %s433 = scalar_select %p432, %s24, 1
        %s434 = smul.addr %s433, 4
        %s435 = smul.addr %s434, 4
        %s436 = scalar_lea.vmem %s7, %s435
      $region48: #{_lambda_.6} parent=15 // pred_fallthru
        _
      // Predicated region
      $region49: #{_lambda_.6} parent=15 // pred_check
        %p437 = pneg %p263
      $region50: #{_lambda_.6} parent=15 // pred_check_branch
        %439 = sbr.rel (%p437) target = $region52
      $region51: #{_lambda_.6} parent=15 // pred_region
        %p440 = scmp.lt.s32.totalorder %s24, 1
        %s441 = scalar_select %p440, %s24, 1
        %s442 = scalar_lea.vmem %s8, %s441
      $region52: #{_lambda_.6} parent=15 // pred_fallthru
        _
      // Predicated region
      $region53: #{_lambda_.6} parent=15 // pred_check
        %p443 = pneg %p289
      $region54: #{_lambda_.6} parent=15 // pred_check_branch
        %445 = sbr.rel (%p443) target = $region56
      $region55: #{_lambda_.6} parent=15 // pred_region
        %p446 = scmp.lt.s32.totalorder %s24, 1
        %s447 = scalar_select %p446, %s24, 1
        %s448 = scalar_lea.vmem %s9, %s447
      $region56: #{_lambda_.6} parent=15 // pred_fallthru
        _
      // Predicated region
      $region57: #{_lambda_.6} parent=15 // pred_check
        %p449 = pneg %p315
      $region58: #{_lambda_.6} parent=15 // pred_check_branch
        %451 = sbr.rel (%p449) target = $region60
      $region59: #{_lambda_.6} parent=15 // pred_region
        %p452 = scmp.lt.s32.totalorder %s24, 1
        %s453 = scalar_select %p452, %s24, 1
        %s454 = scalar_lea.vmem %s10, %s453
      $region60: #{_lambda_.6} parent=15 // pred_fallthru
        _
    $region16: #{_lambda_.6} parent=5 // pred_fallthru
      _
    %p455 = scmp.le.s32.totalorder 1, %s17
    %p456 = scmp.lt.s32.totalorder %s17, 5
    %p457 = pnand %p455, %p456
    %p458 = pneg %p457
    // Predicated region
    $region61: #{_lambda_.6} parent=5 // pred_check
      _
    $region62: #{_lambda_.6} parent=5 // pred_check_branch
      %460 = sbr.rel (%p457) target = $region64
    $region63: #{_lambda_.6} parent=5 // pred_region
      %s461 = ssub.s32 %s17, 1
      %p462 = scmp.lt.s32.totalorder %s27, 1
      %s463 = scalar_select %p462, %s27, 1
      %p464 = scmp.lt.s32.totalorder %s26, 1
      %s465 = scalar_select %p464, %s26, 1
      %s466 = smul.addr %s463, 2
      %s467 = sadd.s32 %s465, %s466
      %s468 = smul.addr %s467, 8
      %s469 = scalar_lea.vmem %s0, %s468
      %p470 = pneg %p57
      %p471 = pneg %p54
      %p472 = scmp.lt.s32.totalorder %s27, 1
      %s473 = scalar_select %p472, %s27, 1
      %p474 = scmp.lt.s32.totalorder %s26, 1
      %s475 = scalar_select %p474, %s26, 1
      %s476 = smul.addr %s473, 2
      %s477 = sadd.s32 %s475, %s476
      %s478 = smul.addr %s477, 8
      %s479 = scalar_lea.vmem %s1, %s478
      %p480 = pneg %p85
      %p481 = pneg %p82
      %p482 = scmp.lt.s32.totalorder %s27, 1
      %s483 = scalar_select %p482, %s27, 1
      %p484 = scmp.lt.s32.totalorder %s26, 1
      %s485 = scalar_select %p484, %s26, 1
      %s486 = smul.addr %s483, 2
      %s487 = sadd.s32 %s485, %s486
      %s488 = smul.addr %s487, 8
      %s489 = scalar_lea.vmem %s2, %s488
      %p490 = pneg %p113
      %p491 = pneg %p110
      %p492 = scmp.lt.s32.totalorder %s26, 1
      %s493 = scalar_select %p492, %s26, 1
      %s494 = smul.addr %s493, 4
      %s495 = smul.addr %s494, 4
      %s496 = scalar_lea.vmem %s3, %s495
      %p497 = pneg %p139
      %p498 = pneg %p136
      %p499 = scmp.lt.s32.totalorder %s26, 1
      %s500 = scalar_select %p499, %s26, 1
      %s501 = scalar_lea.vmem %s4, %s500
      %p502 = pneg %p165
      %p503 = pneg %p162
      %p504 = scmp.lt.s32.totalorder %s26, 1
      %s505 = scalar_select %p504, %s26, 1
      %s506 = smul.addr %s505, 4
      %s507 = smul.addr %s506, 4
      %s508 = scalar_lea.vmem %s5, %s507
      %p509 = pneg %p191
      %p510 = pneg %p188
      %p511 = scmp.lt.s32.totalorder %s26, 1
      %s512 = scalar_select %p511, %s26, 1
      %s513 = scalar_lea.vmem %s6, %s512
      %p514 = pneg %p217
      %p515 = pneg %p214
      %p516 = scmp.lt.s32.totalorder %s26, 1
      %s517 = scalar_select %p516, %s26, 1
      %s518 = smul.addr %s517, 4
      %s519 = smul.addr %s518, 4
      %s520 = scalar_lea.vmem %s7, %s519
      %p521 = pneg %p243
      %p522 = pneg %p240
      %p523 = scmp.lt.s32.totalorder %s26, 1
      %s524 = scalar_select %p523, %s26, 1
      %s525 = scalar_lea.vmem %s8, %s524
      %p526 = pneg %p269
      %p527 = pneg %p266
      %p528 = scmp.lt.s32.totalorder %s26, 1
      %s529 = scalar_select %p528, %s26, 1
      %s530 = scalar_lea.vmem %s9, %s529
      %p531 = pneg %p295
      %p532 = pneg %p292
      %p533 = scmp.lt.s32.totalorder %s26, 1
      %s534 = scalar_select %p533, %s26, 1
      %s535 = scalar_lea.vmem %s10, %s534
      %p536 = pneg %p321
      %p537 = pneg %p318
      %p538 = pneg %p349
      %p539 = pneg %p346
      %p540 = scmp.lt.s32.totalorder %s27, 1
      %s541 = scalar_select %p540, %s27, 1
      %p542 = scmp.lt.s32.totalorder %s26, 1
      %s543 = scalar_select %p542, %s26, 1
      %s544 = smul.addr %s541, 2
      %s545 = sadd.s32 %s543, %s544
      %s546 = smul.addr %s545, 8
      %s547 = scalar_lea.vmem %s11, %s546
      %p548 = scmp.lt.s32.totalorder %s27, 1
      %s549 = scalar_select %p548, %s27, 1
      %p550 = scmp.lt.s32.totalorder %s26, 1
      %s551 = scalar_select %p550, %s26, 1
      %s552 = smul.addr %s549, 2
      %s553 = sadd.s32 %s551, %s552
      %s554 = smul.addr %s553, 8
      %s555 = scalar_lea.vmem %s0, %s554
      %p556 = scmp.lt.s32.totalorder %s27, 1
      %s557 = scalar_select %p556, %s27, 1
      %p558 = scmp.lt.s32.totalorder %s26, 1
      %s559 = scalar_select %p558, %s26, 1
      %s560 = smul.addr %s557, 2
      %s561 = sadd.s32 %s559, %s560
      %s562 = smul.addr %s561, 8
      %s563 = scalar_lea.vmem %s1, %s562
      %p564 = scmp.lt.s32.totalorder %s27, 1
      %s565 = scalar_select %p564, %s27, 1
      %p566 = scmp.lt.s32.totalorder %s26, 1
      %s567 = scalar_select %p566, %s26, 1
      %s568 = smul.addr %s565, 2
      %s569 = sadd.s32 %s567, %s568
      %s570 = smul.addr %s569, 8
      %s571 = scalar_lea.vmem %s2, %s570
      %p572 = scmp.lt.s32.totalorder %s26, 1
      %s573 = scalar_select %p572, %s26, 1
      %s574 = smul.addr %s573, 4
      %s575 = smul.addr %s574, 4
      %s576 = scalar_lea.vmem %s3, %s575
      %p577 = scmp.lt.s32.totalorder %s26, 1
      %s578 = scalar_select %p577, %s26, 1
      %s579 = scalar_lea.vmem %s4, %s578
      %p580 = scmp.lt.s32.totalorder %s26, 1
      %s581 = scalar_select %p580, %s26, 1
      %s582 = smul.addr %s581, 4
      %s583 = smul.addr %s582, 4
      %s584 = scalar_lea.vmem %s5, %s583
      %p585 = scmp.lt.s32.totalorder %s26, 1
      %s586 = scalar_select %p585, %s26, 1
      %s587 = scalar_lea.vmem %s6, %s586
      %p588 = scmp.lt.s32.totalorder %s26, 1
      %s589 = scalar_select %p588, %s26, 1
      %s590 = smul.addr %s589, 4
      %s591 = smul.addr %s590, 4
      %s592 = scalar_lea.vmem %s7, %s591
      %p593 = scmp.lt.s32.totalorder %s26, 1
      %s594 = scalar_select %p593, %s26, 1
      %s595 = scalar_lea.vmem %s8, %s594
      %p596 = scmp.lt.s32.totalorder %s26, 1
      %s597 = scalar_select %p596, %s26, 1
      %s598 = scalar_lea.vmem %s9, %s597
      %p599 = scmp.lt.s32.totalorder %s26, 1
      %s600 = scalar_select %p599, %s26, 1
      %s601 = scalar_lea.vmem %s10, %s600
      %p602 = scmp.lt.s32.totalorder %s27, 1
      %s603 = scalar_select %p602, %s27, 1
      %p604 = scmp.lt.s32.totalorder %s26, 1
      %s605 = scalar_select %p604, %s26, 1
      %s606 = smul.addr %s603, 2
      %s607 = sadd.s32 %s605, %s606
      %s608 = smul.addr %s607, 8
      %s609 = scalar_lea.vmem %s11, %s608
      %v611 = vld [vmem:[%s555] sm:$0xff]
      %v612 = vld [vmem:[%s563] sm:$0xff]
      %v613 = vld [vmem:[%s571] sm:$0xff]
      %v614 = vld [vmem:[%s576] sm:$0xf]
      %v615 = vld [vmem:[%s576 + $0x4] sm:$0xf]
      %v616 = vld [vmem:[%s576 + $0x8] sm:$0xf]
      %v617 = vld [vmem:[%s576 + $0xc] sm:$0xf]
      %v618 = vld [vmem:[%s579] sm:$0x1]
      %v619 = vpack.c.bf16 %v611, %v611
      %v621 = vlaneseq
      %v622 = vshrl.u32 %v621, 7
      %v623 = vsub.s32 0, %v622
      %v624 = vrot.slane %v618, %v623
      %v630 = vunpack.c.l.b16 %v614
      %v631 = vunpack.c.l.b16 %v615
      %v632 = vunpack.c.l.b16 %v616
      %v633 = vunpack.c.l.b16 %v617
      %v634 = vpack.c.b16 %v631, %v630
      %v635 = vpack.c.b16 %v633, %v632
      %vm638 = vcmask 261120
      %v640 = vsel %vm638, %v619, 0
      %642 = vmatprep.subr.bf16.mxu0 0
      %643 = vmatpush1.bf16.msra.mxu0 %v634
      %644 = vmatprep.subr.bf16.mxu0 0
      %645 = vmatpush1.bf16.msra.mxu0 %v635
      %646 = vmatprep.subr.bf16.mxu0 0
      %647 = vmatpush1.bf16.msra.mxu0 0
      %648 = vmatprep.subr.bf16.mxu0 0
      %649 = vmatpush1.bf16.msra.mxu0 0
      %650 = vmatprep.subr.bf16.mxu0 0
      %651 = vmatpush1.bf16.msra.mxu0 0
      %652 = vmatprep.subr.bf16.mxu0 0
      %653 = vmatpush1.bf16.msra.mxu0 0
      %654 = vmatprep.subr.bf16.mxu0 0
      %655 = vmatpush1.bf16.msra.mxu0 0
      %656 = vmatprep.subr.bf16.mxu0 0
      %657 = vmatpush1.bf16.msra.mxu0 0
      %658 = vmatprep.subr.bf16.mxu0 0
      %659 = vmatpush1.bf16.msra.mxu0 0
      %660 = vmatprep.subr.bf16.mxu0 0
      %661 = vmatpush1.bf16.msra.mxu0 0
      %662 = vmatprep.subr.bf16.mxu0 0
      %663 = vmatpush1.bf16.msra.mxu0 0
      %664 = vmatprep.subr.bf16.mxu0 0
      %665 = vmatpush1.bf16.msra.mxu0 0
      %666 = vmatprep.subr.bf16.mxu0 0
      %667 = vmatpush1.bf16.msra.mxu0 0
      %668 = vmatprep.subr.bf16.mxu0 0
      %669 = vmatpush1.bf16.msra.mxu0 0
      %670 = vmatprep.subr.bf16.mxu0 0
      %671 = vmatpush1.bf16.msra.mxu0 0
      %672 = vmatprep.subr.bf16.mxu0 0
      %673 = vmatpush1.bf16.msra.mxu0 0
      %674 = vmatprep.mubr.bf16.mxu0 0
      %675 = vmatmul.mubr.bf16.gmra.mrb[0].mxu0 %v640
      %v676 = vpop.f32.mrb[0].mxu0
      %v677 = vadd.f32 %v624, %v676
      %v678 = vpop.f32.mrb[0].mxu0
      %v679 = vpop.f32.mrb[0].mxu0
      %v680 = vpop.f32.mrb[0].mxu0
      %681 = vdwg.mxu0
      %v682 = vpack.c.bf16 %v612, %v612
      %v684 = vsel %vm638, %v682, 0
      %686 = vmatprep.subr.bf16.mxu0 0
      %687 = vmatpush1.bf16.msra.mxu0 %v634
      %688 = vmatprep.subr.bf16.mxu0 0
      %689 = vmatpush1.bf16.msra.mxu0 %v635
      %690 = vmatprep.subr.bf16.mxu0 0
      %691 = vmatpush1.bf16.msra.mxu0 0
      %692 = vmatprep.subr.bf16.mxu0 0
      %693 = vmatpush1.bf16.msra.mxu0 0
      %694 = vmatprep.subr.bf16.mxu0 0
      %695 = vmatpush1.bf16.msra.mxu0 0
      %696 = vmatprep.subr.bf16.mxu0 0
      %697 = vmatpush1.bf16.msra.mxu0 0
      %698 = vmatprep.subr.bf16.mxu0 0
      %699 = vmatpush1.bf16.msra.mxu0 0
      %700 = vmatprep.subr.bf16.mxu0 0
      %701 = vmatpush1.bf16.msra.mxu0 0
      %702 = vmatprep.subr.bf16.mxu0 0
      %703 = vmatpush1.bf16.msra.mxu0 0
      %704 = vmatprep.subr.bf16.mxu0 0
      %705 = vmatpush1.bf16.msra.mxu0 0
      %706 = vmatprep.subr.bf16.mxu0 0
      %707 = vmatpush1.bf16.msra.mxu0 0
      %708 = vmatprep.subr.bf16.mxu0 0
      %709 = vmatpush1.bf16.msra.mxu0 0
      %710 = vmatprep.subr.bf16.mxu0 0
      %711 = vmatpush1.bf16.msra.mxu0 0
      %712 = vmatprep.subr.bf16.mxu0 0
      %713 = vmatpush1.bf16.msra.mxu0 0
      %714 = vmatprep.subr.bf16.mxu0 0
      %715 = vmatpush1.bf16.msra.mxu0 0
      %716 = vmatprep.subr.bf16.mxu0 0
      %717 = vmatpush1.bf16.msra.mxu0 0
      %718 = vmatprep.mubr.bf16.mxu0 0
      %719 = vmatmul.mubr.bf16.gmra.mrb[0].mxu0 %v684
      %v720 = vpop.f32.mrb[0].mxu0
      %v721 = vadd.f32 %v624, %v720
      %v722 = vpop.f32.mrb[0].mxu0
      %v723 = vpop.f32.mrb[0].mxu0
      %v724 = vpop.f32.mrb[0].mxu0
      %725 = vdwg.mxu0
      %v726 = vld [vmem:[%s584] sm:$0xf]
      %v727 = vld [vmem:[%s584 + $0x4] sm:$0xf]
      %v728 = vld [vmem:[%s584 + $0x8] sm:$0xf]
      %v729 = vld [vmem:[%s584 + $0xc] sm:$0xf]
      %v730 = vpack.c.bf16 %v613, %v613
      %v731 = vld [vmem:[%s587] sm:$0x1]
      %v733 = vlaneseq
      %v734 = vshrl.u32 %v733, 7
      %v735 = vsub.s32 0, %v734
      %v736 = vrot.slane %v731, %v735
      %v742 = vunpack.c.l.b16 %v726
      %v743 = vunpack.c.l.b16 %v727
      %v744 = vunpack.c.l.b16 %v728
      %v745 = vunpack.c.l.b16 %v729
      %v746 = vpack.c.b16 %v743, %v742
      %v747 = vpack.c.b16 %v745, %v744
      %v751 = vsel %vm638, %v730, 0
      %753 = vmatprep.subr.bf16.mxu0 0
      %754 = vmatpush1.bf16.msra.mxu0 %v746
      %755 = vmatprep.subr.bf16.mxu0 0
      %756 = vmatpush1.bf16.msra.mxu0 %v747
      %757 = vmatprep.subr.bf16.mxu0 0
      %758 = vmatpush1.bf16.msra.mxu0 0
      %759 = vmatprep.subr.bf16.mxu0 0
      %760 = vmatpush1.bf16.msra.mxu0 0
      %761 = vmatprep.subr.bf16.mxu0 0
      %762 = vmatpush1.bf16.msra.mxu0 0
      %763 = vmatprep.subr.bf16.mxu0 0
      %764 = vmatpush1.bf16.msra.mxu0 0
      %765 = vmatprep.subr.bf16.mxu0 0
      %766 = vmatpush1.bf16.msra.mxu0 0
      %767 = vmatprep.subr.bf16.mxu0 0
      %768 = vmatpush1.bf16.msra.mxu0 0
      %769 = vmatprep.subr.bf16.mxu0 0
      %770 = vmatpush1.bf16.msra.mxu0 0
      %771 = vmatprep.subr.bf16.mxu0 0
      %772 = vmatpush1.bf16.msra.mxu0 0
      %773 = vmatprep.subr.bf16.mxu0 0
      %774 = vmatpush1.bf16.msra.mxu0 0
      %775 = vmatprep.subr.bf16.mxu0 0
      %776 = vmatpush1.bf16.msra.mxu0 0
      %777 = vmatprep.subr.bf16.mxu0 0
      %778 = vmatpush1.bf16.msra.mxu0 0
      %779 = vmatprep.subr.bf16.mxu0 0
      %780 = vmatpush1.bf16.msra.mxu0 0
      %781 = vmatprep.subr.bf16.mxu0 0
      %782 = vmatpush1.bf16.msra.mxu0 0
      %783 = vmatprep.subr.bf16.mxu0 0
      %784 = vmatpush1.bf16.msra.mxu0 0
      %785 = vmatprep.mubr.bf16.mxu0 0
      %786 = vmatmul.mubr.bf16.gmra.mrb[0].mxu0 %v751
      %v787 = vpop.f32.mrb[0].mxu0
      %v788 = vadd.f32 %v736, %v787
      %v789 = vpop.f32.mrb[0].mxu0
      %v790 = vpop.f32.mrb[0].mxu0
      %v791 = vpop.f32.mrb[0].mxu0
      %792 = vdwg.mxu0
      %v793 = vlaneseq
      %v794 = vshrl.u32 %v793, 7
      %v795 = vlaneseq
      %v796 = vand.u32 %v795, 127
      %vm797 = vcmp.le.s32.totalorder %v796, %v794
      %v798 = vld [vmem:[%s592] sm:$0xf]
      %v799 = vld [vmem:[%s592 + $0x4] sm:$0xf]
      %v800 = vld [vmem:[%s592 + $0x8] sm:$0xf]
      %v801 = vld [vmem:[%s592 + $0xc] sm:$0xf]
      %v802 = vpack.c.bf16 %v677, %v677
      %v803 = vpack.c.bf16 %v721, %v721
      %vm804 = vcmask 130048
      %v806 = vsel %vm804, %v802, 0
      %v809 = vsel %vm804, %v803, 0
      %811 = vmatprep.subr.bf16.mxu0 0
      %812 = vmatpush1.bf16.xpose.msra.mxu0 %v809
      %813 = vmatprep.subr.bf16.mxu0 0
      %814 = vmatpush1.bf16.xpose.msra.mxu0 0
      %815 = vmatprep.subr.bf16.mxu0 0
      %816 = vmatpush1.bf16.xpose.msra.mxu0 0
      %817 = vmatprep.subr.bf16.mxu0 0
      %818 = vmatpush1.bf16.xpose.msra.mxu0 0
      %819 = vmatprep.subr.bf16.mxu0 0
      %820 = vmatpush1.bf16.xpose.msra.mxu0 0
      %821 = vmatprep.subr.bf16.mxu0 0
      %822 = vmatpush1.bf16.xpose.msra.mxu0 0
      %823 = vmatprep.subr.bf16.mxu0 0
      %824 = vmatpush1.bf16.xpose.msra.mxu0 0
      %825 = vmatprep.subr.bf16.mxu0 0
      %826 = vmatpush1.bf16.xpose.msra.mxu0 0
      %827 = vmatprep.subr.bf16.mxu0 0
      %828 = vmatpush1.bf16.xpose.msra.mxu0 0
      %829 = vmatprep.subr.bf16.mxu0 0
      %830 = vmatpush1.bf16.xpose.msra.mxu0 0
      %831 = vmatprep.subr.bf16.mxu0 0
      %832 = vmatpush1.bf16.xpose.msra.mxu0 0
      %833 = vmatprep.subr.bf16.mxu0 0
      %834 = vmatpush1.bf16.xpose.msra.mxu0 0
      %835 = vmatprep.subr.bf16.mxu0 0
      %836 = vmatpush1.bf16.xpose.msra.mxu0 0
      %837 = vmatprep.subr.bf16.mxu0 0
      %838 = vmatpush1.bf16.xpose.msra.mxu0 0
      %839 = vmatprep.subr.bf16.mxu0 0
      %840 = vmatpush1.bf16.xpose.msra.mxu0 0
      %841 = vmatprep.subr.bf16.mxu0 0
      %842 = vmatpush1.bf16.xpose.msra.mxu0 0
      %843 = vmatprep.mubr.bf16.mxu0 0
      %844 = vmatmul.mubr.bf16.gmra.mrb[0].mxu0 %v806
      %v845 = vpop.f32.mrb[0].mxu0
      %v846 = vadd.f32 0.0, %v845
      %v847 = vpop.f32.mrb[0].mxu0
      %v848 = vpop.f32.mrb[0].mxu0
      %v849 = vpop.f32.mrb[0].mxu0
      %850 = vdwg.mxu0
      %v851 = vmul.f32 %v846, 0.25
      %v852 = vsel %vm797, %v851, -1e+30
      %vm853 = vcmask 64512
      %v854 = vsel %vm853, %v852, -inf
      %855 = vmax.xlane.f32.xlu0 %v854
      %v856 = vpop.xlane.xlu0 %855
      %v857 = vsub.f32 %v852, %v856
      %v858 = vmul.f32 %v857, 1.442695
      %v859 = vpow.pop %v858
      %v860 = vsel %vm853, %v859, 0.0
      %861 = vadd.xlane.f32.xlu0 %v860
      %v862 = vpop.xlane.xlu0 %861
      %v863 = vrcp.pop %v862
      %v864 = vmul.f32 %v859, %v863
      %v865 = vpack.c.bf16 %v788, %v788
      %v866 = vpack.c.bf16 %v864, %v864
      %v868 = vsel %vm853, %v866, 0
      %vm870 = vcmask 1043456
      %v872 = vsel %vm870, %v865, 0
      %874 = vmatprep.subr.bf16.mxu0 0
      %875 = vmatpush1.bf16.msra.mxu0 %v872
      %876 = vmatprep.subr.bf16.mxu0 0
      %877 = vmatpush1.bf16.msra.mxu0 0
      %878 = vmatprep.subr.bf16.mxu0 0
      %879 = vmatpush1.bf16.msra.mxu0 0
      %880 = vmatprep.subr.bf16.mxu0 0
      %881 = vmatpush1.bf16.msra.mxu0 0
      %882 = vmatprep.subr.bf16.mxu0 0
      %883 = vmatpush1.bf16.msra.mxu0 0
      %884 = vmatprep.subr.bf16.mxu0 0
      %885 = vmatpush1.bf16.msra.mxu0 0
      %886 = vmatprep.subr.bf16.mxu0 0
      %887 = vmatpush1.bf16.msra.mxu0 0
      %888 = vmatprep.subr.bf16.mxu0 0
      %889 = vmatpush1.bf16.msra.mxu0 0
      %890 = vmatprep.subr.bf16.mxu0 0
      %891 = vmatpush1.bf16.msra.mxu0 0
      %892 = vmatprep.subr.bf16.mxu0 0
      %893 = vmatpush1.bf16.msra.mxu0 0
      %894 = vmatprep.subr.bf16.mxu0 0
      %895 = vmatpush1.bf16.msra.mxu0 0
      %896 = vmatprep.subr.bf16.mxu0 0
      %897 = vmatpush1.bf16.msra.mxu0 0
      %898 = vmatprep.subr.bf16.mxu0 0
      %899 = vmatpush1.bf16.msra.mxu0 0
      %900 = vmatprep.subr.bf16.mxu0 0
      %901 = vmatpush1.bf16.msra.mxu0 0
      %902 = vmatprep.subr.bf16.mxu0 0
      %903 = vmatpush1.bf16.msra.mxu0 0
      %904 = vmatprep.subr.bf16.mxu0 0
      %905 = vmatpush1.bf16.msra.mxu0 0
      %906 = vmatprep.mubr.bf16.mxu0 0
      %907 = vmatmul.mubr.bf16.gmra.mrb[0].mxu0 %v868
      %v908 = vpop.f32.mrb[0].mxu0
      %v909 = vadd.f32 0.0, %v908
      %v910 = vpop.f32.mrb[0].mxu0
      %v911 = vpop.f32.mrb[0].mxu0
      %v912 = vpop.f32.mrb[0].mxu0
      %913 = vdwg.mxu0
      %v914 = vpack.c.bf16 %v909, %v909
      %916 = vrot.lane.b32.xlu0 %v802, 112
      %v917 = vpop.permute.xlu0 %916
      %919 = vrot.lane.b32.xlu0 %v803, 112
      %v920 = vpop.permute.xlu0 %919
      %v922 = vsel %vm804, %v917, 0
      %v925 = vsel %vm804, %v920, 0
      %927 = vmatprep.subr.bf16.mxu0 0
      %928 = vmatpush1.bf16.xpose.msra.mxu0 %v925
      %929 = vmatprep.subr.bf16.mxu0 0
      %930 = vmatpush1.bf16.xpose.msra.mxu0 0
      %931 = vmatprep.subr.bf16.mxu0 0
      %932 = vmatpush1.bf16.xpose.msra.mxu0 0
      %933 = vmatprep.subr.bf16.mxu0 0
      %934 = vmatpush1.bf16.xpose.msra.mxu0 0
      %935 = vmatprep.subr.bf16.mxu0 0
      %936 = vmatpush1.bf16.xpose.msra.mxu0 0
      %937 = vmatprep.subr.bf16.mxu0 0
      %938 = vmatpush1.bf16.xpose.msra.mxu0 0
      %939 = vmatprep.subr.bf16.mxu0 0
      %940 = vmatpush1.bf16.xpose.msra.mxu0 0
      %941 = vmatprep.subr.bf16.mxu0 0
      %942 = vmatpush1.bf16.xpose.msra.mxu0 0
      %943 = vmatprep.subr.bf16.mxu0 0
      %944 = vmatpush1.bf16.xpose.msra.mxu0 0
      %945 = vmatprep.subr.bf16.mxu0 0
      %946 = vmatpush1.bf16.xpose.msra.mxu0 0
      %947 = vmatprep.subr.bf16.mxu0 0
      %948 = vmatpush1.bf16.xpose.msra.mxu0 0
      %949 = vmatprep.subr.bf16.mxu0 0
      %950 = vmatpush1.bf16.xpose.msra.mxu0 0
      %951 = vmatprep.subr.bf16.mxu0 0
      %952 = vmatpush1.bf16.xpose.msra.mxu0 0
      %953 = vmatprep.subr.bf16.mxu0 0
      %954 = vmatpush1.bf16.xpose.msra.mxu0 0
      %955 = vmatprep.subr.bf16.mxu0 0
      %956 = vmatpush1.bf16.xpose.msra.mxu0 0
      %957 = vmatprep.subr.bf16.mxu0 0
      %958 = vmatpush1.bf16.xpose.msra.mxu0 0
      %959 = vmatprep.mubr.bf16.mxu0 0
      %960 = vmatmul.mubr.bf16.gmra.mrb[0].mxu0 %v922
      %v961 = vpop.f32.mrb[0].mxu0
      %v962 = vadd.f32 0.0, %v961
      %v963 = vpop.f32.mrb[0].mxu0
      %v964 = vpop.f32.mrb[0].mxu0
      %v965 = vpop.f32.mrb[0].mxu0
      %966 = vdwg.mxu0
      %v967 = vmul.f32 %v962, 0.25
      %v968 = vsel %vm797, %v967, -1e+30
      %v969 = vsel %vm853, %v968, -inf
      %970 = vmax.xlane.f32.xlu0 %v969
      %v971 = vpop.xlane.xlu0 %970
      %v972 = vsub.f32 %v968, %v971
      %v973 = vmul.f32 %v972, 1.442695
      %v974 = vpow.pop %v973
      %v975 = vsel %vm853, %v974, 0.0
      %976 = vadd.xlane.f32.xlu0 %v975
      %v977 = vpop.xlane.xlu0 %976
      %v978 = vrcp.pop %v977
      %v979 = vmul.f32 %v974, %v978
      %v980 = vpack.c.bf16 %v979, %v979
      %982 = vrot.lane.b32.xlu0 %v865, 112
      %v983 = vpop.permute.xlu0 %982
      %v985 = vsel %vm853, %v980, 0
      %v988 = vsel %vm870, %v983, 0
      %990 = vmatprep.subr.bf16.mxu0 0
      %991 = vmatpush1.bf16.msra.mxu0 %v988
      %992 = vmatprep.subr.bf16.mxu0 0
      %993 = vmatpush1.bf16.msra.mxu0 0
      %994 = vmatprep.subr.bf16.mxu0 0
      %995 = vmatpush1.bf16.msra.mxu0 0
      %996 = vmatprep.subr.bf16.mxu0 0
      %997 = vmatpush1.bf16.msra.mxu0 0
      %998 = vmatprep.subr.bf16.mxu0 0
      %999 = vmatpush1.bf16.msra.mxu0 0
      %1000 = vmatprep.subr.bf16.mxu0 0
      %1001 = vmatpush1.bf16.msra.mxu0 0
      %1002 = vmatprep.subr.bf16.mxu0 0
      %1003 = vmatpush1.bf16.msra.mxu0 0
      %1004 = vmatprep.subr.bf16.mxu0 0
      %1005 = vmatpush1.bf16.msra.mxu0 0
      %1006 = vmatprep.subr.bf16.mxu0 0
      %1007 = vmatpush1.bf16.msra.mxu0 0
      %1008 = vmatprep.subr.bf16.mxu0 0
      %1009 = vmatpush1.bf16.msra.mxu0 0
      %1010 = vmatprep.subr.bf16.mxu0 0
      %1011 = vmatpush1.bf16.msra.mxu0 0
      %1012 = vmatprep.subr.bf16.mxu0 0
      %1013 = vmatpush1.bf16.msra.mxu0 0
      %1014 = vmatprep.subr.bf16.mxu0 0
      %1015 = vmatpush1.bf16.msra.mxu0 0
      %1016 = vmatprep.subr.bf16.mxu0 0
      %1017 = vmatpush1.bf16.msra.mxu0 0
      %1018 = vmatprep.subr.bf16.mxu0 0
      %1019 = vmatpush1.bf16.msra.mxu0 0
      %1020 = vmatprep.subr.bf16.mxu0 0
      %1021 = vmatpush1.bf16.msra.mxu0 0
      %1022 = vmatprep.mubr.bf16.mxu0 0
      %1023 = vmatmul.mubr.bf16.gmra.mrb[0].mxu0 %v985
      %v1024 = vpop.f32.mrb[0].mxu0
      %v1025 = vadd.f32 0.0, %v1024
      %v1026 = vpop.f32.mrb[0].mxu0
      %v1027 = vpop.f32.mrb[0].mxu0
      %v1028 = vpop.f32.mrb[0].mxu0
      %1029 = vdwg.mxu0
      %v1030 = vpack.c.bf16 %v1025, %v1025
      %v1033 = vunpack.c.l.b16 %v800
      %v1034 = vunpack.c.l.b16 %v801
      %v1035 = vpack.c.b16 %v1034, %v1033
      %v1038 = vsel %vm804, %v1030, 0
      %1040 = vmatprep.subr.bf16.mxu0 0
      %1041 = vmatpush1.bf16.msra.mxu0 %v1035
      %1042 = vmatprep.subr.bf16.mxu0 0
      %1043 = vmatpush1.bf16.msra.mxu0 0
      %1044 = vmatprep.subr.bf16.mxu0 0
      %1045 = vmatpush1.bf16.msra.mxu0 0
      %1046 = vmatprep.subr.bf16.mxu0 0
      %1047 = vmatpush1.bf16.msra.mxu0 0
      %1048 = vmatprep.subr.bf16.mxu0 0
      %1049 = vmatpush1.bf16.msra.mxu0 0
      %1050 = vmatprep.subr.bf16.mxu0 0
      %1051 = vmatpush1.bf16.msra.mxu0 0
      %1052 = vmatprep.subr.bf16.mxu0 0
      %1053 = vmatpush1.bf16.msra.mxu0 0
      %1054 = vmatprep.subr.bf16.mxu0 0
      %1055 = vmatpush1.bf16.msra.mxu0 0
      %1056 = vmatprep.subr.bf16.mxu0 0
      %1057 = vmatpush1.bf16.msra.mxu0 0
      %1058 = vmatprep.subr.bf16.mxu0 0
      %1059 = vmatpush1.bf16.msra.mxu0 0
      %1060 = vmatprep.subr.bf16.mxu0 0
      %1061 = vmatpush1.bf16.msra.mxu0 0
      %1062 = vmatprep.subr.bf16.mxu0 0
      %1063 = vmatpush1.bf16.msra.mxu0 0
      %1064 = vmatprep.subr.bf16.mxu0 0
      %1065 = vmatpush1.bf16.msra.mxu0 0
      %1066 = vmatprep.subr.bf16.mxu0 0
      %1067 = vmatpush1.bf16.msra.mxu0 0
      %1068 = vmatprep.subr.bf16.mxu0 0
      %1069 = vmatpush1.bf16.msra.mxu0 0
      %1070 = vmatprep.subr.bf16.mxu0 0
      %1071 = vmatpush1.bf16.msra.mxu0 0
      %1072 = vmatprep.mubr.bf16.mxu0 0
      %1073 = vmatmul.mubr.bf16.gmra.mrb[0].mxu0 %v1038
      %v1074 = vpop.f32.mrb[0].mxu0
      %v1075 = vadd.f32 0.0, %v1074
      %v1076 = vpop.f32.mrb[0].mxu0
      %v1077 = vpop.f32.mrb[0].mxu0
      %v1078 = vpop.f32.mrb[0].mxu0
      %1079 = vdwg.mxu0
      %v1082 = vunpack.c.l.b16 %v798
      %v1083 = vunpack.c.l.b16 %v799
      %v1084 = vpack.c.b16 %v1083, %v1082
      %v1087 = vsel %vm804, %v914, 0
      %1089 = vmatprep.subr.bf16.mxu0 0
      %1090 = vmatpush1.bf16.msra.mxu0 %v1084
      %1091 = vmatprep.subr.bf16.mxu0 0
      %1092 = vmatpush1.bf16.msra.mxu0 0
      %1093 = vmatprep.subr.bf16.mxu0 0
      %1094 = vmatpush1.bf16.msra.mxu0 0
      %1095 = vmatprep.subr.bf16.mxu0 0
      %1096 = vmatpush1.bf16.msra.mxu0 0
      %1097 = vmatprep.subr.bf16.mxu0 0
      %1098 = vmatpush1.bf16.msra.mxu0 0
      %1099 = vmatprep.subr.bf16.mxu0 0
      %1100 = vmatpush1.bf16.msra.mxu0 0
      %1101 = vmatprep.subr.bf16.mxu0 0
      %1102 = vmatpush1.bf16.msra.mxu0 0
      %1103 = vmatprep.subr.bf16.mxu0 0
      %1104 = vmatpush1.bf16.msra.mxu0 0
      %1105 = vmatprep.subr.bf16.mxu0 0
      %1106 = vmatpush1.bf16.msra.mxu0 0
      %1107 = vmatprep.subr.bf16.mxu0 0
      %1108 = vmatpush1.bf16.msra.mxu0 0
      %1109 = vmatprep.subr.bf16.mxu0 0
      %1110 = vmatpush1.bf16.msra.mxu0 0
      %1111 = vmatprep.subr.bf16.mxu0 0
      %1112 = vmatpush1.bf16.msra.mxu0 0
      %1113 = vmatprep.subr.bf16.mxu0 0
      %1114 = vmatpush1.bf16.msra.mxu0 0
      %1115 = vmatprep.subr.bf16.mxu0 0
      %1116 = vmatpush1.bf16.msra.mxu0 0
      %1117 = vmatprep.subr.bf16.mxu0 0
      %1118 = vmatpush1.bf16.msra.mxu0 0
      %1119 = vmatprep.subr.bf16.mxu0 0
      %1120 = vmatpush1.bf16.msra.mxu0 0
      %1121 = vmatprep.mubr.bf16.mxu0 0
      %1122 = vmatmul.mubr.bf16.gmra.mrb[0].mxu0 %v1087
      %v1123 = vpop.f32.mrb[0].mxu0
      %v1124 = vadd.f32 %v1075, %v1123
      %v1125 = vpop.f32.mrb[0].mxu0
      %v1126 = vpop.f32.mrb[0].mxu0
      %v1127 = vpop.f32.mrb[0].mxu0
      %1128 = vdwg.mxu0
      %v1129 = vld [vmem:[%s595] sm:$0x1]
      %v1131 = vlaneseq
      %v1132 = vshrl.u32 %v1131, 7
      %v1133 = vsub.s32 0, %v1132
      %v1134 = vrot.slane %v1129, %v1133
      %v1136 = vadd.f32 %v1124, %v1134
      %v1137 = vadd.f32 %v611, %v1136
      %v1138 = vld [vmem:[%s598] sm:$0x1]
      %v1139 = vld [vmem:[%s601] sm:$0x1]
      %v1140 = vsel %vm638, %v1137, 0.0
      %1141 = vadd.xlane.f32.xlu0 %v1140
      %v1142 = vpop.xlane.xlu0 %1141
      %v1143 = vrcp.pop 32.0
      %v1144 = vmul.f32 %v1142, %v1143
      %v1145 = vsub.f32 %v1137, %v1144
      %v1146 = vmul.f32 %v1145, %v1145
      %v1147 = vsel %vm638, %v1146, 0.0
      %1148 = vadd.xlane.f32.xlu0 %v1147
      %v1149 = vpop.xlane.xlu0 %1148
      %v1150 = vmul.f32 %v1149, %v1143
      %v1151 = vadd.f32 %v1150, 1e-05
      %v1152 = vrsqrt.pop %v1151
      %v1153 = vmul.f32 %v1145, %v1152
      %v1155 = vlaneseq
      %v1156 = vshrl.u32 %v1155, 7
      %v1157 = vsub.s32 0, %v1156
      %v1158 = vrot.slane %v1138, %v1157
      %v1160 = vmul.f32 %v1153, %v1158
      %v1162 = vlaneseq
      %v1163 = vshrl.u32 %v1162, 7
      %v1164 = vsub.s32 0, %v1163
      %v1165 = vrot.slane %v1139, %v1164
      %v1167 = vadd.f32 %v1160, %v1165
      %1168 = vst.msk [vmem:[%s609] sm:$0xff] %vm638, %v1167
      %p1169 = scmp.lt.s32.totalorder %s27, 1
      %s1170 = scalar_select %p1169, %s27, 1
      %p1171 = scmp.lt.s32.totalorder %s26, 1
      %s1172 = scalar_select %p1171, %s26, 1
      %s1173 = smul.addr %s1170, 2
      %s1174 = sadd.s32 %s1172, %s1173
      %s1175 = smul.addr %s1174, 8
      %s1176 = scalar_lea.vmem %s11, %s1175
      // Predicated region
      $region65: #{_lambda_.6} parent=63 // pred_check
        %p1177 = pneg %p346
      $region66: #{_lambda_.6} parent=63 // pred_check_branch
        %1179 = sbr.rel (%p1177) target = $region68
      $region67: #{_lambda_.6} parent=63 // pred_region
        _
      $region68: #{_lambda_.6} parent=63 // pred_fallthru
        _
    $region64: #{_lambda_.6} parent=5 // pred_fallthru
      _
    %p1180 = scmp.le.s32.totalorder 2, %s17
    // Predicated region
    $region69: #{_lambda_.6} parent=5 // pred_check
      %p1181 = pneg %p1180
    $region70: #{_lambda_.6} parent=5 // pred_check_branch
      %1183 = sbr.rel (%p1181) target = $region72
    $region71: #{_lambda_.6} parent=5 // pred_region
      %s1184 = ssub.s32 %s17, 2
      // Predicated region
      $region73: #{_lambda_.6} parent=71 // pred_check
        %p1185 = pneg %p352
      $region74: #{_lambda_.6} parent=71 // pred_check_branch
        %1187 = sbr.rel (%p1185) target = $region76
      $region75: #{_lambda_.6} parent=71 // pred_region
        %p1188 = scmp.lt.s32.totalorder %s29, 1
        %s1189 = scalar_select %p1188, %s29, 1
        %p1190 = scmp.lt.s32.totalorder %s28, 1
        %s1191 = scalar_select %p1190, %s28, 1
        %s1192 = smul.addr %s1189, 2
        %s1193 = sadd.s32 %s1191, %s1192
        %s1194 = smul.addr %s1193, 8
        %s1195 = scalar_lea.vmem %s11, %s1194
      $region76: #{_lambda_.6} parent=71 // pred_fallthru
        _
    $region72: #{_lambda_.6} parent=5 // pred_fallthru
      _
  $region6: #{_lambda_.6} parent=0 // loop_footer
    %s21 = sadd.s32 1, %s17
  $region7: #{_lambda_.6} parent=0 // loop_footer_branch
    %16 = sbr.rel target = $region3
  $region8: #{_lambda_.6} parent=0 // loop_exit
    _

// kernel: _lambda_.7
$region0: #{_lambda_.7}
  #allocation0 [shape = 'u32[]', space=smem, size = 0x4, offset = 0x4, fixed_abs, tag = 'smem constant byte address 0x4 - core index']
  #allocation1 [shape = 'u32[144,128]{1,0:T(1,128)}', space=vmem, size = 0x12000, scoped, tag = 'internal scratch']
  %s0 = inlined_call_operand.vmem [shape: f32[2,2,8,32], index: 0, kind: input, shape index: {}]
  %s1 = inlined_call_operand.vmem [shape: bf16[32,32], index: 1, kind: input, shape index: {}]
  %s2 = inlined_call_operand.vmem [shape: bf16[32,32], index: 2, kind: input, shape index: {}]
  %s3 = inlined_call_operand.vmem [shape: f32[1,32], index: 3, kind: input, shape index: {}]
  %s4 = inlined_call_operand.vmem [shape: bf16[32,32], index: 4, kind: input, shape index: {}]
  %s5 = inlined_call_operand.vmem [shape: f32[1,32], index: 5, kind: input, shape index: {}]
  %s6 = inlined_call_operand.vmem [shape: f32[2,8,32], index: 6, kind: output, shape index: {}]
  %s7 = sld [smem:[#allocation0]]
  $region57: #{_lambda_.7} parent=0
    _
  %s9 = ssub.s32 1, %s7
  %s10 = scalar_select 0, %s9, %s7
  loop: start=0, step=1, limit=4
  $region2: #{_lambda_.7} parent=0 // loop_pre_header
    _
  $region3: #{_lambda_.7} parent=0 // loop_header
    %s12 = sphi 0, %s16
    %p13 = scmp.ge.s32.totalorder %s12, 4
    %s22 = sphi 0, %s24
    %s25 = sphi 0, %s22
    %s26 = sphi 0, %s25
    %s42 = sphi 0, %s26
    %s46 = sphi 0, %s46
    %s48 = sphi 0, %s46
    %s49 = sphi 0, %s48
    %s63 = sphi 0, %s49
    %s67 = sphi 0, %s67
    %s69 = sphi 0, %s67
    %s70 = sphi 0, %s69
    %s84 = sphi 0, %s70
    %s88 = sphi 0, %s88
    %s90 = sphi 0, %s88
    %s91 = sphi 0, %s90
    %s105 = sphi 0, %s91
    %s109 = sphi 0, %s109
    %s111 = sphi 0, %s109
    %s112 = sphi 0, %s111
    %s126 = sphi 0, %s112
    %s130 = sphi 0, %s130
    %s132 = sphi 0, %s130
    %s133 = sphi 0, %s132
    %s147 = sphi 0, %s133
    %s153 = sphi 0, %s155
    %s156 = sphi 0, %s153
    %s157 = sphi 0, %s156
    %s173 = sphi 0, %s157
  $region4: #{_lambda_.7} parent=0 // loop_header_branch
    %15 = sbr.rel (%p13) target = $region8
  $region5: #{_lambda_.7} parent=0 // loop_body
    %s17 = ssub.s32 %s12, 1
    %s18 = ssub.s32 %s12, 2
    %s19 = sadd.s32 %s12, 1
    %s20 = ssub.s32 %s12, %s19
    %p21 = scmp.eq.s32.totalorder %s20, 0
    %s23 = sadd.s32 %s22, 1
    %s24 = scalar_select %p21, %s22, %s23
    %p27 = pneg %p21
    %p28 = scmp.eq.s32.totalorder %s12, 1
    %p29 = por %p27, %p28
    %p30 = scmp.ne.s32.totalorder %s22, %s25
    %p31 = scmp.eq.s32.totalorder %s12, 0
    %p32 = por %p30, %p31
    %p33 = scmp.ne.s32.totalorder %s22, %s25
    %p34 = scmp.eq.s32.totalorder %s17, 1
    %p35 = por %p33, %p34
    %p36 = scmp.ne.s32.totalorder %s25, %s26
    %p37 = scmp.eq.s32.totalorder %s17, 0
    %p38 = por %p36, %p37
    %p39 = scmp.ne.s32.totalorder %s25, %s26
    %p40 = scmp.eq.s32.totalorder %s18, 1
    %p41 = por %p39, %p40
    %p43 = scmp.ne.s32.totalorder %s26, %s42
    %p44 = scmp.eq.s32.totalorder %s18, 0
    %p45 = por %p43, %p44
    %s47 = sadd.s32 %s46, 1
    %p50 = scmp.eq.s32.totalorder %s12, 1
    %p51 = scmp.ne.s32.totalorder %s46, %s48
    %p52 = scmp.eq.s32.totalorder %s12, 0
    %p53 = por %p51, %p52
    %p54 = scmp.ne.s32.totalorder %s46, %s48
    %p55 = scmp.eq.s32.totalorder %s17, 1
    %p56 = por %p54, %p55
    %p57 = scmp.ne.s32.totalorder %s48, %s49
    %p58 = scmp.eq.s32.totalorder %s17, 0
    %p59 = por %p57, %p58
    %p60 = scmp.ne.s32.totalorder %s48, %s49
    %p61 = scmp.eq.s32.totalorder %s18, 1
    %p62 = por %p60, %p61
    %p64 = scmp.ne.s32.totalorder %s49, %s63
    %p65 = scmp.eq.s32.totalorder %s18, 0
    %p66 = por %p64, %p65
    %s68 = sadd.s32 %s67, 1
    %p71 = scmp.eq.s32.totalorder %s12, 1
    %p72 = scmp.ne.s32.totalorder %s67, %s69
    %p73 = scmp.eq.s32.totalorder %s12, 0
    %p74 = por %p72, %p73
    %p75 = scmp.ne.s32.totalorder %s67, %s69
    %p76 = scmp.eq.s32.totalorder %s17, 1
    %p77 = por %p75, %p76
    %p78 = scmp.ne.s32.totalorder %s69, %s70
    %p79 = scmp.eq.s32.totalorder %s17, 0
    %p80 = por %p78, %p79
    %p81 = scmp.ne.s32.totalorder %s69, %s70
    %p82 = scmp.eq.s32.totalorder %s18, 1
    %p83 = por %p81, %p82
    %p85 = scmp.ne.s32.totalorder %s70, %s84
    %p86 = scmp.eq.s32.totalorder %s18, 0
    %p87 = por %p85, %p86
    %s89 = sadd.s32 %s88, 1
    %p92 = scmp.eq.s32.totalorder %s12, 1
    %p93 = scmp.ne.s32.totalorder %s88, %s90
    %p94 = scmp.eq.s32.totalorder %s12, 0
    %p95 = por %p93, %p94
    %p96 = scmp.ne.s32.totalorder %s88, %s90
    %p97 = scmp.eq.s32.totalorder %s17, 1
    %p98 = por %p96, %p97
    %p99 = scmp.ne.s32.totalorder %s90, %s91
    %p100 = scmp.eq.s32.totalorder %s17, 0
    %p101 = por %p99, %p100
    %p102 = scmp.ne.s32.totalorder %s90, %s91
    %p103 = scmp.eq.s32.totalorder %s18, 1
    %p104 = por %p102, %p103
    %p106 = scmp.ne.s32.totalorder %s91, %s105
    %p107 = scmp.eq.s32.totalorder %s18, 0
    %p108 = por %p106, %p107
    %s110 = sadd.s32 %s109, 1
    %p113 = scmp.eq.s32.totalorder %s12, 1
    %p114 = scmp.ne.s32.totalorder %s109, %s111
    %p115 = scmp.eq.s32.totalorder %s12, 0
    %p116 = por %p114, %p115
    %p117 = scmp.ne.s32.totalorder %s109, %s111
    %p118 = scmp.eq.s32.totalorder %s17, 1
    %p119 = por %p117, %p118
    %p120 = scmp.ne.s32.totalorder %s111, %s112
    %p121 = scmp.eq.s32.totalorder %s17, 0
    %p122 = por %p120, %p121
    %p123 = scmp.ne.s32.totalorder %s111, %s112
    %p124 = scmp.eq.s32.totalorder %s18, 1
    %p125 = por %p123, %p124
    %p127 = scmp.ne.s32.totalorder %s112, %s126
    %p128 = scmp.eq.s32.totalorder %s18, 0
    %p129 = por %p127, %p128
    %s131 = sadd.s32 %s130, 1
    %p134 = scmp.eq.s32.totalorder %s12, 1
    %p135 = scmp.ne.s32.totalorder %s130, %s132
    %p136 = scmp.eq.s32.totalorder %s12, 0
    %p137 = por %p135, %p136
    %p138 = scmp.ne.s32.totalorder %s130, %s132
    %p139 = scmp.eq.s32.totalorder %s17, 1
    %p140 = por %p138, %p139
    %p141 = scmp.ne.s32.totalorder %s132, %s133
    %p142 = scmp.eq.s32.totalorder %s17, 0
    %p143 = por %p141, %p142
    %p144 = scmp.ne.s32.totalorder %s132, %s133
    %p145 = scmp.eq.s32.totalorder %s18, 1
    %p146 = por %p144, %p145
    %p148 = scmp.ne.s32.totalorder %s133, %s147
    %p149 = scmp.eq.s32.totalorder %s18, 0
    %p150 = por %p148, %p149
    %s151 = ssub.s32 %s12, %s19
    %p152 = scmp.eq.s32.totalorder %s151, 0
    %s154 = sadd.s32 %s153, 1
    %s155 = scalar_select %p152, %s153, %s154
    %p158 = pneg %p152
    %p159 = scmp.eq.s32.totalorder %s12, 1
    %p160 = por %p158, %p159
    %p161 = scmp.ne.s32.totalorder %s153, %s156
    %p162 = scmp.eq.s32.totalorder %s12, 0
    %p163 = por %p161, %p162
    %p164 = scmp.ne.s32.totalorder %s153, %s156
    %p165 = scmp.eq.s32.totalorder %s17, 1
    %p166 = por %p164, %p165
    %p167 = scmp.ne.s32.totalorder %s156, %s157
    %p168 = scmp.eq.s32.totalorder %s17, 0
    %p169 = por %p167, %p168
    %p170 = scmp.ne.s32.totalorder %s156, %s157
    %p171 = scmp.eq.s32.totalorder %s18, 1
    %p172 = por %p170, %p171
    %p174 = scmp.ne.s32.totalorder %s157, %s173
    %p175 = scmp.eq.s32.totalorder %s18, 0
    %p176 = por %p174, %p175
    %p177 = scmp.le.s32.totalorder 1, %s12
    %p178 = scmp.lt.s32.totalorder %s12, 3
    %p179 = pnand %p177, %p178
    %p180 = pneg %p179
    // Predicated region
    $region9: #{_lambda_.7} parent=5 // pred_check
      _
    $region10: #{_lambda_.7} parent=5 // pred_check_branch
      %182 = sbr.rel (%p179) target = $region12
    $region11: #{_lambda_.7} parent=5 // pred_region
      %s183 = ssub.s32 %s12, 1
      // Predicated region
      $region13: #{_lambda_.7} parent=11 // pred_check
        %p184 = pneg %p59
      $region14: #{_lambda_.7} parent=11 // pred_check_branch
        %186 = sbr.rel (%p184) target = $region16
      $region15: #{_lambda_.7} parent=11 // pred_region
        _
      $region16: #{_lambda_.7} parent=11 // pred_fallthru
        _
      // Predicated region
      $region17: #{_lambda_.7} parent=11 // pred_check
        %p187 = pneg %p80
      $region18: #{_lambda_.7} parent=11 // pred_check_branch
        %189 = sbr.rel (%p187) target = $region20
      $region19: #{_lambda_.7} parent=11 // pred_region
        _
      $region20: #{_lambda_.7} parent=11 // pred_fallthru
        _
      // Predicated region
      $region21: #{_lambda_.7} parent=11 // pred_check
        %p190 = pneg %p101
      $region22: #{_lambda_.7} parent=11 // pred_check_branch
        %192 = sbr.rel (%p190) target = $region24
      $region23: #{_lambda_.7} parent=11 // pred_region
        _
      $region24: #{_lambda_.7} parent=11 // pred_fallthru
        _
      // Predicated region
      $region25: #{_lambda_.7} parent=11 // pred_check
        %p193 = pneg %p122
      $region26: #{_lambda_.7} parent=11 // pred_check_branch
        %195 = sbr.rel (%p193) target = $region28
      $region27: #{_lambda_.7} parent=11 // pred_region
        _
      $region28: #{_lambda_.7} parent=11 // pred_fallthru
        _
      // Predicated region
      $region29: #{_lambda_.7} parent=11 // pred_check
        %p196 = pneg %p143
      $region30: #{_lambda_.7} parent=11 // pred_check_branch
        %198 = sbr.rel (%p196) target = $region32
      $region31: #{_lambda_.7} parent=11 // pred_region
        _
      $region32: #{_lambda_.7} parent=11 // pred_fallthru
        _
    $region12: #{_lambda_.7} parent=5 // pred_fallthru
      _
    %p199 = scmp.lt.s32.totalorder %s12, 2
    // Predicated region
    $region33: #{_lambda_.7} parent=5 // pred_check
      %p200 = pneg %p199
    $region34: #{_lambda_.7} parent=5 // pred_check_branch
      %202 = sbr.rel (%p200) target = $region36
    $region35: #{_lambda_.7} parent=5 // pred_region
      // Predicated region
      $region37: #{_lambda_.7} parent=35 // pred_check
        %p203 = pneg %p32
      $region38: #{_lambda_.7} parent=35 // pred_check_branch
        %205 = sbr.rel (%p203) target = $region40
      $region39: #{_lambda_.7} parent=35 // pred_region
        %p206 = scmp.lt.s32.totalorder %s12, 1
        %s207 = scalar_select %p206, %s12, 1
        %s208 = smul.addr %s207, 2
        %s209 = smul.addr %s208, 8
        %s210 = scalar_lea.vmem %s0, %s209
      $region40: #{_lambda_.7} parent=35 // pred_fallthru
        _
    $region36: #{_lambda_.7} parent=5 // pred_fallthru
      _
    %p211 = scmp.le.s32.totalorder 1, %s12
    %p212 = scmp.lt.s32.totalorder %s12, 3
    %p213 = pnand %p211, %p212
    %p214 = pneg %p213
    // Predicated region
    $region41: #{_lambda_.7} parent=5 // pred_check
      _
    $region42: #{_lambda_.7} parent=5 // pred_check_branch
      %216 = sbr.rel (%p213) target = $region44
    $region43: #{_lambda_.7} parent=5 // pred_region
      %s217 = ssub.s32 %s12, 1
      %p218 = scmp.lt.s32.totalorder %s17, 1
      %s219 = scalar_select %p218, %s17, 1
      %s220 = smul.addr %s219, 2
      %s221 = smul.addr %s220, 8
      %s222 = scalar_lea.vmem %s0, %s221
      %p223 = pneg %p38
      %p224 = pneg %p35
      %p225 = pneg %p59
      %p226 = pneg %p56
      %p227 = pneg %p80
      %p228 = pneg %p77
      %p229 = pneg %p101
      %p230 = pneg %p98
      %p231 = pneg %p122
      %p232 = pneg %p119
      %p233 = pneg %p143
      %p234 = pneg %p140
      %p235 = pneg %p169
      %p236 = pneg %p166
      %p237 = scmp.lt.s32.totalorder %s17, 1
      %s238 = scalar_select %p237, %s17, 1
      %s239 = smul.addr %s238, 8
      %s240 = scalar_lea.vmem %s6, %s239
      %p241 = scmp.lt.s32.totalorder %s17, 1
      %s242 = scalar_select %p241, %s17, 1
      %s243 = smul.addr %s242, 2
      %s244 = smul.addr %s243, 8
      %s245 = scalar_lea.vmem %s0, %s244
      %p246 = scmp.lt.s32.totalorder %s17, 1
      %s247 = scalar_select %p246, %s17, 1
      %s248 = smul.addr %s247, 8
      %s249 = scalar_lea.vmem %s6, %s248
      %v251 = vld [vmem:[%s245] sm:$0xff]
      %s252 = scalar_lea.vmem %s245, 8
      %v253 = vld [vmem:[%s252] sm:$0xff]
      %v254 = vld [vmem:[%s1] sm:$0xf]
      %v255 = vld [vmem:[%s1 + $0x4] sm:$0xf]
      %v256 = vld [vmem:[%s1 + $0x8] sm:$0xf]
      %v257 = vld [vmem:[%s1 + $0xc] sm:$0xf]
      %v258 = vpack.c.bf16 %v251, %v251
      %v259 = vld [vmem:[%s2] sm:$0xf]
      %v260 = vld [vmem:[%s2 + $0x4] sm:$0xf]
      %v261 = vld [vmem:[%s2 + $0x8] sm:$0xf]
      %v262 = vld [vmem:[%s2 + $0xc] sm:$0xf]
      %v263 = vpack.c.bf16 %v253, %v253
      %v268 = vunpack.c.l.b16 %v259
      %v269 = vunpack.c.l.b16 %v260
      %v270 = vunpack.c.l.b16 %v261
      %v271 = vunpack.c.l.b16 %v262
      %v272 = vpack.c.b16 %v269, %v268
      %v273 = vpack.c.b16 %v271, %v270
      %vm276 = vcmask 261120
      %v278 = vsel %vm276, %v263, 0
      %280 = vmatprep.subr.bf16.mxu0 0
      %281 = vmatpush1.bf16.msra.mxu0 %v272
      %282 = vmatprep.subr.bf16.mxu0 0
      %283 = vmatpush1.bf16.msra.mxu0 %v273
      %284 = vmatprep.subr.bf16.mxu0 0
      %285 = vmatpush1.bf16.msra.mxu0 0
      %286 = vmatprep.subr.bf16.mxu0 0
      %287 = vmatpush1.bf16.msra.mxu0 0
      %288 = vmatprep.subr.bf16.mxu0 0
      %289 = vmatpush1.bf16.msra.mxu0 0
      %290 = vmatprep.subr.bf16.mxu0 0
      %291 = vmatpush1.bf16.msra.mxu0 0
      %292 = vmatprep.subr.bf16.mxu0 0
      %293 = vmatpush1.bf16.msra.mxu0 0
      %294 = vmatprep.subr.bf16.mxu0 0
      %295 = vmatpush1.bf16.msra.mxu0 0
      %296 = vmatprep.subr.bf16.mxu0 0
      %297 = vmatpush1.bf16.msra.mxu0 0
      %298 = vmatprep.subr.bf16.mxu0 0
      %299 = vmatpush1.bf16.msra.mxu0 0
      %300 = vmatprep.subr.bf16.mxu0 0
      %301 = vmatpush1.bf16.msra.mxu0 0
      %302 = vmatprep.subr.bf16.mxu0 0
      %303 = vmatpush1.bf16.msra.mxu0 0
      %304 = vmatprep.subr.bf16.mxu0 0
      %305 = vmatpush1.bf16.msra.mxu0 0
      %306 = vmatprep.subr.bf16.mxu0 0
      %307 = vmatpush1.bf16.msra.mxu0 0
      %308 = vmatprep.subr.bf16.mxu0 0
      %309 = vmatpush1.bf16.msra.mxu0 0
      %310 = vmatprep.subr.bf16.mxu0 0
      %311 = vmatpush1.bf16.msra.mxu0 0
      %312 = vmatprep.mubr.bf16.mxu0 0
      %313 = vmatmul.mubr.bf16.gmra.mrb[0].mxu0 %v278
      %v314 = vpop.f32.mrb[0].mxu0
      %v315 = vadd.f32 0.0, %v314
      %v316 = vpop.f32.mrb[0].mxu0
      %v317 = vpop.f32.mrb[0].mxu0
      %v318 = vpop.f32.mrb[0].mxu0
      %319 = vdwg.mxu0
      %v324 = vunpack.c.l.b16 %v254
      %v325 = vunpack.c.l.b16 %v255
      %v326 = vunpack.c.l.b16 %v256
      %v327 = vunpack.c.l.b16 %v257
      %v328 = vpack.c.b16 %v325, %v324
      %v329 = vpack.c.b16 %v327, %v326
      %v333 = vsel %vm276, %v258, 0
      %335 = vmatprep.subr.bf16.mxu0 0
      %336 = vmatpush1.bf16.msra.mxu0 %v328
      %337 = vmatprep.subr.bf16.mxu0 0
      %338 = vmatpush1.bf16.msra.mxu0 %v329
      %339 = vmatprep.subr.bf16.mxu0 0
      %340 = vmatpush1.bf16.msra.mxu0 0
      %341 = vmatprep.subr.bf16.mxu0 0
      %342 = vmatpush1.bf16.msra.mxu0 0
      %343 = vmatprep.subr.bf16.mxu0 0
      %344 = vmatpush1.bf16.msra.mxu0 0
      %345 = vmatprep.subr.bf16.mxu0 0
      %346 = vmatpush1.bf16.msra.mxu0 0
      %347 = vmatprep.subr.bf16.mxu0 0
      %348 = vmatpush1.bf16.msra.mxu0 0
      %349 = vmatprep.subr.bf16.mxu0 0
      %350 = vmatpush1.bf16.msra.mxu0 0
      %351 = vmatprep.subr.bf16.mxu0 0
      %352 = vmatpush1.bf16.msra.mxu0 0
      %353 = vmatprep.subr.bf16.mxu0 0
      %354 = vmatpush1.bf16.msra.mxu0 0
      %355 = vmatprep.subr.bf16.mxu0 0
      %356 = vmatpush1.bf16.msra.mxu0 0
      %357 = vmatprep.subr.bf16.mxu0 0
      %358 = vmatpush1.bf16.msra.mxu0 0
      %359 = vmatprep.subr.bf16.mxu0 0
      %360 = vmatpush1.bf16.msra.mxu0 0
      %361 = vmatprep.subr.bf16.mxu0 0
      %362 = vmatpush1.bf16.msra.mxu0 0
      %363 = vmatprep.subr.bf16.mxu0 0
      %364 = vmatpush1.bf16.msra.mxu0 0
      %365 = vmatprep.subr.bf16.mxu0 0
      %366 = vmatpush1.bf16.msra.mxu0 0
      %367 = vmatprep.mubr.bf16.mxu0 0
      %368 = vmatmul.mubr.bf16.gmra.mrb[0].mxu0 %v333
      %v369 = vpop.f32.mrb[0].mxu0
      %v370 = vadd.f32 %v315, %v369
      %v371 = vpop.f32.mrb[0].mxu0
      %v372 = vpop.f32.mrb[0].mxu0
      %v373 = vpop.f32.mrb[0].mxu0
      %374 = vdwg.mxu0
      %v375 = vld [vmem:[%s3] sm:$0x1]
      %v377 = vlaneseq
      %v378 = vshrl.u32 %v377, 7
      %v379 = vsub.s32 0, %v378
      %v380 = vrot.slane %v375, %v379
      %v382 = vadd.f32 %v370, %v380
      %v383 = vmax.f32 %v382, 0.0
      %v384 = vld [vmem:[%s4] sm:$0xf]
      %v385 = vld [vmem:[%s4 + $0x4] sm:$0xf]
      %v386 = vld [vmem:[%s4 + $0x8] sm:$0xf]
      %v387 = vld [vmem:[%s4 + $0xc] sm:$0xf]
      %v388 = vpack.c.bf16 %v383, %v383
      %v389 = vld [vmem:[%s5] sm:$0x1]
      %v391 = vlaneseq
      %v392 = vshrl.u32 %v391, 7
      %v393 = vsub.s32 0, %v392
      %v394 = vrot.slane %v389, %v393
      %v400 = vunpack.c.l.b16 %v384
      %v401 = vunpack.c.l.b16 %v385
      %v402 = vunpack.c.l.b16 %v386
      %v403 = vunpack.c.l.b16 %v387
      %v404 = vpack.c.b16 %v401, %v400
      %v405 = vpack.c.b16 %v403, %v402
      %v409 = vsel %vm276, %v388, 0
      %411 = vmatprep.subr.bf16.mxu0 0
      %412 = vmatpush1.bf16.msra.mxu0 %v404
      %413 = vmatprep.subr.bf16.mxu0 0
      %414 = vmatpush1.bf16.msra.mxu0 %v405
      %415 = vmatprep.subr.bf16.mxu0 0
      %416 = vmatpush1.bf16.msra.mxu0 0
      %417 = vmatprep.subr.bf16.mxu0 0
      %418 = vmatpush1.bf16.msra.mxu0 0
      %419 = vmatprep.subr.bf16.mxu0 0
      %420 = vmatpush1.bf16.msra.mxu0 0
      %421 = vmatprep.subr.bf16.mxu0 0
      %422 = vmatpush1.bf16.msra.mxu0 0
      %423 = vmatprep.subr.bf16.mxu0 0
      %424 = vmatpush1.bf16.msra.mxu0 0
      %425 = vmatprep.subr.bf16.mxu0 0
      %426 = vmatpush1.bf16.msra.mxu0 0
      %427 = vmatprep.subr.bf16.mxu0 0
      %428 = vmatpush1.bf16.msra.mxu0 0
      %429 = vmatprep.subr.bf16.mxu0 0
      %430 = vmatpush1.bf16.msra.mxu0 0
      %431 = vmatprep.subr.bf16.mxu0 0
      %432 = vmatpush1.bf16.msra.mxu0 0
      %433 = vmatprep.subr.bf16.mxu0 0
      %434 = vmatpush1.bf16.msra.mxu0 0
      %435 = vmatprep.subr.bf16.mxu0 0
      %436 = vmatpush1.bf16.msra.mxu0 0
      %437 = vmatprep.subr.bf16.mxu0 0
      %438 = vmatpush1.bf16.msra.mxu0 0
      %439 = vmatprep.subr.bf16.mxu0 0
      %440 = vmatpush1.bf16.msra.mxu0 0
      %441 = vmatprep.subr.bf16.mxu0 0
      %442 = vmatpush1.bf16.msra.mxu0 0
      %443 = vmatprep.mubr.bf16.mxu0 0
      %444 = vmatmul.mubr.bf16.gmra.mrb[0].mxu0 %v409
      %v445 = vpop.f32.mrb[0].mxu0
      %v446 = vadd.f32 %v394, %v445
      %v447 = vpop.f32.mrb[0].mxu0
      %v448 = vpop.f32.mrb[0].mxu0
      %v449 = vpop.f32.mrb[0].mxu0
      %450 = vdwg.mxu0
      %451 = vst.msk [vmem:[%s249] sm:$0xff] %vm276, %v446
      %p452 = scmp.lt.s32.totalorder %s17, 1
      %s453 = scalar_select %p452, %s17, 1
      %s454 = smul.addr %s453, 8
      %s455 = scalar_lea.vmem %s6, %s454
      // Predicated region
      $region45: #{_lambda_.7} parent=43 // pred_check
        %p456 = pneg %p166
      $region46: #{_lambda_.7} parent=43 // pred_check_branch
        %458 = sbr.rel (%p456) target = $region48
      $region47: #{_lambda_.7} parent=43 // pred_region
        _
      $region48: #{_lambda_.7} parent=43 // pred_fallthru
        _
    $region44: #{_lambda_.7} parent=5 // pred_fallthru
      _
    %p459 = scmp.le.s32.totalorder 2, %s12
    // Predicated region
    $region49: #{_lambda_.7} parent=5 // pred_check
      %p460 = pneg %p459
    $region50: #{_lambda_.7} parent=5 // pred_check_branch
      %462 = sbr.rel (%p460) target = $region52
    $region51: #{_lambda_.7} parent=5 // pred_region
      %s463 = ssub.s32 %s12, 2
      // Predicated region
      $region53: #{_lambda_.7} parent=51 // pred_check
        %p464 = pneg %p172
      $region54: #{_lambda_.7} parent=51 // pred_check_branch
        %466 = sbr.rel (%p464) target = $region56
      $region55: #{_lambda_.7} parent=51 // pred_region
        %p467 = scmp.lt.s32.totalorder %s18, 1
        %s468 = scalar_select %p467, %s18, 1
        %s469 = smul.addr %s468, 8
        %s470 = scalar_lea.vmem %s6, %s469
      $region56: #{_lambda_.7} parent=51 // pred_fallthru
        _
    $region52: #{_lambda_.7} parent=5 // pred_fallthru
      _
  $region6: #{_lambda_.7} parent=0 // loop_footer
    %s16 = sadd.s32 1, %s12
  $region7: #{_lambda_.7} parent=0 // loop_footer_branch
    %11 = sbr.rel target = $region3
  $region8: #{_lambda_.7} parent=0 // loop_exit
    _

// kernel: _lambda_.11
$region0: #{_lambda_.11}
  #allocation0 [shape = 'u32[]', space=smem, size = 0x4, offset = 0x4, fixed_abs, tag = 'smem constant byte address 0x4 - core index']
  #allocation1 [shape = 'u32[144,128]{1,0:T(1,128)}', space=vmem, size = 0x12000, scoped, tag = 'internal scratch']
  %s0 = inlined_call_operand.vmem [shape: f32[2,2,8,32], index: 0, kind: input, shape index: {}]
  %s1 = inlined_call_operand.vmem [shape: f32[2,2], index: 1, kind: input, shape index: {}]
  %s2 = inlined_call_operand.vmem [shape: f32[1,2], index: 2, kind: input, shape index: {}]
  %s3 = inlined_call_operand.vmem [shape: f32[2,2], index: 3, kind: input, shape index: {}]
  %s4 = inlined_call_operand.vmem [shape: f32[2,1], index: 4, kind: input, shape index: {}]
  %s5 = inlined_call_operand.vmem [shape: bf16[32,16], index: 5, kind: input, shape index: {}]
  %s6 = inlined_call_operand.vmem [shape: f32[1,16], index: 6, kind: input, shape index: {}]
  %s7 = inlined_call_operand.vmem [shape: bf16[16,128], index: 7, kind: input, shape index: {}]
  %s8 = inlined_call_operand.vmem [shape: f32[1,128], index: 8, kind: input, shape index: {}]
  %s9 = inlined_call_operand.hbm [shape: f32[2,8,128], index: 9, kind: output, shape index: {}]
  %s10 = sld [smem:[#allocation0]]
  $region69: #{_lambda_.11} parent=0
    _
  %s12 = ssub.s32 1, %s10
  %s13 = scalar_select 0, %s12, %s10
  $region1: #{_lambda_.11} parent=0
    #allocation2 [shape = 'u8[8192]{0}', space=vmem, size = 0x2000, scoped, tag = 'output window, operand 0']
    #allocation3 [shape = 's32[2]{0}', space=sflag, size = 0x8, scoped, tag = 'scoped memory for _lambda_.11']
    %14 = vsyncpa [#allocation3], 0
    %s15 = scalar_lea.sflag [#allocation3], 1
    %16 = vsyncpa %s15, 0
    loop: start=0, step=1, limit=4
    $region2: #{_lambda_.11} parent=1 // loop_pre_header
      _
    $region3: #{_lambda_.11} parent=1 // loop_header
      %s18 = sphi 0, %s22
      %p19 = scmp.ge.s32.totalorder %s18, 4
      %s28 = sphi 0, %s30
      %s31 = sphi 0, %s28
      %s32 = sphi 0, %s31
      %s48 = sphi 0, %s32
      %s52 = sphi 0, %s52
      %s54 = sphi 0, %s52
      %s55 = sphi 0, %s54
      %s69 = sphi 0, %s55
      %s73 = sphi 0, %s73
      %s75 = sphi 0, %s73
      %s76 = sphi 0, %s75
      %s90 = sphi 0, %s76
      %s94 = sphi 0, %s94
      %s96 = sphi 0, %s94
      %s97 = sphi 0, %s96
      %s111 = sphi 0, %s97
      %s115 = sphi 0, %s115
      %s117 = sphi 0, %s115
      %s118 = sphi 0, %s117
      %s132 = sphi 0, %s118
      %s136 = sphi 0, %s136
      %s138 = sphi 0, %s136
      %s139 = sphi 0, %s138
      %s153 = sphi 0, %s139
      %s157 = sphi 0, %s157
      %s159 = sphi 0, %s157
      %s160 = sphi 0, %s159
      %s174 = sphi 0, %s160
      %s178 = sphi 0, %s178
      %s180 = sphi 0, %s178
      %s181 = sphi 0, %s180
      %s195 = sphi 0, %s181
      %s199 = sphi 0, %s199
      %s201 = sphi 0, %s199
      %s202 = sphi 0, %s201
      %s216 = sphi 0, %s202
      %s222 = sphi 0, %s224
      %s225 = sphi 0, %s222
      %s226 = sphi 0, %s225
      %s242 = sphi 0, %s226
    $region4: #{_lambda_.11} parent=1 // loop_header_branch
      %21 = sbr.rel (%p19) target = $region8
    $region5: #{_lambda_.11} parent=1 // loop_body
      %s23 = ssub.s32 %s18, 1
      %s24 = ssub.s32 %s18, 2
      %s25 = sadd.s32 %s18, 1
      %s26 = ssub.s32 %s18, %s25
      %p27 = scmp.eq.s32.totalorder %s26, 0
      %s29 = sadd.s32 %s28, 1
      %s30 = scalar_select %p27, %s28, %s29
      %p33 = pneg %p27
      %p34 = scmp.eq.s32.totalorder %s18, 1
      %p35 = por %p33, %p34
      %p36 = scmp.ne.s32.totalorder %s28, %s31
      %p37 = scmp.eq.s32.totalorder %s18, 0
      %p38 = por %p36, %p37
      %p39 = scmp.ne.s32.totalorder %s28, %s31
      %p40 = scmp.eq.s32.totalorder %s23, 1
      %p41 = por %p39, %p40
      %p42 = scmp.ne.s32.totalorder %s31, %s32
      %p43 = scmp.eq.s32.totalorder %s23, 0
      %p44 = por %p42, %p43
      %p45 = scmp.ne.s32.totalorder %s31, %s32
      %p46 = scmp.eq.s32.totalorder %s24, 1
      %p47 = por %p45, %p46
      %p49 = scmp.ne.s32.totalorder %s32, %s48
      %p50 = scmp.eq.s32.totalorder %s24, 0
      %p51 = por %p49, %p50
      %s53 = sadd.s32 %s52, 1
      %p56 = scmp.eq.s32.totalorder %s18, 1
      %p57 = scmp.ne.s32.totalorder %s52, %s54
      %p58 = scmp.eq.s32.totalorder %s18, 0
      %p59 = por %p57, %p58
      %p60 = scmp.ne.s32.totalorder %s52, %s54
      %p61 = scmp.eq.s32.totalorder %s23, 1
      %p62 = por %p60, %p61
      %p63 = scmp.ne.s32.totalorder %s54, %s55
      %p64 = scmp.eq.s32.totalorder %s23, 0
      %p65 = por %p63, %p64
      %p66 = scmp.ne.s32.totalorder %s54, %s55
      %p67 = scmp.eq.s32.totalorder %s24, 1
      %p68 = por %p66, %p67
      %p70 = scmp.ne.s32.totalorder %s55, %s69
      %p71 = scmp.eq.s32.totalorder %s24, 0
      %p72 = por %p70, %p71
      %s74 = sadd.s32 %s73, 1
      %p77 = scmp.eq.s32.totalorder %s18, 1
      %p78 = scmp.ne.s32.totalorder %s73, %s75
      %p79 = scmp.eq.s32.totalorder %s18, 0
      %p80 = por %p78, %p79
      %p81 = scmp.ne.s32.totalorder %s73, %s75
      %p82 = scmp.eq.s32.totalorder %s23, 1
      %p83 = por %p81, %p82
      %p84 = scmp.ne.s32.totalorder %s75, %s76
      %p85 = scmp.eq.s32.totalorder %s23, 0
      %p86 = por %p84, %p85
      %p87 = scmp.ne.s32.totalorder %s75, %s76
      %p88 = scmp.eq.s32.totalorder %s24, 1
      %p89 = por %p87, %p88
      %p91 = scmp.ne.s32.totalorder %s76, %s90
      %p92 = scmp.eq.s32.totalorder %s24, 0
      %p93 = por %p91, %p92
      %s95 = sadd.s32 %s94, 1
      %p98 = scmp.eq.s32.totalorder %s18, 1
      %p99 = scmp.ne.s32.totalorder %s94, %s96
      %p100 = scmp.eq.s32.totalorder %s18, 0
      %p101 = por %p99, %p100
      %p102 = scmp.ne.s32.totalorder %s94, %s96
      %p103 = scmp.eq.s32.totalorder %s23, 1
      %p104 = por %p102, %p103
      %p105 = scmp.ne.s32.totalorder %s96, %s97
      %p106 = scmp.eq.s32.totalorder %s23, 0
      %p107 = por %p105, %p106
      %p108 = scmp.ne.s32.totalorder %s96, %s97
      %p109 = scmp.eq.s32.totalorder %s24, 1
      %p110 = por %p108, %p109
      %p112 = scmp.ne.s32.totalorder %s97, %s111
      %p113 = scmp.eq.s32.totalorder %s24, 0
      %p114 = por %p112, %p113
      %s116 = sadd.s32 %s115, 1
      %p119 = scmp.eq.s32.totalorder %s18, 1
      %p120 = scmp.ne.s32.totalorder %s115, %s117
      %p121 = scmp.eq.s32.totalorder %s18, 0
      %p122 = por %p120, %p121
      %p123 = scmp.ne.s32.totalorder %s115, %s117
      %p124 = scmp.eq.s32.totalorder %s23, 1
      %p125 = por %p123, %p124
      %p126 = scmp.ne.s32.totalorder %s117, %s118
      %p127 = scmp.eq.s32.totalorder %s23, 0
      %p128 = por %p126, %p127
      %p129 = scmp.ne.s32.totalorder %s117, %s118
      %p130 = scmp.eq.s32.totalorder %s24, 1
      %p131 = por %p129, %p130
      %p133 = scmp.ne.s32.totalorder %s118, %s132
      %p134 = scmp.eq.s32.totalorder %s24, 0
      %p135 = por %p133, %p134
      %s137 = sadd.s32 %s136, 1
      %p140 = scmp.eq.s32.totalorder %s18, 1
      %p141 = scmp.ne.s32.totalorder %s136, %s138
      %p142 = scmp.eq.s32.totalorder %s18, 0
      %p143 = por %p141, %p142
      %p144 = scmp.ne.s32.totalorder %s136, %s138
      %p145 = scmp.eq.s32.totalorder %s23, 1
      %p146 = por %p144, %p145
      %p147 = scmp.ne.s32.totalorder %s138, %s139
      %p148 = scmp.eq.s32.totalorder %s23, 0
      %p149 = por %p147, %p148
      %p150 = scmp.ne.s32.totalorder %s138, %s139
      %p151 = scmp.eq.s32.totalorder %s24, 1
      %p152 = por %p150, %p151
      %p154 = scmp.ne.s32.totalorder %s139, %s153
      %p155 = scmp.eq.s32.totalorder %s24, 0
      %p156 = por %p154, %p155
      %s158 = sadd.s32 %s157, 1
      %p161 = scmp.eq.s32.totalorder %s18, 1
      %p162 = scmp.ne.s32.totalorder %s157, %s159
      %p163 = scmp.eq.s32.totalorder %s18, 0
      %p164 = por %p162, %p163
      %p165 = scmp.ne.s32.totalorder %s157, %s159
      %p166 = scmp.eq.s32.totalorder %s23, 1
      %p167 = por %p165, %p166
      %p168 = scmp.ne.s32.totalorder %s159, %s160
      %p169 = scmp.eq.s32.totalorder %s23, 0
      %p170 = por %p168, %p169
      %p171 = scmp.ne.s32.totalorder %s159, %s160
      %p172 = scmp.eq.s32.totalorder %s24, 1
      %p173 = por %p171, %p172
      %p175 = scmp.ne.s32.totalorder %s160, %s174
      %p176 = scmp.eq.s32.totalorder %s24, 0
      %p177 = por %p175, %p176
      %s179 = sadd.s32 %s178, 1
      %p182 = scmp.eq.s32.totalorder %s18, 1
      %p183 = scmp.ne.s32.totalorder %s178, %s180
      %p184 = scmp.eq.s32.totalorder %s18, 0
      %p185 = por %p183, %p184
      %p186 = scmp.ne.s32.totalorder %s178, %s180
      %p187 = scmp.eq.s32.totalorder %s23, 1
      %p188 = por %p186, %p187
      %p189 = scmp.ne.s32.totalorder %s180, %s181
      %p190 = scmp.eq.s32.totalorder %s23, 0
      %p191 = por %p189, %p190
      %p192 = scmp.ne.s32.totalorder %s180, %s181
      %p193 = scmp.eq.s32.totalorder %s24, 1
      %p194 = por %p192, %p193
      %p196 = scmp.ne.s32.totalorder %s181, %s195
      %p197 = scmp.eq.s32.totalorder %s24, 0
      %p198 = por %p196, %p197
      %s200 = sadd.s32 %s199, 1
      %p203 = scmp.eq.s32.totalorder %s18, 1
      %p204 = scmp.ne.s32.totalorder %s199, %s201
      %p205 = scmp.eq.s32.totalorder %s18, 0
      %p206 = por %p204, %p205
      %p207 = scmp.ne.s32.totalorder %s199, %s201
      %p208 = scmp.eq.s32.totalorder %s23, 1
      %p209 = por %p207, %p208
      %p210 = scmp.ne.s32.totalorder %s201, %s202
      %p211 = scmp.eq.s32.totalorder %s23, 0
      %p212 = por %p210, %p211
      %p213 = scmp.ne.s32.totalorder %s201, %s202
      %p214 = scmp.eq.s32.totalorder %s24, 1
      %p215 = por %p213, %p214
      %p217 = scmp.ne.s32.totalorder %s202, %s216
      %p218 = scmp.eq.s32.totalorder %s24, 0
      %p219 = por %p217, %p218
      %s220 = ssub.s32 %s18, %s25
      %p221 = scmp.eq.s32.totalorder %s220, 0
      %s223 = sadd.s32 %s222, 1
      %s224 = scalar_select %p221, %s222, %s223
      %p227 = pneg %p221
      %p228 = scmp.eq.s32.totalorder %s18, 1
      %p229 = por %p227, %p228
      %p230 = scmp.ne.s32.totalorder %s222, %s225
      %p231 = scmp.eq.s32.totalorder %s18, 0
      %p232 = por %p230, %p231
      %p233 = scmp.ne.s32.totalorder %s222, %s225
      %p234 = scmp.eq.s32.totalorder %s23, 1
      %p235 = por %p233, %p234
      %p236 = scmp.ne.s32.totalorder %s225, %s226
      %p237 = scmp.eq.s32.totalorder %s23, 0
      %p238 = por %p236, %p237
      %p239 = scmp.ne.s32.totalorder %s225, %s226
      %p240 = scmp.eq.s32.totalorder %s24, 1
      %p241 = por %p239, %p240
      %p243 = scmp.ne.s32.totalorder %s226, %s242
      %p244 = scmp.eq.s32.totalorder %s24, 0
      %p245 = por %p243, %p244
      %p246 = scmp.le.s32.totalorder 1, %s18
      %p247 = scmp.lt.s32.totalorder %s18, 3
      %p248 = pnand %p246, %p247
      %p249 = pneg %p248
      // Predicated region
      $region9: #{_lambda_.11} parent=5 // pred_check
        _
      $region10: #{_lambda_.11} parent=5 // pred_check_branch
        %251 = sbr.rel (%p248) target = $region12
      $region11: #{_lambda_.11} parent=5 // pred_region
        %s252 = ssub.s32 %s18, 1
        // Predicated region
        $region13: #{_lambda_.11} parent=11 // pred_check
          %p253 = pneg %p65
        $region14: #{_lambda_.11} parent=11 // pred_check_branch
          %255 = sbr.rel (%p253) target = $region16
        $region15: #{_lambda_.11} parent=11 // pred_region
          _
        $region16: #{_lambda_.11} parent=11 // pred_fallthru
          _
        // Predicated region
        $region17: #{_lambda_.11} parent=11 // pred_check
          %p256 = pneg %p86
        $region18: #{_lambda_.11} parent=11 // pred_check_branch
          %258 = sbr.rel (%p256) target = $region20
        $region19: #{_lambda_.11} parent=11 // pred_region
          _
        $region20: #{_lambda_.11} parent=11 // pred_fallthru
          _
        // Predicated region
        $region21: #{_lambda_.11} parent=11 // pred_check
          %p259 = pneg %p107
        $region22: #{_lambda_.11} parent=11 // pred_check_branch
          %261 = sbr.rel (%p259) target = $region24
        $region23: #{_lambda_.11} parent=11 // pred_region
          _
        $region24: #{_lambda_.11} parent=11 // pred_fallthru
          _
        // Predicated region
        $region25: #{_lambda_.11} parent=11 // pred_check
          %p262 = pneg %p128
        $region26: #{_lambda_.11} parent=11 // pred_check_branch
          %264 = sbr.rel (%p262) target = $region28
        $region27: #{_lambda_.11} parent=11 // pred_region
          _
        $region28: #{_lambda_.11} parent=11 // pred_fallthru
          _
        // Predicated region
        $region29: #{_lambda_.11} parent=11 // pred_check
          %p265 = pneg %p149
        $region30: #{_lambda_.11} parent=11 // pred_check_branch
          %267 = sbr.rel (%p265) target = $region32
        $region31: #{_lambda_.11} parent=11 // pred_region
          _
        $region32: #{_lambda_.11} parent=11 // pred_fallthru
          _
        // Predicated region
        $region33: #{_lambda_.11} parent=11 // pred_check
          %p268 = pneg %p170
        $region34: #{_lambda_.11} parent=11 // pred_check_branch
          %270 = sbr.rel (%p268) target = $region36
        $region35: #{_lambda_.11} parent=11 // pred_region
          _
        $region36: #{_lambda_.11} parent=11 // pred_fallthru
          _
        // Predicated region
        $region37: #{_lambda_.11} parent=11 // pred_check
          %p271 = pneg %p191
        $region38: #{_lambda_.11} parent=11 // pred_check_branch
          %273 = sbr.rel (%p271) target = $region40
        $region39: #{_lambda_.11} parent=11 // pred_region
          _
        $region40: #{_lambda_.11} parent=11 // pred_fallthru
          _
        // Predicated region
        $region41: #{_lambda_.11} parent=11 // pred_check
          %p274 = pneg %p212
        $region42: #{_lambda_.11} parent=11 // pred_check_branch
          %276 = sbr.rel (%p274) target = $region44
        $region43: #{_lambda_.11} parent=11 // pred_region
          _
        $region44: #{_lambda_.11} parent=11 // pred_fallthru
          _
      $region12: #{_lambda_.11} parent=5 // pred_fallthru
        _
      %p277 = scmp.lt.s32.totalorder %s18, 2
      // Predicated region
      $region45: #{_lambda_.11} parent=5 // pred_check
        %p278 = pneg %p277
      $region46: #{_lambda_.11} parent=5 // pred_check_branch
        %280 = sbr.rel (%p278) target = $region48
      $region47: #{_lambda_.11} parent=5 // pred_region
        // Predicated region
        $region49: #{_lambda_.11} parent=47 // pred_check
          %p281 = pneg %p38
        $region50: #{_lambda_.11} parent=47 // pred_check_branch
          %283 = sbr.rel (%p281) target = $region52
        $region51: #{_lambda_.11} parent=47 // pred_region
          %p284 = scmp.lt.s32.totalorder %s18, 1
          %s285 = scalar_select %p284, %s18, 1
          %s286 = smul.addr %s285, 2
          %s287 = smul.addr %s286, 8
          %s288 = scalar_lea.vmem %s0, %s287
        $region52: #{_lambda_.11} parent=47 // pred_fallthru
          _
      $region48: #{_lambda_.11} parent=5 // pred_fallthru
        _
      %p289 = scmp.le.s32.totalorder 1, %s18
      %p290 = scmp.lt.s32.totalorder %s18, 3
      %p291 = pnand %p289, %p290
      %p292 = pneg %p291
      // Predicated region
      $region53: #{_lambda_.11} parent=5 // pred_check
        _
      $region54: #{_lambda_.11} parent=5 // pred_check_branch
        %294 = sbr.rel (%p291) target = $region56
      $region55: #{_lambda_.11} parent=5 // pred_region
        %s295 = ssub.s32 %s18, 1
        %p296 = scmp.lt.s32.totalorder %s23, 1
        %s297 = scalar_select %p296, %s23, 1
        %s298 = smul.addr %s297, 2
        %s299 = smul.addr %s298, 8
        %s300 = scalar_lea.vmem %s0, %s299
        %p301 = pneg %p44
        %p302 = pneg %p41
        %p303 = pneg %p65
        %p304 = pneg %p62
        %p305 = pneg %p86
        %p306 = pneg %p83
        %p307 = pneg %p107
        %p308 = pneg %p104
        %p309 = pneg %p128
        %p310 = pneg %p125
        %p311 = pneg %p149
        %p312 = pneg %p146
        %p313 = pneg %p170
        %p314 = pneg %p167
        %p315 = pneg %p191
        %p316 = pneg %p188
        %p317 = pneg %p212
        %p318 = pneg %p209
        %p319 = pneg %p238
        %p320 = pneg %p235
        %s321 = sand.u32 %s225, 1
        %s322 = scalar_lea.sflag [#allocation3], %s321
        %s323 = sand.u32 %s225, 1
        %s324 = smul.addr %s323, 8
        %s325 = scalar_lea.vmem [#allocation2], %s324
        %p326 = scmp.lt.s32.totalorder %s23, 1
        %s327 = scalar_select %p326, %s23, 1
        %s328 = smul.addr %s327, 2
        %s329 = smul.addr %s328, 8
        %s330 = scalar_lea.vmem %s0, %s329
        %v332 = vld [vmem:[%s330] sm:$0xff]
        %v333 = vld [vmem:[%s330 + $0x8] sm:$0xff]
        %vm334 = vcmask 261120
        %v335 = vsel %vm334, %v332, 0.0
        %336 = vadd.xlane.f32.xlu0 %v335
        %v337 = vpop.xlane.xlu0 %336
        %v338 = vsel %vm334, %v333, 0.0
        %339 = vadd.xlane.f32.xlu0 %v338
        %v340 = vpop.xlane.xlu0 %339
        %v341 = vrcp.pop 32.0
        %v342 = vmul.f32 %v337, %v341
        %v343 = vmul.f32 %v340, %v341
        %v346 = vlaneseq
        %v347 = vand.u32 %v346, 127
        %v348 = vlaneseq
        %v349 = vshrl.u32 %v348, 7
        %v350 = vsub.s32 %v347, %v349
        %v351 = vrot.slane %v342, %v350
        %v352 = vlaneseq
        %v353 = vshrl.u32 %v352, 7
        %v354 = vsub.s32 %v347, %v353
        %v355 = vrot.slane %v343, %v354
        %vm356 = vcmask 1041409
        %v357 = vsel %vm356, %v355, %v351
        %vm359 = vcmask 58368
        %v360 = vsel %vm359, %v357, 0.0
        %361 = vadd.xlane.f32.xlu0 %v360
        %v362 = vpop.xlane.xlu0 %361
        %v363 = vrcp.pop 8.0
        %v364 = vmul.f32 %v362, %v363
        %v365 = vld [vmem:[%s1] sm:$0x3]
        %v366 = vmul.f32 %v365, %v364
        %vm367 = vcmask 9216
        %v368 = vsel %vm367, %v366, 0.0
        %v369 = vrot.slane %v368, 4
        %v370 = vadd.f32 %v368, %v369
        %v371 = vrot.slane %v370, 2
        %v372 = vadd.f32 %v370, %v371
        %v373 = vrot.slane %v372, 1
        %v374 = vadd.f32 %v372, %v373
        %v375 = vld [vmem:[%s2] sm:$0x1]
        %v376 = vadd.f32 %v374, %v375
        %v377 = vmax.f32 %v376, 0.0
        %v378 = vld [vmem:[%s3] sm:$0x3]
        %v379 = vlaneseq
        %v380 = vshrl.u32 %v379, 7
        %v381 = vsub.s32 0, %v380
        %v382 = vrot.slane %v377, %v381
        %v383 = vmul.f32 %v378, %v382
        %v384 = vsel %vm367, %v383, 0.0
        %385 = vadd.xlane.f32.xlu0 %v384
        %v386 = vpop.xlane.xlu0 %385
        %v387 = vld [vmem:[%s4] sm:$0x3]
        %v388 = vadd.f32 %v386, %v387
        %v389 = vxor.u32 %v388, 2147483648
        %v390 = vmul.f32 %v389, 1.442695
        %v391 = vpow.pop %v390
        %v392 = vadd.f32 %v391, 1.0
        %v393 = vrcp.pop %v392
        %v394 = vmul.f32 1.0, %v393
        %s396 = vtos %v394
        %v397 = vstv %s396
        %v399 = vmul.f32 %v332, %v397
        %v400 = vadd.f32 %v399, 0.0
        %v401 = vrot.slane %v394, 1
        %s402 = vtos %v401
        %v403 = vstv %s402
        %v405 = vmul.f32 %v333, %v403
        %v406 = vadd.f32 %v400, %v405
        %v407 = vld [vmem:[%s5] sm:$0xf]
        %v408 = vld [vmem:[%s5 + $0x4] sm:$0xf]
        %v409 = vld [vmem:[%s5 + $0x8] sm:$0xf]
        %v410 = vld [vmem:[%s5 + $0xc] sm:$0xf]
        %v411 = vpack.c.bf16 %v406, %v406
        %v412 = vld [vmem:[%s6] sm:$0x1]
        %v414 = vlaneseq
        %v415 = vshrl.u32 %v414, 7
        %v416 = vsub.s32 0, %v415
        %v417 = vrot.slane %v412, %v416
        %v423 = vunpack.c.l.b16 %v407
        %v424 = vunpack.c.l.b16 %v408
        %v425 = vunpack.c.l.b16 %v409
        %v426 = vunpack.c.l.b16 %v410
        %v427 = vpack.c.b16 %v424, %v423
        %v428 = vpack.c.b16 %v426, %v425
        %v432 = vsel %vm334, %v411, 0
        %434 = vmatprep.subr.bf16.mxu0 0
        %435 = vmatpush1.bf16.msra.mxu0 %v427
        %436 = vmatprep.subr.bf16.mxu0 0
        %437 = vmatpush1.bf16.msra.mxu0 %v428
        %438 = vmatprep.subr.bf16.mxu0 0
        %439 = vmatpush1.bf16.msra.mxu0 0
        %440 = vmatprep.subr.bf16.mxu0 0
        %441 = vmatpush1.bf16.msra.mxu0 0
        %442 = vmatprep.subr.bf16.mxu0 0
        %443 = vmatpush1.bf16.msra.mxu0 0
        %444 = vmatprep.subr.bf16.mxu0 0
        %445 = vmatpush1.bf16.msra.mxu0 0
        %446 = vmatprep.subr.bf16.mxu0 0
        %447 = vmatpush1.bf16.msra.mxu0 0
        %448 = vmatprep.subr.bf16.mxu0 0
        %449 = vmatpush1.bf16.msra.mxu0 0
        %450 = vmatprep.subr.bf16.mxu0 0
        %451 = vmatpush1.bf16.msra.mxu0 0
        %452 = vmatprep.subr.bf16.mxu0 0
        %453 = vmatpush1.bf16.msra.mxu0 0
        %454 = vmatprep.subr.bf16.mxu0 0
        %455 = vmatpush1.bf16.msra.mxu0 0
        %456 = vmatprep.subr.bf16.mxu0 0
        %457 = vmatpush1.bf16.msra.mxu0 0
        %458 = vmatprep.subr.bf16.mxu0 0
        %459 = vmatpush1.bf16.msra.mxu0 0
        %460 = vmatprep.subr.bf16.mxu0 0
        %461 = vmatpush1.bf16.msra.mxu0 0
        %462 = vmatprep.subr.bf16.mxu0 0
        %463 = vmatpush1.bf16.msra.mxu0 0
        %464 = vmatprep.subr.bf16.mxu0 0
        %465 = vmatpush1.bf16.msra.mxu0 0
        %466 = vmatprep.mubr.bf16.mxu0 0
        %467 = vmatmul.mubr.bf16.gmra.mrb[0].mxu0 %v432
        %v468 = vpop.f32.mrb[0].mxu0
        %v469 = vadd.f32 %v417, %v468
        %v470 = vpop.f32.mrb[0].mxu0
        %v471 = vpop.f32.mrb[0].mxu0
        %v472 = vpop.f32.mrb[0].mxu0
        %473 = vdwg.mxu0
        %v474 = vmax.f32 %v469, 0.0
        %v475 = vld [vmem:[%s7] sm:$0xf]
        %v476 = vld [vmem:[%s7 + $0x4] sm:$0xf]
        %v477 = vpack.c.bf16 %v474, %v474
        %v478 = vld [vmem:[%s8] sm:$0x1]
        %v480 = vlaneseq
        %v481 = vshrl.u32 %v480, 7
        %v482 = vsub.s32 0, %v481
        %v483 = vrot.slane %v478, %v482
        %v487 = vunpack.c.l.b16 %v475
        %v488 = vunpack.c.l.b16 %v476
        %v489 = vpack.c.b16 %v488, %v487
        %vm491 = vcmask 130048
        %v493 = vsel %vm491, %v477, 0
        %495 = vmatprep.subr.bf16.mxu0 0
        %496 = vmatpush1.bf16.msra.mxu0 %v489
        %497 = vmatprep.subr.bf16.mxu0 0
        %498 = vmatpush1.bf16.msra.mxu0 0
        %499 = vmatprep.subr.bf16.mxu0 0
        %500 = vmatpush1.bf16.msra.mxu0 0
        %501 = vmatprep.subr.bf16.mxu0 0
        %502 = vmatpush1.bf16.msra.mxu0 0
        %503 = vmatprep.subr.bf16.mxu0 0
        %504 = vmatpush1.bf16.msra.mxu0 0
        %505 = vmatprep.subr.bf16.mxu0 0
        %506 = vmatpush1.bf16.msra.mxu0 0
        %507 = vmatprep.subr.bf16.mxu0 0
        %508 = vmatpush1.bf16.msra.mxu0 0
        %509 = vmatprep.subr.bf16.mxu0 0
        %510 = vmatpush1.bf16.msra.mxu0 0
        %511 = vmatprep.subr.bf16.mxu0 0
        %512 = vmatpush1.bf16.msra.mxu0 0
        %513 = vmatprep.subr.bf16.mxu0 0
        %514 = vmatpush1.bf16.msra.mxu0 0
        %515 = vmatprep.subr.bf16.mxu0 0
        %516 = vmatpush1.bf16.msra.mxu0 0
        %517 = vmatprep.subr.bf16.mxu0 0
        %518 = vmatpush1.bf16.msra.mxu0 0
        %519 = vmatprep.subr.bf16.mxu0 0
        %520 = vmatpush1.bf16.msra.mxu0 0
        %521 = vmatprep.subr.bf16.mxu0 0
        %522 = vmatpush1.bf16.msra.mxu0 0
        %523 = vmatprep.subr.bf16.mxu0 0
        %524 = vmatpush1.bf16.msra.mxu0 0
        %525 = vmatprep.subr.bf16.mxu0 0
        %526 = vmatpush1.bf16.msra.mxu0 0
        %527 = vmatprep.mubr.bf16.mxu0 0
        %528 = vmatmul.mubr.bf16.gmra.mrb[0].mxu0 %v493
        %v529 = vpop.f32.mrb[0].mxu0
        %v530 = vadd.f32 %v483, %v529
        %v531 = vpop.f32.mrb[0].mxu0
        %v532 = vpop.f32.mrb[0].mxu0
        %v533 = vpop.f32.mrb[0].mxu0
        %534 = vdwg.mxu0
        %v535 = vxor.u32 %v530, 2147483648
        %v536 = vmul.f32 %v535, 1.442695
        %v537 = vpow.pop %v536
        %v538 = vadd.f32 %v537, 1.0
        %v539 = vrcp.pop %v538
        %v540 = vmul.f32 1.0, %v539
        %541 = vst [vmem:[%s325] sm:$0xff] %v540
        %s542 = sand.u32 %s225, 1
        %s543 = scalar_lea.sflag [#allocation3], %s542
        %s544 = sand.u32 %s225, 1
        %s545 = smul.addr %s544, 8
        %s546 = scalar_lea.vmem [#allocation2], %s545
        // Predicated region
        $region57: #{_lambda_.11} parent=55 // pred_check
          %p547 = pneg %p235
        $region58: #{_lambda_.11} parent=55 // pred_check_branch
          %549 = sbr.rel (%p547) target = $region60
        $region59: #{_lambda_.11} parent=55 // pred_region
          %s551 = ssub.s32 128, 128
          %552 = vsyncadd %s543, %s551
          %s553 = smul.addr %s23, 128
          %s554 = scalar_lea.hbm %s9, %s553
          %s556 = sshll.u32 %s546, 4
          %s557 = int_to_ptr.vmem [resolvable:$true] %s556
          %559 = dma.vmem_to_hbm [thread:$0]  %s557, 128, %s554, %s543
        $region60: #{_lambda_.11} parent=55 // pred_fallthru
          _
      $region56: #{_lambda_.11} parent=5 // pred_fallthru
        _
      %p560 = scmp.le.s32.totalorder 2, %s18
      // Predicated region
      $region61: #{_lambda_.11} parent=5 // pred_check
        %p561 = pneg %p560
      $region62: #{_lambda_.11} parent=5 // pred_check_branch
        %563 = sbr.rel (%p561) target = $region64
      $region63: #{_lambda_.11} parent=5 // pred_region
        %s564 = ssub.s32 %s18, 2
        // Predicated region
        $region65: #{_lambda_.11} parent=63 // pred_check
          %p565 = pneg %p241
        $region66: #{_lambda_.11} parent=63 // pred_check_branch
          %567 = sbr.rel (%p565) target = $region68
        $region67: #{_lambda_.11} parent=63 // pred_region
          %s568 = sand.u32 %s226, 1
          %s569 = scalar_lea.sflag [#allocation3], %s568
          %s570 = sand.u32 %s226, 1
          %s571 = smul.addr %s570, 8
          %s572 = scalar_lea.vmem [#allocation2], %s571
          %573 = dma.done %s569, 128
        $region68: #{_lambda_.11} parent=63 // pred_fallthru
          _
      $region64: #{_lambda_.11} parent=5 // pred_fallthru
        _
    $region6: #{_lambda_.11} parent=1 // loop_footer
      %s22 = sadd.s32 1, %s18
    $region7: #{_lambda_.11} parent=1 // loop_footer_branch
      %17 = sbr.rel target = $region3
    $region8: #{_lambda_.11} parent=1 // loop_exit
      _
    %574 = vsyncpa [#allocation3], 1
    %s575 = scalar_lea.sflag [#allocation3], 1
    %576 = vsyncpa %s575, 1

// kernel: _lambda_.10
$region0: #{_lambda_.10}
  #allocation0 [shape = 'u32[]', space=smem, size = 0x4, offset = 0x4, fixed_abs, tag = 'smem constant byte address 0x4 - core index']
  #allocation1 [shape = 'u32[144,128]{1,0:T(1,128)}', space=vmem, size = 0x12000, scoped, tag = 'internal scratch']
  %s0 = inlined_call_operand.vmem [shape: f32[2,2,8,32], index: 0, kind: input, shape index: {}, may-alias: {0,1,2}]
  %s1 = inlined_call_operand.vmem [shape: f32[2,2,8,32], index: 1, kind: input, shape index: {}, may-alias: {0,1,2}]
  %s2 = inlined_call_operand.vmem [shape: f32[2,2,8,32], index: 2, kind: input, shape index: {}, may-alias: {0,1,2}]
  %s3 = inlined_call_operand.vmem [shape: bf16[2,32,32], index: 3, kind: input, shape index: {}]
  %s4 = inlined_call_operand.vmem [shape: f32[2,1,32], index: 4, kind: input, shape index: {}]
  %s5 = inlined_call_operand.vmem [shape: bf16[2,32,32], index: 5, kind: input, shape index: {}]
  %s6 = inlined_call_operand.vmem [shape: f32[2,1,32], index: 6, kind: input, shape index: {}]
  %s7 = inlined_call_operand.vmem [shape: bf16[2,32,32], index: 7, kind: input, shape index: {}]
  %s8 = inlined_call_operand.vmem [shape: f32[2,1,32], index: 8, kind: input, shape index: {}]
  %s9 = inlined_call_operand.vmem [shape: f32[2,1,32], index: 9, kind: input, shape index: {}, may-alias: {9,15}]
  %s10 = inlined_call_operand.vmem [shape: f32[2,1,32], index: 10, kind: input, shape index: {}, may-alias: {10,16}]
  %s11 = inlined_call_operand.vmem [shape: bf16[2,32,64], index: 11, kind: input, shape index: {}]
  %s12 = inlined_call_operand.vmem [shape: f32[2,1,64], index: 12, kind: input, shape index: {}]
  %s13 = inlined_call_operand.vmem [shape: bf16[2,64,32], index: 13, kind: input, shape index: {}]
  %s14 = inlined_call_operand.vmem [shape: f32[2,1,32], index: 14, kind: input, shape index: {}]
  %s15 = inlined_call_operand.vmem [shape: f32[2,1,32], index: 15, kind: input, shape index: {}, may-alias: {9,15}]
  %s16 = inlined_call_operand.vmem [shape: f32[2,1,32], index: 16, kind: input, shape index: {}, may-alias: {10,16}]
  %s17 = inlined_call_operand.vmem [shape: f32[2,2,8,32], index: 17, kind: output, shape index: {}]
  %s18 = sld [smem:[#allocation0]]
  $region101: #{_lambda_.10} parent=0
    _
  %s20 = ssub.s32 1, %s18
  %s21 = scalar_select 0, %s20, %s18
  loop: start=0, step=1, limit=6
  $region2: #{_lambda_.10} parent=0 // loop_pre_header
    _
  $region3: #{_lambda_.10} parent=0 // loop_header
    %s23 = sphi 0, %s27
    %p24 = scmp.ge.s32.totalorder %s23, 6
    %s30 = sphi 0, %s42
    %s31 = sphi 0, %s38
    %s32 = sphi 0, %s30
    %s33 = sphi 0, %s31
    %s34 = sphi 0, %s32
    %s35 = sphi 0, %s33
    %s47 = sphi 0, %s49
    %s50 = sphi 0, %s47
    %s51 = sphi 0, %s50
    %s67 = sphi 0, %s51
    %s75 = sphi 0, %s77
    %s78 = sphi 0, %s75
    %s79 = sphi 0, %s78
    %s95 = sphi 0, %s79
    %s103 = sphi 0, %s105
    %s106 = sphi 0, %s103
    %s107 = sphi 0, %s106
    %s123 = sphi 0, %s107
    %s129 = sphi 0, %s131
    %s132 = sphi 0, %s129
    %s133 = sphi 0, %s132
    %s149 = sphi 0, %s133
    %s155 = sphi 0, %s157
    %s158 = sphi 0, %s155
    %s159 = sphi 0, %s158
    %s175 = sphi 0, %s159
    %s181 = sphi 0, %s183
    %s184 = sphi 0, %s181
    %s185 = sphi 0, %s184
    %s201 = sphi 0, %s185
    %s207 = sphi 0, %s209
    %s210 = sphi 0, %s207
    %s211 = sphi 0, %s210
    %s227 = sphi 0, %s211
    %s233 = sphi 0, %s235
    %s236 = sphi 0, %s233
    %s237 = sphi 0, %s236
    %s253 = sphi 0, %s237
    %s259 = sphi 0, %s261
    %s262 = sphi 0, %s259
    %s263 = sphi 0, %s262
    %s279 = sphi 0, %s263
    %s285 = sphi 0, %s287
    %s288 = sphi 0, %s285
    %s289 = sphi 0, %s288
    %s305 = sphi 0, %s289
    %s311 = sphi 0, %s313
    %s314 = sphi 0, %s311
    %s315 = sphi 0, %s314
    %s331 = sphi 0, %s315
    %s337 = sphi 0, %s339
    %s340 = sphi 0, %s337
    %s341 = sphi 0, %s340
    %s357 = sphi 0, %s341
    %s363 = sphi 0, %s365
    %s366 = sphi 0, %s363
    %s367 = sphi 0, %s366
    %s383 = sphi 0, %s367
    %s389 = sphi 0, %s391
    %s392 = sphi 0, %s389
    %s393 = sphi 0, %s392
    %s409 = sphi 0, %s393
    %s415 = sphi 0, %s417
    %s418 = sphi 0, %s415
    %s419 = sphi 0, %s418
    %s435 = sphi 0, %s419
    %s441 = sphi 0, %s443
    %s444 = sphi 0, %s441
    %s445 = sphi 0, %s444
    %s461 = sphi 0, %s445
    %s467 = sphi 0, %s469
    %s470 = sphi 0, %s467
    %s471 = sphi 0, %s470
    %s487 = sphi 0, %s471
    %s495 = sphi 0, %s497
    %s498 = sphi 0, %s495
    %s499 = sphi 0, %s498
    %s515 = sphi 0, %s499
  $region4: #{_lambda_.10} parent=0 // loop_header_branch
    %26 = sbr.rel (%p24) target = $region8
  $region5: #{_lambda_.10} parent=0 // loop_body
    %s28 = ssub.s32 %s23, 1
    %s29 = ssub.s32 %s23, 2
    %s36 = sadd.s32 1, %s31
    %p37 = scmp.ge.s32.totalorder %s36, 2
    %s38 = scalar_select %p37, 0, %s36
    %s39 = sadd.s32 1, %s30
    %s40 = scalar_select %p37, %s39, %s30
    %p41 = scmp.ge.s32.totalorder %s40, 2
    %s42 = scalar_select %p41, 0, %s40
    %s43 = ssub.s32 %s31, %s38
    %s44 = ssub.s32 %s30, %s42
    %s45 = sor.u32 %s43, %s44
    %p46 = scmp.eq.s32.totalorder %s45, 0
    %s48 = sadd.s32 %s47, 1
    %s49 = scalar_select %p46, %s47, %s48
    %p52 = pneg %p46
    %p53 = scmp.eq.s32.totalorder %s23, 3
    %p54 = por %p52, %p53
    %p55 = scmp.ne.s32.totalorder %s47, %s50
    %p56 = scmp.eq.s32.totalorder %s23, 0
    %p57 = por %p55, %p56
    %p58 = scmp.ne.s32.totalorder %s47, %s50
    %p59 = scmp.eq.s32.totalorder %s28, 3
    %p60 = por %p58, %p59
    %p61 = scmp.ne.s32.totalorder %s50, %s51
    %p62 = scmp.eq.s32.totalorder %s28, 0
    %p63 = por %p61, %p62
    %p64 = scmp.ne.s32.totalorder %s50, %s51
    %p65 = scmp.eq.s32.totalorder %s29, 3
    %p66 = por %p64, %p65
    %p68 = scmp.ne.s32.totalorder %s51, %s67
    %p69 = scmp.eq.s32.totalorder %s29, 0
    %p70 = por %p68, %p69
    %s71 = ssub.s32 %s31, %s38
    %s72 = ssub.s32 %s30, %s42
    %s73 = sor.u32 %s71, %s72
    %p74 = scmp.eq.s32.totalorder %s73, 0
    %s76 = sadd.s32 %s75, 1
    %s77 = scalar_select %p74, %s75, %s76
    %p80 = pneg %p74
    %p81 = scmp.eq.s32.totalorder %s23, 3
    %p82 = por %p80, %p81
    %p83 = scmp.ne.s32.totalorder %s75, %s78
    %p84 = scmp.eq.s32.totalorder %s23, 0
    %p85 = por %p83, %p84
    %p86 = scmp.ne.s32.totalorder %s75, %s78
    %p87 = scmp.eq.s32.totalorder %s28, 3
    %p88 = por %p86, %p87
    %p89 = scmp.ne.s32.totalorder %s78, %s79
    %p90 = scmp.eq.s32.totalorder %s28, 0
    %p91 = por %p89, %p90
    %p92 = scmp.ne.s32.totalorder %s78, %s79
    %p93 = scmp.eq.s32.totalorder %s29, 3
    %p94 = por %p92, %p93
    %p96 = scmp.ne.s32.totalorder %s79, %s95
    %p97 = scmp.eq.s32.totalorder %s29, 0
    %p98 = por %p96, %p97
    %s99 = ssub.s32 %s31, %s38
    %s100 = ssub.s32 %s30, %s42
    %s101 = sor.u32 %s99, %s100
    %p102 = scmp.eq.s32.totalorder %s101, 0
    %s104 = sadd.s32 %s103, 1
    %s105 = scalar_select %p102, %s103, %s104
    %p108 = pneg %p102
    %p109 = scmp.eq.s32.totalorder %s23, 3
    %p110 = por %p108, %p109
    %p111 = scmp.ne.s32.totalorder %s103, %s106
    %p112 = scmp.eq.s32.totalorder %s23, 0
    %p113 = por %p111, %p112
    %p114 = scmp.ne.s32.totalorder %s103, %s106
    %p115 = scmp.eq.s32.totalorder %s28, 3
    %p116 = por %p114, %p115
    %p117 = scmp.ne.s32.totalorder %s106, %s107
    %p118 = scmp.eq.s32.totalorder %s28, 0
    %p119 = por %p117, %p118
    %p120 = scmp.ne.s32.totalorder %s106, %s107
    %p121 = scmp.eq.s32.totalorder %s29, 3
    %p122 = por %p120, %p121
    %p124 = scmp.ne.s32.totalorder %s107, %s123
    %p125 = scmp.eq.s32.totalorder %s29, 0
    %p126 = por %p124, %p125
    %s127 = ssub.s32 %s30, %s42
    %p128 = scmp.eq.s32.totalorder %s127, 0
    %s130 = sadd.s32 %s129, 1
    %s131 = scalar_select %p128, %s129, %s130
    %p134 = pneg %p128
    %p135 = scmp.eq.s32.totalorder %s23, 3
    %p136 = por %p134, %p135
    %p137 = scmp.ne.s32.totalorder %s129, %s132
    %p138 = scmp.eq.s32.totalorder %s23, 0
    %p139 = por %p137, %p138
    %p140 = scmp.ne.s32.totalorder %s129, %s132
    %p141 = scmp.eq.s32.totalorder %s28, 3
    %p142 = por %p140, %p141
    %p143 = scmp.ne.s32.totalorder %s132, %s133
    %p144 = scmp.eq.s32.totalorder %s28, 0
    %p145 = por %p143, %p144
    %p146 = scmp.ne.s32.totalorder %s132, %s133
    %p147 = scmp.eq.s32.totalorder %s29, 3
    %p148 = por %p146, %p147
    %p150 = scmp.ne.s32.totalorder %s133, %s149
    %p151 = scmp.eq.s32.totalorder %s29, 0
    %p152 = por %p150, %p151
    %s153 = ssub.s32 %s30, %s42
    %p154 = scmp.eq.s32.totalorder %s153, 0
    %s156 = sadd.s32 %s155, 1
    %s157 = scalar_select %p154, %s155, %s156
    %p160 = pneg %p154
    %p161 = scmp.eq.s32.totalorder %s23, 3
    %p162 = por %p160, %p161
    %p163 = scmp.ne.s32.totalorder %s155, %s158
    %p164 = scmp.eq.s32.totalorder %s23, 0
    %p165 = por %p163, %p164
    %p166 = scmp.ne.s32.totalorder %s155, %s158
    %p167 = scmp.eq.s32.totalorder %s28, 3
    %p168 = por %p166, %p167
    %p169 = scmp.ne.s32.totalorder %s158, %s159
    %p170 = scmp.eq.s32.totalorder %s28, 0
    %p171 = por %p169, %p170
    %p172 = scmp.ne.s32.totalorder %s158, %s159
    %p173 = scmp.eq.s32.totalorder %s29, 3
    %p174 = por %p172, %p173
    %p176 = scmp.ne.s32.totalorder %s159, %s175
    %p177 = scmp.eq.s32.totalorder %s29, 0
    %p178 = por %p176, %p177
    %s179 = ssub.s32 %s30, %s42
    %p180 = scmp.eq.s32.totalorder %s179, 0
    %s182 = sadd.s32 %s181, 1
    %s183 = scalar_select %p180, %s181, %s182
    %p186 = pneg %p180
    %p187 = scmp.eq.s32.totalorder %s23, 3
    %p188 = por %p186, %p187
    %p189 = scmp.ne.s32.totalorder %s181, %s184
    %p190 = scmp.eq.s32.totalorder %s23, 0
    %p191 = por %p189, %p190
    %p192 = scmp.ne.s32.totalorder %s181, %s184
    %p193 = scmp.eq.s32.totalorder %s28, 3
    %p194 = por %p192, %p193
    %p195 = scmp.ne.s32.totalorder %s184, %s185
    %p196 = scmp.eq.s32.totalorder %s28, 0
    %p197 = por %p195, %p196
    %p198 = scmp.ne.s32.totalorder %s184, %s185
    %p199 = scmp.eq.s32.totalorder %s29, 3
    %p200 = por %p198, %p199
    %p202 = scmp.ne.s32.totalorder %s185, %s201
    %p203 = scmp.eq.s32.totalorder %s29, 0
    %p204 = por %p202, %p203
    %s205 = ssub.s32 %s30, %s42
    %p206 = scmp.eq.s32.totalorder %s205, 0
    %s208 = sadd.s32 %s207, 1
    %s209 = scalar_select %p206, %s207, %s208
    %p212 = pneg %p206
    %p213 = scmp.eq.s32.totalorder %s23, 3
    %p214 = por %p212, %p213
    %p215 = scmp.ne.s32.totalorder %s207, %s210
    %p216 = scmp.eq.s32.totalorder %s23, 0
    %p217 = por %p215, %p216
    %p218 = scmp.ne.s32.totalorder %s207, %s210
    %p219 = scmp.eq.s32.totalorder %s28, 3
    %p220 = por %p218, %p219
    %p221 = scmp.ne.s32.totalorder %s210, %s211
    %p222 = scmp.eq.s32.totalorder %s28, 0
    %p223 = por %p221, %p222
    %p224 = scmp.ne.s32.totalorder %s210, %s211
    %p225 = scmp.eq.s32.totalorder %s29, 3
    %p226 = por %p224, %p225
    %p228 = scmp.ne.s32.totalorder %s211, %s227
    %p229 = scmp.eq.s32.totalorder %s29, 0
    %p230 = por %p228, %p229
    %s231 = ssub.s32 %s30, %s42
    %p232 = scmp.eq.s32.totalorder %s231, 0
    %s234 = sadd.s32 %s233, 1
    %s235 = scalar_select %p232, %s233, %s234
    %p238 = pneg %p232
    %p239 = scmp.eq.s32.totalorder %s23, 3
    %p240 = por %p238, %p239
    %p241 = scmp.ne.s32.totalorder %s233, %s236
    %p242 = scmp.eq.s32.totalorder %s23, 0
    %p243 = por %p241, %p242
    %p244 = scmp.ne.s32.totalorder %s233, %s236
    %p245 = scmp.eq.s32.totalorder %s28, 3
    %p246 = por %p244, %p245
    %p247 = scmp.ne.s32.totalorder %s236, %s237
    %p248 = scmp.eq.s32.totalorder %s28, 0
    %p249 = por %p247, %p248
    %p250 = scmp.ne.s32.totalorder %s236, %s237
    %p251 = scmp.eq.s32.totalorder %s29, 3
    %p252 = por %p250, %p251
    %p254 = scmp.ne.s32.totalorder %s237, %s253
    %p255 = scmp.eq.s32.totalorder %s29, 0
    %p256 = por %p254, %p255
    %s257 = ssub.s32 %s30, %s42
    %p258 = scmp.eq.s32.totalorder %s257, 0
    %s260 = sadd.s32 %s259, 1
    %s261 = scalar_select %p258, %s259, %s260
    %p264 = pneg %p258
    %p265 = scmp.eq.s32.totalorder %s23, 3
    %p266 = por %p264, %p265
    %p267 = scmp.ne.s32.totalorder %s259, %s262
    %p268 = scmp.eq.s32.totalorder %s23, 0
    %p269 = por %p267, %p268
    %p270 = scmp.ne.s32.totalorder %s259, %s262
    %p271 = scmp.eq.s32.totalorder %s28, 3
    %p272 = por %p270, %p271
    %p273 = scmp.ne.s32.totalorder %s262, %s263
    %p274 = scmp.eq.s32.totalorder %s28, 0
    %p275 = por %p273, %p274
    %p276 = scmp.ne.s32.totalorder %s262, %s263
    %p277 = scmp.eq.s32.totalorder %s29, 3
    %p278 = por %p276, %p277
    %p280 = scmp.ne.s32.totalorder %s263, %s279
    %p281 = scmp.eq.s32.totalorder %s29, 0
    %p282 = por %p280, %p281
    %s283 = ssub.s32 %s30, %s42
    %p284 = scmp.eq.s32.totalorder %s283, 0
    %s286 = sadd.s32 %s285, 1
    %s287 = scalar_select %p284, %s285, %s286
    %p290 = pneg %p284
    %p291 = scmp.eq.s32.totalorder %s23, 3
    %p292 = por %p290, %p291
    %p293 = scmp.ne.s32.totalorder %s285, %s288
    %p294 = scmp.eq.s32.totalorder %s23, 0
    %p295 = por %p293, %p294
    %p296 = scmp.ne.s32.totalorder %s285, %s288
    %p297 = scmp.eq.s32.totalorder %s28, 3
    %p298 = por %p296, %p297
    %p299 = scmp.ne.s32.totalorder %s288, %s289
    %p300 = scmp.eq.s32.totalorder %s28, 0
    %p301 = por %p299, %p300
    %p302 = scmp.ne.s32.totalorder %s288, %s289
    %p303 = scmp.eq.s32.totalorder %s29, 3
    %p304 = por %p302, %p303
    %p306 = scmp.ne.s32.totalorder %s289, %s305
    %p307 = scmp.eq.s32.totalorder %s29, 0
    %p308 = por %p306, %p307
    %s309 = ssub.s32 %s30, %s42
    %p310 = scmp.eq.s32.totalorder %s309, 0
    %s312 = sadd.s32 %s311, 1
    %s313 = scalar_select %p310, %s311, %s312
    %p316 = pneg %p310
    %p317 = scmp.eq.s32.totalorder %s23, 3
    %p318 = por %p316, %p317
    %p319 = scmp.ne.s32.totalorder %s311, %s314
    %p320 = scmp.eq.s32.totalorder %s23, 0
    %p321 = por %p319, %p320
    %p322 = scmp.ne.s32.totalorder %s311, %s314
    %p323 = scmp.eq.s32.totalorder %s28, 3
    %p324 = por %p322, %p323
    %p325 = scmp.ne.s32.totalorder %s314, %s315
    %p326 = scmp.eq.s32.totalorder %s28, 0
    %p327 = por %p325, %p326
    %p328 = scmp.ne.s32.totalorder %s314, %s315
    %p329 = scmp.eq.s32.totalorder %s29, 3
    %p330 = por %p328, %p329
    %p332 = scmp.ne.s32.totalorder %s315, %s331
    %p333 = scmp.eq.s32.totalorder %s29, 0
    %p334 = por %p332, %p333
    %s335 = ssub.s32 %s30, %s42
    %p336 = scmp.eq.s32.totalorder %s335, 0
    %s338 = sadd.s32 %s337, 1
    %s339 = scalar_select %p336, %s337, %s338
    %p342 = pneg %p336
    %p343 = scmp.eq.s32.totalorder %s23, 3
    %p344 = por %p342, %p343
    %p345 = scmp.ne.s32.totalorder %s337, %s340
    %p346 = scmp.eq.s32.totalorder %s23, 0
    %p347 = por %p345, %p346
    %p348 = scmp.ne.s32.totalorder %s337, %s340
    %p349 = scmp.eq.s32.totalorder %s28, 3
    %p350 = por %p348, %p349
    %p351 = scmp.ne.s32.totalorder %s340, %s341
    %p352 = scmp.eq.s32.totalorder %s28, 0
    %p353 = por %p351, %p352
    %p354 = scmp.ne.s32.totalorder %s340, %s341
    %p355 = scmp.eq.s32.totalorder %s29, 3
    %p356 = por %p354, %p355
    %p358 = scmp.ne.s32.totalorder %s341, %s357
    %p359 = scmp.eq.s32.totalorder %s29, 0
    %p360 = por %p358, %p359
    %s361 = ssub.s32 %s30, %s42
    %p362 = scmp.eq.s32.totalorder %s361, 0
    %s364 = sadd.s32 %s363, 1
    %s365 = scalar_select %p362, %s363, %s364
    %p368 = pneg %p362
    %p369 = scmp.eq.s32.totalorder %s23, 3
    %p370 = por %p368, %p369
    %p371 = scmp.ne.s32.totalorder %s363, %s366
    %p372 = scmp.eq.s32.totalorder %s23, 0
    %p373 = por %p371, %p372
    %p374 = scmp.ne.s32.totalorder %s363, %s366
    %p375 = scmp.eq.s32.totalorder %s28, 3
    %p376 = por %p374, %p375
    %p377 = scmp.ne.s32.totalorder %s366, %s367
    %p378 = scmp.eq.s32.totalorder %s28, 0
    %p379 = por %p377, %p378
    %p380 = scmp.ne.s32.totalorder %s366, %s367
    %p381 = scmp.eq.s32.totalorder %s29, 3
    %p382 = por %p380, %p381
    %p384 = scmp.ne.s32.totalorder %s367, %s383
    %p385 = scmp.eq.s32.totalorder %s29, 0
    %p386 = por %p384, %p385
    %s387 = ssub.s32 %s30, %s42
    %p388 = scmp.eq.s32.totalorder %s387, 0
    %s390 = sadd.s32 %s389, 1
    %s391 = scalar_select %p388, %s389, %s390
    %p394 = pneg %p388
    %p395 = scmp.eq.s32.totalorder %s23, 3
    %p396 = por %p394, %p395
    %p397 = scmp.ne.s32.totalorder %s389, %s392
    %p398 = scmp.eq.s32.totalorder %s23, 0
    %p399 = por %p397, %p398
    %p400 = scmp.ne.s32.totalorder %s389, %s392
    %p401 = scmp.eq.s32.totalorder %s28, 3
    %p402 = por %p400, %p401
    %p403 = scmp.ne.s32.totalorder %s392, %s393
    %p404 = scmp.eq.s32.totalorder %s28, 0
    %p405 = por %p403, %p404
    %p406 = scmp.ne.s32.totalorder %s392, %s393
    %p407 = scmp.eq.s32.totalorder %s29, 3
    %p408 = por %p406, %p407
    %p410 = scmp.ne.s32.totalorder %s393, %s409
    %p411 = scmp.eq.s32.totalorder %s29, 0
    %p412 = por %p410, %p411
    %s413 = ssub.s32 %s30, %s42
    %p414 = scmp.eq.s32.totalorder %s413, 0
    %s416 = sadd.s32 %s415, 1
    %s417 = scalar_select %p414, %s415, %s416
    %p420 = pneg %p414
    %p421 = scmp.eq.s32.totalorder %s23, 3
    %p422 = por %p420, %p421
    %p423 = scmp.ne.s32.totalorder %s415, %s418
    %p424 = scmp.eq.s32.totalorder %s23, 0
    %p425 = por %p423, %p424
    %p426 = scmp.ne.s32.totalorder %s415, %s418
    %p427 = scmp.eq.s32.totalorder %s28, 3
    %p428 = por %p426, %p427
    %p429 = scmp.ne.s32.totalorder %s418, %s419
    %p430 = scmp.eq.s32.totalorder %s28, 0
    %p431 = por %p429, %p430
    %p432 = scmp.ne.s32.totalorder %s418, %s419
    %p433 = scmp.eq.s32.totalorder %s29, 3
    %p434 = por %p432, %p433
    %p436 = scmp.ne.s32.totalorder %s419, %s435
    %p437 = scmp.eq.s32.totalorder %s29, 0
    %p438 = por %p436, %p437
    %s439 = ssub.s32 %s30, %s42
    %p440 = scmp.eq.s32.totalorder %s439, 0
    %s442 = sadd.s32 %s441, 1
    %s443 = scalar_select %p440, %s441, %s442
    %p446 = pneg %p440
    %p447 = scmp.eq.s32.totalorder %s23, 3
    %p448 = por %p446, %p447
    %p449 = scmp.ne.s32.totalorder %s441, %s444
    %p450 = scmp.eq.s32.totalorder %s23, 0
    %p451 = por %p449, %p450
    %p452 = scmp.ne.s32.totalorder %s441, %s444
    %p453 = scmp.eq.s32.totalorder %s28, 3
    %p454 = por %p452, %p453
    %p455 = scmp.ne.s32.totalorder %s444, %s445
    %p456 = scmp.eq.s32.totalorder %s28, 0
    %p457 = por %p455, %p456
    %p458 = scmp.ne.s32.totalorder %s444, %s445
    %p459 = scmp.eq.s32.totalorder %s29, 3
    %p460 = por %p458, %p459
    %p462 = scmp.ne.s32.totalorder %s445, %s461
    %p463 = scmp.eq.s32.totalorder %s29, 0
    %p464 = por %p462, %p463
    %s465 = ssub.s32 %s30, %s42
    %p466 = scmp.eq.s32.totalorder %s465, 0
    %s468 = sadd.s32 %s467, 1
    %s469 = scalar_select %p466, %s467, %s468
    %p472 = pneg %p466
    %p473 = scmp.eq.s32.totalorder %s23, 3
    %p474 = por %p472, %p473
    %p475 = scmp.ne.s32.totalorder %s467, %s470
    %p476 = scmp.eq.s32.totalorder %s23, 0
    %p477 = por %p475, %p476
    %p478 = scmp.ne.s32.totalorder %s467, %s470
    %p479 = scmp.eq.s32.totalorder %s28, 3
    %p480 = por %p478, %p479
    %p481 = scmp.ne.s32.totalorder %s470, %s471
    %p482 = scmp.eq.s32.totalorder %s28, 0
    %p483 = por %p481, %p482
    %p484 = scmp.ne.s32.totalorder %s470, %s471
    %p485 = scmp.eq.s32.totalorder %s29, 3
    %p486 = por %p484, %p485
    %p488 = scmp.ne.s32.totalorder %s471, %s487
    %p489 = scmp.eq.s32.totalorder %s29, 0
    %p490 = por %p488, %p489
    %s491 = ssub.s32 %s31, %s38
    %s492 = ssub.s32 %s30, %s42
    %s493 = sor.u32 %s491, %s492
    %p494 = scmp.eq.s32.totalorder %s493, 0
    %s496 = sadd.s32 %s495, 1
    %s497 = scalar_select %p494, %s495, %s496
    %p500 = pneg %p494
    %p501 = scmp.eq.s32.totalorder %s23, 3
    %p502 = por %p500, %p501
    %p503 = scmp.ne.s32.totalorder %s495, %s498
    %p504 = scmp.eq.s32.totalorder %s23, 0
    %p505 = por %p503, %p504
    %p506 = scmp.ne.s32.totalorder %s495, %s498
    %p507 = scmp.eq.s32.totalorder %s28, 3
    %p508 = por %p506, %p507
    %p509 = scmp.ne.s32.totalorder %s498, %s499
    %p510 = scmp.eq.s32.totalorder %s28, 0
    %p511 = por %p509, %p510
    %p512 = scmp.ne.s32.totalorder %s498, %s499
    %p513 = scmp.eq.s32.totalorder %s29, 3
    %p514 = por %p512, %p513
    %p516 = scmp.ne.s32.totalorder %s499, %s515
    %p517 = scmp.eq.s32.totalorder %s29, 0
    %p518 = por %p516, %p517
    %p519 = scmp.le.s32.totalorder 1, %s23
    %p520 = scmp.lt.s32.totalorder %s23, 5
    %p521 = pnand %p519, %p520
    %p522 = pneg %p521
    // Predicated region
    $region9: #{_lambda_.10} parent=5 // pred_check
      _
    $region10: #{_lambda_.10} parent=5 // pred_check_branch
      %524 = sbr.rel (%p521) target = $region12
    $region11: #{_lambda_.10} parent=5 // pred_region
      %s525 = ssub.s32 %s23, 1
    $region12: #{_lambda_.10} parent=5 // pred_fallthru
      _
    %p526 = scmp.lt.s32.totalorder %s23, 4
    // Predicated region
    $region13: #{_lambda_.10} parent=5 // pred_check
      %p527 = pneg %p526
    $region14: #{_lambda_.10} parent=5 // pred_check_branch
      %529 = sbr.rel (%p527) target = $region16
    $region15: #{_lambda_.10} parent=5 // pred_region
      // Predicated region
      $region17: #{_lambda_.10} parent=15 // pred_check
        %p530 = pneg %p57
      $region18: #{_lambda_.10} parent=15 // pred_check_branch
        %532 = sbr.rel (%p530) target = $region20
      $region19: #{_lambda_.10} parent=15 // pred_region
        %p533 = scmp.lt.s32.totalorder %s31, 1
        %s534 = scalar_select %p533, %s31, 1
        %p535 = scmp.lt.s32.totalorder %s30, 1
        %s536 = scalar_select %p535, %s30, 1
        %s537 = smul.addr %s534, 2
        %s538 = sadd.s32 %s536, %s537
        %s539 = smul.addr %s538, 8
        %s540 = scalar_lea.vmem %s0, %s539
      $region20: #{_lambda_.10} parent=15 // pred_fallthru
        _
      // Predicated region
      $region21: #{_lambda_.10} parent=15 // pred_check
        %p541 = pneg %p85
      $region22: #{_lambda_.10} parent=15 // pred_check_branch
        %543 = sbr.rel (%p541) target = $region24
      $region23: #{_lambda_.10} parent=15 // pred_region
        %p544 = scmp.lt.s32.totalorder %s31, 1
        %s545 = scalar_select %p544, %s31, 1
        %p546 = scmp.lt.s32.totalorder %s30, 1
        %s547 = scalar_select %p546, %s30, 1
        %s548 = smul.addr %s545, 2
        %s549 = sadd.s32 %s547, %s548
        %s550 = smul.addr %s549, 8
        %s551 = scalar_lea.vmem %s1, %s550
      $region24: #{_lambda_.10} parent=15 // pred_fallthru
        _
      // Predicated region
      $region25: #{_lambda_.10} parent=15 // pred_check
        %p552 = pneg %p113
      $region26: #{_lambda_.10} parent=15 // pred_check_branch
        %554 = sbr.rel (%p552) target = $region28
      $region27: #{_lambda_.10} parent=15 // pred_region
        %p555 = scmp.lt.s32.totalorder %s31, 1
        %s556 = scalar_select %p555, %s31, 1
        %p557 = scmp.lt.s32.totalorder %s30, 1
        %s558 = scalar_select %p557, %s30, 1
        %s559 = smul.addr %s556, 2
        %s560 = sadd.s32 %s558, %s559
        %s561 = smul.addr %s560, 8
        %s562 = scalar_lea.vmem %s2, %s561
      $region28: #{_lambda_.10} parent=15 // pred_fallthru
        _
      // Predicated region
      $region29: #{_lambda_.10} parent=15 // pred_check
        %p563 = pneg %p139
      $region30: #{_lambda_.10} parent=15 // pred_check_branch
        %565 = sbr.rel (%p563) target = $region32
      $region31: #{_lambda_.10} parent=15 // pred_region
        %p566 = scmp.lt.s32.totalorder %s30, 1
        %s567 = scalar_select %p566, %s30, 1
        %s568 = smul.addr %s567, 4
        %s569 = smul.addr %s568, 4
        %s570 = scalar_lea.vmem %s3, %s569
      $region32: #{_lambda_.10} parent=15 // pred_fallthru
        _
      // Predicated region
      $region33: #{_lambda_.10} parent=15 // pred_check
        %p571 = pneg %p165
      $region34: #{_lambda_.10} parent=15 // pred_check_branch
        %573 = sbr.rel (%p571) target = $region36
      $region35: #{_lambda_.10} parent=15 // pred_region
        %p574 = scmp.lt.s32.totalorder %s30, 1
        %s575 = scalar_select %p574, %s30, 1
        %s576 = scalar_lea.vmem %s4, %s575
      $region36: #{_lambda_.10} parent=15 // pred_fallthru
        _
      // Predicated region
      $region37: #{_lambda_.10} parent=15 // pred_check
        %p577 = pneg %p191
      $region38: #{_lambda_.10} parent=15 // pred_check_branch
        %579 = sbr.rel (%p577) target = $region40
      $region39: #{_lambda_.10} parent=15 // pred_region
        %p580 = scmp.lt.s32.totalorder %s30, 1
        %s581 = scalar_select %p580, %s30, 1
        %s582 = smul.addr %s581, 4
        %s583 = smul.addr %s582, 4
        %s584 = scalar_lea.vmem %s5, %s583
      $region40: #{_lambda_.10} parent=15 // pred_fallthru
        _
      // Predicated region
      $region41: #{_lambda_.10} parent=15 // pred_check
        %p585 = pneg %p217
      $region42: #{_lambda_.10} parent=15 // pred_check_branch
        %587 = sbr.rel (%p585) target = $region44
      $region43: #{_lambda_.10} parent=15 // pred_region
        %p588 = scmp.lt.s32.totalorder %s30, 1
        %s589 = scalar_select %p588, %s30, 1
        %s590 = scalar_lea.vmem %s6, %s589
      $region44: #{_lambda_.10} parent=15 // pred_fallthru
        _
      // Predicated region
      $region45: #{_lambda_.10} parent=15 // pred_check
        %p591 = pneg %p243
      $region46: #{_lambda_.10} parent=15 // pred_check_branch
        %593 = sbr.rel (%p591) target = $region48
      $region47: #{_lambda_.10} parent=15 // pred_region
        %p594 = scmp.lt.s32.totalorder %s30, 1
        %s595 = scalar_select %p594, %s30, 1
        %s596 = smul.addr %s595, 4
        %s597 = smul.addr %s596, 4
        %s598 = scalar_lea.vmem %s7, %s597
      $region48: #{_lambda_.10} parent=15 // pred_fallthru
        _
      // Predicated region
      $region49: #{_lambda_.10} parent=15 // pred_check
        %p599 = pneg %p269
      $region50: #{_lambda_.10} parent=15 // pred_check_branch
        %601 = sbr.rel (%p599) target = $region52
      $region51: #{_lambda_.10} parent=15 // pred_region
        %p602 = scmp.lt.s32.totalorder %s30, 1
        %s603 = scalar_select %p602, %s30, 1
        %s604 = scalar_lea.vmem %s8, %s603
      $region52: #{_lambda_.10} parent=15 // pred_fallthru
        _
      // Predicated region
      $region53: #{_lambda_.10} parent=15 // pred_check
        %p605 = pneg %p295
      $region54: #{_lambda_.10} parent=15 // pred_check_branch
        %607 = sbr.rel (%p605) target = $region56
      $region55: #{_lambda_.10} parent=15 // pred_region
        %p608 = scmp.lt.s32.totalorder %s30, 1
        %s609 = scalar_select %p608, %s30, 1
        %s610 = scalar_lea.vmem %s9, %s609
      $region56: #{_lambda_.10} parent=15 // pred_fallthru
        _
      // Predicated region
      $region57: #{_lambda_.10} parent=15 // pred_check
        %p611 = pneg %p321
      $region58: #{_lambda_.10} parent=15 // pred_check_branch
        %613 = sbr.rel (%p611) target = $region60
      $region59: #{_lambda_.10} parent=15 // pred_region
        %p614 = scmp.lt.s32.totalorder %s30, 1
        %s615 = scalar_select %p614, %s30, 1
        %s616 = scalar_lea.vmem %s10, %s615
      $region60: #{_lambda_.10} parent=15 // pred_fallthru
        _
      // Predicated region
      $region61: #{_lambda_.10} parent=15 // pred_check
        %p617 = pneg %p347
      $region62: #{_lambda_.10} parent=15 // pred_check_branch
        %619 = sbr.rel (%p617) target = $region64
      $region63: #{_lambda_.10} parent=15 // pred_region
        %p620 = scmp.lt.s32.totalorder %s30, 1
        %s621 = scalar_select %p620, %s30, 1
        %s622 = smul.addr %s621, 4
        %s623 = smul.addr %s622, 4
        %s624 = scalar_lea.vmem %s11, %s623
      $region64: #{_lambda_.10} parent=15 // pred_fallthru
        _
      // Predicated region
      $region65: #{_lambda_.10} parent=15 // pred_check
        %p625 = pneg %p373
      $region66: #{_lambda_.10} parent=15 // pred_check_branch
        %627 = sbr.rel (%p625) target = $region68
      $region67: #{_lambda_.10} parent=15 // pred_region
        %p628 = scmp.lt.s32.totalorder %s30, 1
        %s629 = scalar_select %p628, %s30, 1
        %s630 = scalar_lea.vmem %s12, %s629
      $region68: #{_lambda_.10} parent=15 // pred_fallthru
        _
      // Predicated region
      $region69: #{_lambda_.10} parent=15 // pred_check
        %p631 = pneg %p399
      $region70: #{_lambda_.10} parent=15 // pred_check_branch
        %633 = sbr.rel (%p631) target = $region72
      $region71: #{_lambda_.10} parent=15 // pred_region
        %p634 = scmp.lt.s32.totalorder %s30, 1
        %s635 = scalar_select %p634, %s30, 1
        %s636 = smul.addr %s635, 8
        %s637 = smul.addr %s636, 4
        %s638 = scalar_lea.vmem %s13, %s637
      $region72: #{_lambda_.10} parent=15 // pred_fallthru
        _
      // Predicated region
      $region73: #{_lambda_.10} parent=15 // pred_check
        %p639 = pneg %p425
      $region74: #{_lambda_.10} parent=15 // pred_check_branch
        %641 = sbr.rel (%p639) target = $region76
      $region75: #{_lambda_.10} parent=15 // pred_region
        %p642 = scmp.lt.s32.totalorder %s30, 1
        %s643 = scalar_select %p642, %s30, 1
        %s644 = scalar_lea.vmem %s14, %s643
      $region76: #{_lambda_.10} parent=15 // pred_fallthru
        _
      // Predicated region
      $region77: #{_lambda_.10} parent=15 // pred_check
        %p645 = pneg %p451
      $region78: #{_lambda_.10} parent=15 // pred_check_branch
        %647 = sbr.rel (%p645) target = $region80
      $region79: #{_lambda_.10} parent=15 // pred_region
        %p648 = scmp.lt.s32.totalorder %s30, 1
        %s649 = scalar_select %p648, %s30, 1
        %s650 = scalar_lea.vmem %s15, %s649
      $region80: #{_lambda_.10} parent=15 // pred_fallthru
        _
      // Predicated region
      $region81: #{_lambda_.10} parent=15 // pred_check
        %p651 = pneg %p477
      $region82: #{_lambda_.10} parent=15 // pred_check_branch
        %653 = sbr.rel (%p651) target = $region84
      $region83: #{_lambda_.10} parent=15 // pred_region
        %p654 = scmp.lt.s32.totalorder %s30, 1
        %s655 = scalar_select %p654, %s30, 1
        %s656 = scalar_lea.vmem %s16, %s655
      $region84: #{_lambda_.10} parent=15 // pred_fallthru
        _
    $region16: #{_lambda_.10} parent=5 // pred_fallthru
      _
    %p657 = scmp.le.s32.totalorder 1, %s23
    %p658 = scmp.lt.s32.totalorder %s23, 5
    %p659 = pnand %p657, %p658
    %p660 = pneg %p659
    // Predicated region
    $region85: #{_lambda_.10} parent=5 // pred_check
      _
    $region86: #{_lambda_.10} parent=5 // pred_check_branch
      %662 = sbr.rel (%p659) target = $region88
    $region87: #{_lambda_.10} parent=5 // pred_region
      %s663 = ssub.s32 %s23, 1
      %p664 = scmp.lt.s32.totalorder %s33, 1
      %s665 = scalar_select %p664, %s33, 1
      %p666 = scmp.lt.s32.totalorder %s32, 1
      %s667 = scalar_select %p666, %s32, 1
      %s668 = smul.addr %s665, 2
      %s669 = sadd.s32 %s667, %s668
      %s670 = smul.addr %s669, 8
      %s671 = scalar_lea.vmem %s0, %s670
      %p672 = pneg %p63
      %p673 = pneg %p60
      %p674 = scmp.lt.s32.totalorder %s33, 1
      %s675 = scalar_select %p674, %s33, 1
      %p676 = scmp.lt.s32.totalorder %s32, 1
      %s677 = scalar_select %p676, %s32, 1
      %s678 = smul.addr %s675, 2
      %s679 = sadd.s32 %s677, %s678
      %s680 = smul.addr %s679, 8
      %s681 = scalar_lea.vmem %s1, %s680
      %p682 = pneg %p91
      %p683 = pneg %p88
      %p684 = scmp.lt.s32.totalorder %s33, 1
      %s685 = scalar_select %p684, %s33, 1
      %p686 = scmp.lt.s32.totalorder %s32, 1
      %s687 = scalar_select %p686, %s32, 1
      %s688 = smul.addr %s685, 2
      %s689 = sadd.s32 %s687, %s688
      %s690 = smul.addr %s689, 8
      %s691 = scalar_lea.vmem %s2, %s690
      %p692 = pneg %p119
      %p693 = pneg %p116
      %p694 = scmp.lt.s32.totalorder %s32, 1
      %s695 = scalar_select %p694, %s32, 1
      %s696 = smul.addr %s695, 4
      %s697 = smul.addr %s696, 4
      %s698 = scalar_lea.vmem %s3, %s697
      %p699 = pneg %p145
      %p700 = pneg %p142
      %p701 = scmp.lt.s32.totalorder %s32, 1
      %s702 = scalar_select %p701, %s32, 1
      %s703 = scalar_lea.vmem %s4, %s702
      %p704 = pneg %p171
      %p705 = pneg %p168
      %p706 = scmp.lt.s32.totalorder %s32, 1
      %s707 = scalar_select %p706, %s32, 1
      %s708 = smul.addr %s707, 4
      %s709 = smul.addr %s708, 4
      %s710 = scalar_lea.vmem %s5, %s709
      %p711 = pneg %p197
      %p712 = pneg %p194
      %p713 = scmp.lt.s32.totalorder %s32, 1
      %s714 = scalar_select %p713, %s32, 1
      %s715 = scalar_lea.vmem %s6, %s714
      %p716 = pneg %p223
      %p717 = pneg %p220
      %p718 = scmp.lt.s32.totalorder %s32, 1
      %s719 = scalar_select %p718, %s32, 1
      %s720 = smul.addr %s719, 4
      %s721 = smul.addr %s720, 4
      %s722 = scalar_lea.vmem %s7, %s721
      %p723 = pneg %p249
      %p724 = pneg %p246
      %p725 = scmp.lt.s32.totalorder %s32, 1
      %s726 = scalar_select %p725, %s32, 1
      %s727 = scalar_lea.vmem %s8, %s726
      %p728 = pneg %p275
      %p729 = pneg %p272
      %p730 = scmp.lt.s32.totalorder %s32, 1
      %s731 = scalar_select %p730, %s32, 1
      %s732 = scalar_lea.vmem %s9, %s731
      %p733 = pneg %p301
      %p734 = pneg %p298
      %p735 = scmp.lt.s32.totalorder %s32, 1
      %s736 = scalar_select %p735, %s32, 1
      %s737 = scalar_lea.vmem %s10, %s736
      %p738 = pneg %p327
      %p739 = pneg %p324
      %p740 = scmp.lt.s32.totalorder %s32, 1
      %s741 = scalar_select %p740, %s32, 1
      %s742 = smul.addr %s741, 4
      %s743 = smul.addr %s742, 4
      %s744 = scalar_lea.vmem %s11, %s743
      %p745 = pneg %p353
      %p746 = pneg %p350
      %p747 = scmp.lt.s32.totalorder %s32, 1
      %s748 = scalar_select %p747, %s32, 1
      %s749 = scalar_lea.vmem %s12, %s748
      %p750 = pneg %p379
      %p751 = pneg %p376
      %p752 = scmp.lt.s32.totalorder %s32, 1
      %s753 = scalar_select %p752, %s32, 1
      %s754 = smul.addr %s753, 8
      %s755 = smul.addr %s754, 4
      %s756 = scalar_lea.vmem %s13, %s755
      %p757 = pneg %p405
      %p758 = pneg %p402
      %p759 = scmp.lt.s32.totalorder %s32, 1
      %s760 = scalar_select %p759, %s32, 1
      %s761 = scalar_lea.vmem %s14, %s760
      %p762 = pneg %p431
      %p763 = pneg %p428
      %p764 = scmp.lt.s32.totalorder %s32, 1
      %s765 = scalar_select %p764, %s32, 1
      %s766 = scalar_lea.vmem %s15, %s765
      %p767 = pneg %p457
      %p768 = pneg %p454
      %p769 = scmp.lt.s32.totalorder %s32, 1
      %s770 = scalar_select %p769, %s32, 1
      %s771 = scalar_lea.vmem %s16, %s770
      %p772 = pneg %p483
      %p773 = pneg %p480
      %p774 = pneg %p511
      %p775 = pneg %p508
      %p776 = scmp.lt.s32.totalorder %s33, 1
      %s777 = scalar_select %p776, %s33, 1
      %p778 = scmp.lt.s32.totalorder %s32, 1
      %s779 = scalar_select %p778, %s32, 1
      %s780 = smul.addr %s777, 2
      %s781 = sadd.s32 %s779, %s780
      %s782 = smul.addr %s781, 8
      %s783 = scalar_lea.vmem %s17, %s782
      %p784 = scmp.lt.s32.totalorder %s33, 1
      %s785 = scalar_select %p784, %s33, 1
      %p786 = scmp.lt.s32.totalorder %s32, 1
      %s787 = scalar_select %p786, %s32, 1
      %s788 = smul.addr %s785, 2
      %s789 = sadd.s32 %s787, %s788
      %s790 = smul.addr %s789, 8
      %s791 = scalar_lea.vmem %s0, %s790
      %p792 = scmp.lt.s32.totalorder %s33, 1
      %s793 = scalar_select %p792, %s33, 1
      %p794 = scmp.lt.s32.totalorder %s32, 1
      %s795 = scalar_select %p794, %s32, 1
      %s796 = smul.addr %s793, 2
      %s797 = sadd.s32 %s795, %s796
      %s798 = smul.addr %s797, 8
      %s799 = scalar_lea.vmem %s1, %s798
      %p800 = scmp.lt.s32.totalorder %s33, 1
      %s801 = scalar_select %p800, %s33, 1
      %p802 = scmp.lt.s32.totalorder %s32, 1
      %s803 = scalar_select %p802, %s32, 1
      %s804 = smul.addr %s801, 2
      %s805 = sadd.s32 %s803, %s804
      %s806 = smul.addr %s805, 8
      %s807 = scalar_lea.vmem %s2, %s806
      %p808 = scmp.lt.s32.totalorder %s32, 1
      %s809 = scalar_select %p808, %s32, 1
      %s810 = smul.addr %s809, 4
      %s811 = smul.addr %s810, 4
      %s812 = scalar_lea.vmem %s3, %s811
      %p813 = scmp.lt.s32.totalorder %s32, 1
      %s814 = scalar_select %p813, %s32, 1
      %s815 = scalar_lea.vmem %s4, %s814
      %p816 = scmp.lt.s32.totalorder %s32, 1
      %s817 = scalar_select %p816, %s32, 1
      %s818 = smul.addr %s817, 4
      %s819 = smul.addr %s818, 4
      %s820 = scalar_lea.vmem %s5, %s819
      %p821 = scmp.lt.s32.totalorder %s32, 1
      %s822 = scalar_select %p821, %s32, 1
      %s823 = scalar_lea.vmem %s6, %s822
      %p824 = scmp.lt.s32.totalorder %s32, 1
      %s825 = scalar_select %p824, %s32, 1
      %s826 = smul.addr %s825, 4
      %s827 = smul.addr %s826, 4
      %s828 = scalar_lea.vmem %s7, %s827
      %p829 = scmp.lt.s32.totalorder %s32, 1
      %s830 = scalar_select %p829, %s32, 1
      %s831 = scalar_lea.vmem %s8, %s830
      %p832 = scmp.lt.s32.totalorder %s32, 1
      %s833 = scalar_select %p832, %s32, 1
      %s834 = scalar_lea.vmem %s9, %s833
      %p835 = scmp.lt.s32.totalorder %s32, 1
      %s836 = scalar_select %p835, %s32, 1
      %s837 = scalar_lea.vmem %s10, %s836
      %p838 = scmp.lt.s32.totalorder %s32, 1
      %s839 = scalar_select %p838, %s32, 1
      %s840 = smul.addr %s839, 4
      %s841 = smul.addr %s840, 4
      %s842 = scalar_lea.vmem %s11, %s841
      %p843 = scmp.lt.s32.totalorder %s32, 1
      %s844 = scalar_select %p843, %s32, 1
      %s845 = scalar_lea.vmem %s12, %s844
      %p846 = scmp.lt.s32.totalorder %s32, 1
      %s847 = scalar_select %p846, %s32, 1
      %s848 = smul.addr %s847, 8
      %s849 = smul.addr %s848, 4
      %s850 = scalar_lea.vmem %s13, %s849
      %p851 = scmp.lt.s32.totalorder %s32, 1
      %s852 = scalar_select %p851, %s32, 1
      %s853 = scalar_lea.vmem %s14, %s852
      %p854 = scmp.lt.s32.totalorder %s32, 1
      %s855 = scalar_select %p854, %s32, 1
      %s856 = scalar_lea.vmem %s15, %s855
      %p857 = scmp.lt.s32.totalorder %s32, 1
      %s858 = scalar_select %p857, %s32, 1
      %s859 = scalar_lea.vmem %s16, %s858
      %p860 = scmp.lt.s32.totalorder %s33, 1
      %s861 = scalar_select %p860, %s33, 1
      %p862 = scmp.lt.s32.totalorder %s32, 1
      %s863 = scalar_select %p862, %s32, 1
      %s864 = smul.addr %s861, 2
      %s865 = sadd.s32 %s863, %s864
      %s866 = smul.addr %s865, 8
      %s867 = scalar_lea.vmem %s17, %s866
      %v869 = vld [vmem:[%s791] sm:$0xff]
      %v870 = vld [vmem:[%s799] sm:$0xff]
      %v871 = vld [vmem:[%s807] sm:$0xff]
      %v872 = vld [vmem:[%s812] sm:$0xf]
      %v873 = vld [vmem:[%s812 + $0x4] sm:$0xf]
      %v874 = vld [vmem:[%s812 + $0x8] sm:$0xf]
      %v875 = vld [vmem:[%s812 + $0xc] sm:$0xf]
      %v876 = vld [vmem:[%s815] sm:$0x1]
      %v877 = vpack.c.bf16 %v869, %v869
      %v879 = vlaneseq
      %v880 = vshrl.u32 %v879, 7
      %v881 = vsub.s32 0, %v880
      %v882 = vrot.slane %v876, %v881
      %v888 = vunpack.c.l.b16 %v872
      %v889 = vunpack.c.l.b16 %v873
      %v890 = vunpack.c.l.b16 %v874
      %v891 = vunpack.c.l.b16 %v875
      %v892 = vpack.c.b16 %v889, %v888
      %v893 = vpack.c.b16 %v891, %v890
      %vm896 = vcmask 261120
      %v898 = vsel %vm896, %v877, 0
      %900 = vmatprep.subr.bf16.mxu0 0
      %901 = vmatpush1.bf16.msra.mxu0 %v892
      %902 = vmatprep.subr.bf16.mxu0 0
      %903 = vmatpush1.bf16.msra.mxu0 %v893
      %904 = vmatprep.subr.bf16.mxu0 0
      %905 = vmatpush1.bf16.msra.mxu0 0
      %906 = vmatprep.subr.bf16.mxu0 0
      %907 = vmatpush1.bf16.msra.mxu0 0
      %908 = vmatprep.subr.bf16.mxu0 0
      %909 = vmatpush1.bf16.msra.mxu0 0
      %910 = vmatprep.subr.bf16.mxu0 0
      %911 = vmatpush1.bf16.msra.mxu0 0
      %912 = vmatprep.subr.bf16.mxu0 0
      %913 = vmatpush1.bf16.msra.mxu0 0
      %914 = vmatprep.subr.bf16.mxu0 0
      %915 = vmatpush1.bf16.msra.mxu0 0
      %916 = vmatprep.subr.bf16.mxu0 0
      %917 = vmatpush1.bf16.msra.mxu0 0
      %918 = vmatprep.subr.bf16.mxu0 0
      %919 = vmatpush1.bf16.msra.mxu0 0
      %920 = vmatprep.subr.bf16.mxu0 0
      %921 = vmatpush1.bf16.msra.mxu0 0
      %922 = vmatprep.subr.bf16.mxu0 0
      %923 = vmatpush1.bf16.msra.mxu0 0
      %924 = vmatprep.subr.bf16.mxu0 0
      %925 = vmatpush1.bf16.msra.mxu0 0
      %926 = vmatprep.subr.bf16.mxu0 0
      %927 = vmatpush1.bf16.msra.mxu0 0
      %928 = vmatprep.subr.bf16.mxu0 0
      %929 = vmatpush1.bf16.msra.mxu0 0
      %930 = vmatprep.subr.bf16.mxu0 0
      %931 = vmatpush1.bf16.msra.mxu0 0
      %932 = vmatprep.mubr.bf16.mxu0 0
      %933 = vmatmul.mubr.bf16.gmra.mrb[0].mxu0 %v898
      %v934 = vpop.f32.mrb[0].mxu0
      %v935 = vadd.f32 %v882, %v934
      %v936 = vpop.f32.mrb[0].mxu0
      %v937 = vpop.f32.mrb[0].mxu0
      %v938 = vpop.f32.mrb[0].mxu0
      %939 = vdwg.mxu0
      %v940 = vpack.c.bf16 %v870, %v870
      %v942 = vsel %vm896, %v940, 0
      %944 = vmatprep.subr.bf16.mxu0 0
      %945 = vmatpush1.bf16.msra.mxu0 %v892
      %946 = vmatprep.subr.bf16.mxu0 0
      %947 = vmatpush1.bf16.msra.mxu0 %v893
      %948 = vmatprep.subr.bf16.mxu0 0
      %949 = vmatpush1.bf16.msra.mxu0 0
      %950 = vmatprep.subr.bf16.mxu0 0
      %951 = vmatpush1.bf16.msra.mxu0 0
      %952 = vmatprep.subr.bf16.mxu0 0
      %953 = vmatpush1.bf16.msra.mxu0 0
      %954 = vmatprep.subr.bf16.mxu0 0
      %955 = vmatpush1.bf16.msra.mxu0 0
      %956 = vmatprep.subr.bf16.mxu0 0
      %957 = vmatpush1.bf16.msra.mxu0 0
      %958 = vmatprep.subr.bf16.mxu0 0
      %959 = vmatpush1.bf16.msra.mxu0 0
      %960 = vmatprep.subr.bf16.mxu0 0
      %961 = vmatpush1.bf16.msra.mxu0 0
      %962 = vmatprep.subr.bf16.mxu0 0
      %963 = vmatpush1.bf16.msra.mxu0 0
      %964 = vmatprep.subr.bf16.mxu0 0
      %965 = vmatpush1.bf16.msra.mxu0 0
      %966 = vmatprep.subr.bf16.mxu0 0
      %967 = vmatpush1.bf16.msra.mxu0 0
      %968 = vmatprep.subr.bf16.mxu0 0
      %969 = vmatpush1.bf16.msra.mxu0 0
      %970 = vmatprep.subr.bf16.mxu0 0
      %971 = vmatpush1.bf16.msra.mxu0 0
      %972 = vmatprep.subr.bf16.mxu0 0
      %973 = vmatpush1.bf16.msra.mxu0 0
      %974 = vmatprep.subr.bf16.mxu0 0
      %975 = vmatpush1.bf16.msra.mxu0 0
      %976 = vmatprep.mubr.bf16.mxu0 0
      %977 = vmatmul.mubr.bf16.gmra.mrb[0].mxu0 %v942
      %v978 = vpop.f32.mrb[0].mxu0
      %v979 = vadd.f32 %v882, %v978
      %v980 = vpop.f32.mrb[0].mxu0
      %v981 = vpop.f32.mrb[0].mxu0
      %v982 = vpop.f32.mrb[0].mxu0
      %983 = vdwg.mxu0
      %v984 = vld [vmem:[%s820] sm:$0xf]
      %v985 = vld [vmem:[%s820 + $0x4] sm:$0xf]
      %v986 = vld [vmem:[%s820 + $0x8] sm:$0xf]
      %v987 = vld [vmem:[%s820 + $0xc] sm:$0xf]
      %v988 = vpack.c.bf16 %v871, %v871
      %v989 = vld [vmem:[%s823] sm:$0x1]
      %v991 = vlaneseq
      %v992 = vshrl.u32 %v991, 7
      %v993 = vsub.s32 0, %v992
      %v994 = vrot.slane %v989, %v993
      %v1000 = vunpack.c.l.b16 %v984
      %v1001 = vunpack.c.l.b16 %v985
      %v1002 = vunpack.c.l.b16 %v986
      %v1003 = vunpack.c.l.b16 %v987
      %v1004 = vpack.c.b16 %v1001, %v1000
      %v1005 = vpack.c.b16 %v1003, %v1002
      %v1009 = vsel %vm896, %v988, 0
      %1011 = vmatprep.subr.bf16.mxu0 0
      %1012 = vmatpush1.bf16.msra.mxu0 %v1004
      %1013 = vmatprep.subr.bf16.mxu0 0
      %1014 = vmatpush1.bf16.msra.mxu0 %v1005
      %1015 = vmatprep.subr.bf16.mxu0 0
      %1016 = vmatpush1.bf16.msra.mxu0 0
      %1017 = vmatprep.subr.bf16.mxu0 0
      %1018 = vmatpush1.bf16.msra.mxu0 0
      %1019 = vmatprep.subr.bf16.mxu0 0
      %1020 = vmatpush1.bf16.msra.mxu0 0
      %1021 = vmatprep.subr.bf16.mxu0 0
      %1022 = vmatpush1.bf16.msra.mxu0 0
      %1023 = vmatprep.subr.bf16.mxu0 0
      %1024 = vmatpush1.bf16.msra.mxu0 0
      %1025 = vmatprep.subr.bf16.mxu0 0
      %1026 = vmatpush1.bf16.msra.mxu0 0
      %1027 = vmatprep.subr.bf16.mxu0 0
      %1028 = vmatpush1.bf16.msra.mxu0 0
      %1029 = vmatprep.subr.bf16.mxu0 0
      %1030 = vmatpush1.bf16.msra.mxu0 0
      %1031 = vmatprep.subr.bf16.mxu0 0
      %1032 = vmatpush1.bf16.msra.mxu0 0
      %1033 = vmatprep.subr.bf16.mxu0 0
      %1034 = vmatpush1.bf16.msra.mxu0 0
      %1035 = vmatprep.subr.bf16.mxu0 0
      %1036 = vmatpush1.bf16.msra.mxu0 0
      %1037 = vmatprep.subr.bf16.mxu0 0
      %1038 = vmatpush1.bf16.msra.mxu0 0
      %1039 = vmatprep.subr.bf16.mxu0 0
      %1040 = vmatpush1.bf16.msra.mxu0 0
      %1041 = vmatprep.subr.bf16.mxu0 0
      %1042 = vmatpush1.bf16.msra.mxu0 0
      %1043 = vmatprep.mubr.bf16.mxu0 0
      %1044 = vmatmul.mubr.bf16.gmra.mrb[0].mxu0 %v1009
      %v1045 = vpop.f32.mrb[0].mxu0
      %v1046 = vadd.f32 %v994, %v1045
      %v1047 = vpop.f32.mrb[0].mxu0
      %v1048 = vpop.f32.mrb[0].mxu0
      %v1049 = vpop.f32.mrb[0].mxu0
      %1050 = vdwg.mxu0
      %v1051 = vlaneseq
      %v1052 = vshrl.u32 %v1051, 7
      %v1053 = vlaneseq
      %v1054 = vand.u32 %v1053, 127
      %vm1055 = vcmp.le.s32.totalorder %v1054, %v1052
      %v1056 = vld [vmem:[%s828] sm:$0xf]
      %v1057 = vld [vmem:[%s828 + $0x4] sm:$0xf]
      %v1058 = vld [vmem:[%s828 + $0x8] sm:$0xf]
      %v1059 = vld [vmem:[%s828 + $0xc] sm:$0xf]
      %v1060 = vpack.c.bf16 %v935, %v935
      %v1061 = vpack.c.bf16 %v979, %v979
      %vm1062 = vcmask 130048
      %v1064 = vsel %vm1062, %v1060, 0
      %v1067 = vsel %vm1062, %v1061, 0
      %1069 = vmatprep.subr.bf16.mxu0 0
      %1070 = vmatpush1.bf16.xpose.msra.mxu0 %v1067
      %1071 = vmatprep.subr.bf16.mxu0 0
      %1072 = vmatpush1.bf16.xpose.msra.mxu0 0
      %1073 = vmatprep.subr.bf16.mxu0 0
      %1074 = vmatpush1.bf16.xpose.msra.mxu0 0
      %1075 = vmatprep.subr.bf16.mxu0 0
      %1076 = vmatpush1.bf16.xpose.msra.mxu0 0
      %1077 = vmatprep.subr.bf16.mxu0 0
      %1078 = vmatpush1.bf16.xpose.msra.mxu0 0
      %1079 = vmatprep.subr.bf16.mxu0 0
      %1080 = vmatpush1.bf16.xpose.msra.mxu0 0
      %1081 = vmatprep.subr.bf16.mxu0 0
      %1082 = vmatpush1.bf16.xpose.msra.mxu0 0
      %1083 = vmatprep.subr.bf16.mxu0 0
      %1084 = vmatpush1.bf16.xpose.msra.mxu0 0
      %1085 = vmatprep.subr.bf16.mxu0 0
      %1086 = vmatpush1.bf16.xpose.msra.mxu0 0
      %1087 = vmatprep.subr.bf16.mxu0 0
      %1088 = vmatpush1.bf16.xpose.msra.mxu0 0
      %1089 = vmatprep.subr.bf16.mxu0 0
      %1090 = vmatpush1.bf16.xpose.msra.mxu0 0
      %1091 = vmatprep.subr.bf16.mxu0 0
      %1092 = vmatpush1.bf16.xpose.msra.mxu0 0
      %1093 = vmatprep.subr.bf16.mxu0 0
      %1094 = vmatpush1.bf16.xpose.msra.mxu0 0
      %1095 = vmatprep.subr.bf16.mxu0 0
      %1096 = vmatpush1.bf16.xpose.msra.mxu0 0
      %1097 = vmatprep.subr.bf16.mxu0 0
      %1098 = vmatpush1.bf16.xpose.msra.mxu0 0
      %1099 = vmatprep.subr.bf16.mxu0 0
      %1100 = vmatpush1.bf16.xpose.msra.mxu0 0
      %1101 = vmatprep.mubr.bf16.mxu0 0
      %1102 = vmatmul.mubr.bf16.gmra.mrb[0].mxu0 %v1064
      %v1103 = vpop.f32.mrb[0].mxu0
      %v1104 = vadd.f32 0.0, %v1103
      %v1105 = vpop.f32.mrb[0].mxu0
      %v1106 = vpop.f32.mrb[0].mxu0
      %v1107 = vpop.f32.mrb[0].mxu0
      %1108 = vdwg.mxu0
      %v1109 = vmul.f32 %v1104, 0.25
      %v1110 = vsel %vm1055, %v1109, -1e+30
      %vm1111 = vcmask 64512
      %v1112 = vsel %vm1111, %v1110, -inf
      %1113 = vmax.xlane.f32.xlu0 %v1112
      %v1114 = vpop.xlane.xlu0 %1113
      %v1115 = vsub.f32 %v1110, %v1114
      %v1116 = vmul.f32 %v1115, 1.442695
      %v1117 = vpow.pop %v1116
      %v1118 = vsel %vm1111, %v1117, 0.0
      %1119 = vadd.xlane.f32.xlu0 %v1118
      %v1120 = vpop.xlane.xlu0 %1119
      %v1121 = vrcp.pop %v1120
      %v1122 = vmul.f32 %v1117, %v1121
      %v1123 = vpack.c.bf16 %v1046, %v1046
      %v1124 = vpack.c.bf16 %v1122, %v1122
      %v1126 = vsel %vm1111, %v1124, 0
      %vm1128 = vcmask 1043456
      %v1130 = vsel %vm1128, %v1123, 0
      %1132 = vmatprep.subr.bf16.mxu0 0
      %1133 = vmatpush1.bf16.msra.mxu0 %v1130
      %1134 = vmatprep.subr.bf16.mxu0 0
      %1135 = vmatpush1.bf16.msra.mxu0 0
      %1136 = vmatprep.subr.bf16.mxu0 0
      %1137 = vmatpush1.bf16.msra.mxu0 0
      %1138 = vmatprep.subr.bf16.mxu0 0
      %1139 = vmatpush1.bf16.msra.mxu0 0
      %1140 = vmatprep.subr.bf16.mxu0 0
      %1141 = vmatpush1.bf16.msra.mxu0 0
      %1142 = vmatprep.subr.bf16.mxu0 0
      %1143 = vmatpush1.bf16.msra.mxu0 0
      %1144 = vmatprep.subr.bf16.mxu0 0
      %1145 = vmatpush1.bf16.msra.mxu0 0
      %1146 = vmatprep.subr.bf16.mxu0 0
      %1147 = vmatpush1.bf16.msra.mxu0 0
      %1148 = vmatprep.subr.bf16.mxu0 0
      %1149 = vmatpush1.bf16.msra.mxu0 0
      %1150 = vmatprep.subr.bf16.mxu0 0
      %1151 = vmatpush1.bf16.msra.mxu0 0
      %1152 = vmatprep.subr.bf16.mxu0 0
      %1153 = vmatpush1.bf16.msra.mxu0 0
      %1154 = vmatprep.subr.bf16.mxu0 0
      %1155 = vmatpush1.bf16.msra.mxu0 0
      %1156 = vmatprep.subr.bf16.mxu0 0
      %1157 = vmatpush1.bf16.msra.mxu0 0
      %1158 = vmatprep.subr.bf16.mxu0 0
      %1159 = vmatpush1.bf16.msra.mxu0 0
      %1160 = vmatprep.subr.bf16.mxu0 0
      %1161 = vmatpush1.bf16.msra.mxu0 0
      %1162 = vmatprep.subr.bf16.mxu0 0
      %1163 = vmatpush1.bf16.msra.mxu0 0
      %1164 = vmatprep.mubr.bf16.mxu0 0
      %1165 = vmatmul.mubr.bf16.gmra.mrb[0].mxu0 %v1126
      %v1166 = vpop.f32.mrb[0].mxu0
      %v1167 = vadd.f32 0.0, %v1166
      %v1168 = vpop.f32.mrb[0].mxu0
      %v1169 = vpop.f32.mrb[0].mxu0
      %v1170 = vpop.f32.mrb[0].mxu0
      %1171 = vdwg.mxu0
      %v1172 = vpack.c.bf16 %v1167, %v1167
      %1174 = vrot.lane.b32.xlu0 %v1060, 112
      %v1175 = vpop.permute.xlu0 %1174
      %1177 = vrot.lane.b32.xlu0 %v1061, 112
      %v1178 = vpop.permute.xlu0 %1177
      %v1180 = vsel %vm1062, %v1175, 0
      %v1183 = vsel %vm1062, %v1178, 0
      %1185 = vmatprep.subr.bf16.mxu0 0
      %1186 = vmatpush1.bf16.xpose.msra.mxu0 %v1183
      %1187 = vmatprep.subr.bf16.mxu0 0
      %1188 = vmatpush1.bf16.xpose.msra.mxu0 0
      %1189 = vmatprep.subr.bf16.mxu0 0
      %1190 = vmatpush1.bf16.xpose.msra.mxu0 0
      %1191 = vmatprep.subr.bf16.mxu0 0
      %1192 = vmatpush1.bf16.xpose.msra.mxu0 0
      %1193 = vmatprep.subr.bf16.mxu0 0
      %1194 = vmatpush1.bf16.xpose.msra.mxu0 0
      %1195 = vmatprep.subr.bf16.mxu0 0
      %1196 = vmatpush1.bf16.xpose.msra.mxu0 0
      %1197 = vmatprep.subr.bf16.mxu0 0
      %1198 = vmatpush1.bf16.xpose.msra.mxu0 0
      %1199 = vmatprep.subr.bf16.mxu0 0
      %1200 = vmatpush1.bf16.xpose.msra.mxu0 0
      %1201 = vmatprep.subr.bf16.mxu0 0
      %1202 = vmatpush1.bf16.xpose.msra.mxu0 0
      %1203 = vmatprep.subr.bf16.mxu0 0
      %1204 = vmatpush1.bf16.xpose.msra.mxu0 0
      %1205 = vmatprep.subr.bf16.mxu0 0
      %1206 = vmatpush1.bf16.xpose.msra.mxu0 0
      %1207 = vmatprep.subr.bf16.mxu0 0
      %1208 = vmatpush1.bf16.xpose.msra.mxu0 0
      %1209 = vmatprep.subr.bf16.mxu0 0
      %1210 = vmatpush1.bf16.xpose.msra.mxu0 0
      %1211 = vmatprep.subr.bf16.mxu0 0
      %1212 = vmatpush1.bf16.xpose.msra.mxu0 0
      %1213 = vmatprep.subr.bf16.mxu0 0
      %1214 = vmatpush1.bf16.xpose.msra.mxu0 0
      %1215 = vmatprep.subr.bf16.mxu0 0
      %1216 = vmatpush1.bf16.xpose.msra.mxu0 0
      %1217 = vmatprep.mubr.bf16.mxu0 0
      %1218 = vmatmul.mubr.bf16.gmra.mrb[0].mxu0 %v1180
      %v1219 = vpop.f32.mrb[0].mxu0
      %v1220 = vadd.f32 0.0, %v1219
      %v1221 = vpop.f32.mrb[0].mxu0
      %v1222 = vpop.f32.mrb[0].mxu0
      %v1223 = vpop.f32.mrb[0].mxu0
      %1224 = vdwg.mxu0
      %v1225 = vmul.f32 %v1220, 0.25
      %v1226 = vsel %vm1055, %v1225, -1e+30
      %v1227 = vsel %vm1111, %v1226, -inf
      %1228 = vmax.xlane.f32.xlu0 %v1227
      %v1229 = vpop.xlane.xlu0 %1228
      %v1230 = vsub.f32 %v1226, %v1229
      %v1231 = vmul.f32 %v1230, 1.442695
      %v1232 = vpow.pop %v1231
      %v1233 = vsel %vm1111, %v1232, 0.0
      %1234 = vadd.xlane.f32.xlu0 %v1233
      %v1235 = vpop.xlane.xlu0 %1234
      %v1236 = vrcp.pop %v1235
      %v1237 = vmul.f32 %v1232, %v1236
      %v1238 = vpack.c.bf16 %v1237, %v1237
      %1240 = vrot.lane.b32.xlu0 %v1123, 112
      %v1241 = vpop.permute.xlu0 %1240
      %v1243 = vsel %vm1111, %v1238, 0
      %v1246 = vsel %vm1128, %v1241, 0
      %1248 = vmatprep.subr.bf16.mxu0 0
      %1249 = vmatpush1.bf16.msra.mxu0 %v1246
      %1250 = vmatprep.subr.bf16.mxu0 0
      %1251 = vmatpush1.bf16.msra.mxu0 0
      %1252 = vmatprep.subr.bf16.mxu0 0
      %1253 = vmatpush1.bf16.msra.mxu0 0
      %1254 = vmatprep.subr.bf16.mxu0 0
      %1255 = vmatpush1.bf16.msra.mxu0 0
      %1256 = vmatprep.subr.bf16.mxu0 0
      %1257 = vmatpush1.bf16.msra.mxu0 0
      %1258 = vmatprep.subr.bf16.mxu0 0
      %1259 = vmatpush1.bf16.msra.mxu0 0
      %1260 = vmatprep.subr.bf16.mxu0 0
      %1261 = vmatpush1.bf16.msra.mxu0 0
      %1262 = vmatprep.subr.bf16.mxu0 0
      %1263 = vmatpush1.bf16.msra.mxu0 0
      %1264 = vmatprep.subr.bf16.mxu0 0
      %1265 = vmatpush1.bf16.msra.mxu0 0
      %1266 = vmatprep.subr.bf16.mxu0 0
      %1267 = vmatpush1.bf16.msra.mxu0 0
      %1268 = vmatprep.subr.bf16.mxu0 0
      %1269 = vmatpush1.bf16.msra.mxu0 0
      %1270 = vmatprep.subr.bf16.mxu0 0
      %1271 = vmatpush1.bf16.msra.mxu0 0
      %1272 = vmatprep.subr.bf16.mxu0 0
      %1273 = vmatpush1.bf16.msra.mxu0 0
      %1274 = vmatprep.subr.bf16.mxu0 0
      %1275 = vmatpush1.bf16.msra.mxu0 0
      %1276 = vmatprep.subr.bf16.mxu0 0
      %1277 = vmatpush1.bf16.msra.mxu0 0
      %1278 = vmatprep.subr.bf16.mxu0 0
      %1279 = vmatpush1.bf16.msra.mxu0 0
      %1280 = vmatprep.mubr.bf16.mxu0 0
      %1281 = vmatmul.mubr.bf16.gmra.mrb[0].mxu0 %v1243
      %v1282 = vpop.f32.mrb[0].mxu0
      %v1283 = vadd.f32 0.0, %v1282
      %v1284 = vpop.f32.mrb[0].mxu0
      %v1285 = vpop.f32.mrb[0].mxu0
      %v1286 = vpop.f32.mrb[0].mxu0
      %1287 = vdwg.mxu0
      %v1288 = vpack.c.bf16 %v1283, %v1283
      %v1291 = vunpack.c.l.b16 %v1058
      %v1292 = vunpack.c.l.b16 %v1059
      %v1293 = vpack.c.b16 %v1292, %v1291
      %v1296 = vsel %vm1062, %v1288, 0
      %1298 = vmatprep.subr.bf16.mxu0 0
      %1299 = vmatpush1.bf16.msra.mxu0 %v1293
      %1300 = vmatprep.subr.bf16.mxu0 0
      %1301 = vmatpush1.bf16.msra.mxu0 0
      %1302 = vmatprep.subr.bf16.mxu0 0
      %1303 = vmatpush1.bf16.msra.mxu0 0
      %1304 = vmatprep.subr.bf16.mxu0 0
      %1305 = vmatpush1.bf16.msra.mxu0 0
      %1306 = vmatprep.subr.bf16.mxu0 0
      %1307 = vmatpush1.bf16.msra.mxu0 0
      %1308 = vmatprep.subr.bf16.mxu0 0
      %1309 = vmatpush1.bf16.msra.mxu0 0
      %1310 = vmatprep.subr.bf16.mxu0 0
      %1311 = vmatpush1.bf16.msra.mxu0 0
      %1312 = vmatprep.subr.bf16.mxu0 0
      %1313 = vmatpush1.bf16.msra.mxu0 0
      %1314 = vmatprep.subr.bf16.mxu0 0
      %1315 = vmatpush1.bf16.msra.mxu0 0
      %1316 = vmatprep.subr.bf16.mxu0 0
      %1317 = vmatpush1.bf16.msra.mxu0 0
      %1318 = vmatprep.subr.bf16.mxu0 0
      %1319 = vmatpush1.bf16.msra.mxu0 0
      %1320 = vmatprep.subr.bf16.mxu0 0
      %1321 = vmatpush1.bf16.msra.mxu0 0
      %1322 = vmatprep.subr.bf16.mxu0 0
      %1323 = vmatpush1.bf16.msra.mxu0 0
      %1324 = vmatprep.subr.bf16.mxu0 0
      %1325 = vmatpush1.bf16.msra.mxu0 0
      %1326 = vmatprep.subr.bf16.mxu0 0
      %1327 = vmatpush1.bf16.msra.mxu0 0
      %1328 = vmatprep.subr.bf16.mxu0 0
      %1329 = vmatpush1.bf16.msra.mxu0 0
      %1330 = vmatprep.mubr.bf16.mxu0 0
      %1331 = vmatmul.mubr.bf16.gmra.mrb[0].mxu0 %v1296
      %v1332 = vpop.f32.mrb[0].mxu0
      %v1333 = vadd.f32 0.0, %v1332
      %v1334 = vpop.f32.mrb[0].mxu0
      %v1335 = vpop.f32.mrb[0].mxu0
      %v1336 = vpop.f32.mrb[0].mxu0
      %1337 = vdwg.mxu0
      %v1340 = vunpack.c.l.b16 %v1056
      %v1341 = vunpack.c.l.b16 %v1057
      %v1342 = vpack.c.b16 %v1341, %v1340
      %v1345 = vsel %vm1062, %v1172, 0
      %1347 = vmatprep.subr.bf16.mxu0 0
      %1348 = vmatpush1.bf16.msra.mxu0 %v1342
      %1349 = vmatprep.subr.bf16.mxu0 0
      %1350 = vmatpush1.bf16.msra.mxu0 0
      %1351 = vmatprep.subr.bf16.mxu0 0
      %1352 = vmatpush1.bf16.msra.mxu0 0
      %1353 = vmatprep.subr.bf16.mxu0 0
      %1354 = vmatpush1.bf16.msra.mxu0 0
      %1355 = vmatprep.subr.bf16.mxu0 0
      %1356 = vmatpush1.bf16.msra.mxu0 0
      %1357 = vmatprep.subr.bf16.mxu0 0
      %1358 = vmatpush1.bf16.msra.mxu0 0
      %1359 = vmatprep.subr.bf16.mxu0 0
      %1360 = vmatpush1.bf16.msra.mxu0 0
      %1361 = vmatprep.subr.bf16.mxu0 0
      %1362 = vmatpush1.bf16.msra.mxu0 0
      %1363 = vmatprep.subr.bf16.mxu0 0
      %1364 = vmatpush1.bf16.msra.mxu0 0
      %1365 = vmatprep.subr.bf16.mxu0 0
      %1366 = vmatpush1.bf16.msra.mxu0 0
      %1367 = vmatprep.subr.bf16.mxu0 0
      %1368 = vmatpush1.bf16.msra.mxu0 0
      %1369 = vmatprep.subr.bf16.mxu0 0
      %1370 = vmatpush1.bf16.msra.mxu0 0
      %1371 = vmatprep.subr.bf16.mxu0 0
      %1372 = vmatpush1.bf16.msra.mxu0 0
      %1373 = vmatprep.subr.bf16.mxu0 0
      %1374 = vmatpush1.bf16.msra.mxu0 0
      %1375 = vmatprep.subr.bf16.mxu0 0
      %1376 = vmatpush1.bf16.msra.mxu0 0
      %1377 = vmatprep.subr.bf16.mxu0 0
      %1378 = vmatpush1.bf16.msra.mxu0 0
      %1379 = vmatprep.mubr.bf16.mxu0 0
      %1380 = vmatmul.mubr.bf16.gmra.mrb[0].mxu0 %v1345
      %v1381 = vpop.f32.mrb[0].mxu0
      %v1382 = vadd.f32 %v1333, %v1381
      %v1383 = vpop.f32.mrb[0].mxu0
      %v1384 = vpop.f32.mrb[0].mxu0
      %v1385 = vpop.f32.mrb[0].mxu0
      %1386 = vdwg.mxu0
      %v1387 = vld [vmem:[%s831] sm:$0x1]
      %v1389 = vlaneseq
      %v1390 = vshrl.u32 %v1389, 7
      %v1391 = vsub.s32 0, %v1390
      %v1392 = vrot.slane %v1387, %v1391
      %v1394 = vadd.f32 %v1382, %v1392
      %v1395 = vadd.f32 %v869, %v1394
      %v1396 = vld [vmem:[%s834] sm:$0x1]
      %v1397 = vld [vmem:[%s837] sm:$0x1]
      %v1398 = vsel %vm896, %v1395, 0.0
      %1399 = vadd.xlane.f32.xlu0 %v1398
      %v1400 = vpop.xlane.xlu0 %1399
      %v1401 = vrcp.pop 32.0
      %v1402 = vmul.f32 %v1400, %v1401
      %v1403 = vsub.f32 %v1395, %v1402
      %v1404 = vmul.f32 %v1403, %v1403
      %v1405 = vsel %vm896, %v1404, 0.0
      %1406 = vadd.xlane.f32.xlu0 %v1405
      %v1407 = vpop.xlane.xlu0 %1406
      %v1408 = vmul.f32 %v1407, %v1401
      %v1409 = vadd.f32 %v1408, 1e-05
      %v1410 = vrsqrt.pop %v1409
      %v1411 = vmul.f32 %v1403, %v1410
      %v1413 = vlaneseq
      %v1414 = vshrl.u32 %v1413, 7
      %v1415 = vsub.s32 0, %v1414
      %v1416 = vrot.slane %v1396, %v1415
      %v1418 = vmul.f32 %v1411, %v1416
      %v1420 = vlaneseq
      %v1421 = vshrl.u32 %v1420, 7
      %v1422 = vsub.s32 0, %v1421
      %v1423 = vrot.slane %v1397, %v1422
      %v1425 = vadd.f32 %v1418, %v1423
      %v1426 = vld [vmem:[%s842] sm:$0xf]
      %v1427 = vld [vmem:[%s842 + $0x4] sm:$0xf]
      %v1428 = vld [vmem:[%s842 + $0x8] sm:$0xf]
      %v1429 = vld [vmem:[%s842 + $0xc] sm:$0xf]
      %v1430 = vpack.c.bf16 %v1425, %v1425
      %v1431 = vld [vmem:[%s845] sm:$0x1]
      %v1433 = vlaneseq
      %v1434 = vshrl.u32 %v1433, 7
      %v1435 = vsub.s32 0, %v1434
      %v1436 = vrot.slane %v1431, %v1435
      %v1442 = vunpack.c.l.b16 %v1426
      %v1443 = vunpack.c.l.b16 %v1427
      %v1444 = vunpack.c.l.b16 %v1428
      %v1445 = vunpack.c.l.b16 %v1429
      %v1446 = vpack.c.b16 %v1443, %v1442
      %v1447 = vpack.c.b16 %v1445, %v1444
      %v1451 = vsel %vm896, %v1430, 0
      %1453 = vmatprep.subr.bf16.mxu0 0
      %1454 = vmatpush1.bf16.msra.mxu0 %v1446
      %1455 = vmatprep.subr.bf16.mxu0 0
      %1456 = vmatpush1.bf16.msra.mxu0 %v1447
      %1457 = vmatprep.subr.bf16.mxu0 0
      %1458 = vmatpush1.bf16.msra.mxu0 0
      %1459 = vmatprep.subr.bf16.mxu0 0
      %1460 = vmatpush1.bf16.msra.mxu0 0
      %1461 = vmatprep.subr.bf16.mxu0 0
      %1462 = vmatpush1.bf16.msra.mxu0 0
      %1463 = vmatprep.subr.bf16.mxu0 0
      %1464 = vmatpush1.bf16.msra.mxu0 0
      %1465 = vmatprep.subr.bf16.mxu0 0
      %1466 = vmatpush1.bf16.msra.mxu0 0
      %1467 = vmatprep.subr.bf16.mxu0 0
      %1468 = vmatpush1.bf16.msra.mxu0 0
      %1469 = vmatprep.subr.bf16.mxu0 0
      %1470 = vmatpush1.bf16.msra.mxu0 0
      %1471 = vmatprep.subr.bf16.mxu0 0
      %1472 = vmatpush1.bf16.msra.mxu0 0
      %1473 = vmatprep.subr.bf16.mxu0 0
      %1474 = vmatpush1.bf16.msra.mxu0 0
      %1475 = vmatprep.subr.bf16.mxu0 0
      %1476 = vmatpush1.bf16.msra.mxu0 0
      %1477 = vmatprep.subr.bf16.mxu0 0
      %1478 = vmatpush1.bf16.msra.mxu0 0
      %1479 = vmatprep.subr.bf16.mxu0 0
      %1480 = vmatpush1.bf16.msra.mxu0 0
      %1481 = vmatprep.subr.bf16.mxu0 0
      %1482 = vmatpush1.bf16.msra.mxu0 0
      %1483 = vmatprep.subr.bf16.mxu0 0
      %1484 = vmatpush1.bf16.msra.mxu0 0
      %1485 = vmatprep.mubr.bf16.mxu0 0
      %1486 = vmatmul.mubr.bf16.gmra.mrb[0].mxu0 %v1451
      %v1487 = vpop.f32.mrb[0].mxu0
      %v1488 = vadd.f32 %v1436, %v1487
      %v1489 = vpop.f32.mrb[0].mxu0
      %v1490 = vpop.f32.mrb[0].mxu0
      %v1491 = vpop.f32.mrb[0].mxu0
      %1492 = vdwg.mxu0
      %v1493 = vmax.f32 %v1488, 0.0
      %v1494 = vld [vmem:[%s850] sm:$0xf]
      %v1495 = vld [vmem:[%s850 + $0x4] sm:$0xf]
      %v1496 = vld [vmem:[%s850 + $0x8] sm:$0xf]
      %v1497 = vld [vmem:[%s850 + $0xc] sm:$0xf]
      %v1498 = vld [vmem:[%s850 + $0x10] sm:$0xf]
      %v1499 = vld [vmem:[%s850 + $0x14] sm:$0xf]
      %v1500 = vld [vmem:[%s850 + $0x18] sm:$0xf]
      %v1501 = vld [vmem:[%s850 + $0x1c] sm:$0xf]
      %v1502 = vpack.c.bf16 %v1493, %v1493
      %v1503 = vld [vmem:[%s853] sm:$0x1]
      %v1505 = vlaneseq
      %v1506 = vshrl.u32 %v1505, 7
      %v1507 = vsub.s32 0, %v1506
      %v1508 = vrot.slane %v1503, %v1507
      %v1518 = vunpack.c.l.b16 %v1494
      %v1519 = vunpack.c.l.b16 %v1495
      %v1520 = vunpack.c.l.b16 %v1496
      %v1521 = vunpack.c.l.b16 %v1497
      %v1522 = vunpack.c.l.b16 %v1498
      %v1523 = vunpack.c.l.b16 %v1499
      %v1524 = vunpack.c.l.b16 %v1500
      %v1525 = vunpack.c.l.b16 %v1501
      %v1526 = vpack.c.b16 %v1519, %v1518
      %v1527 = vpack.c.b16 %v1521, %v1520
      %v1528 = vpack.c.b16 %v1523, %v1522
      %v1529 = vpack.c.b16 %v1525, %v1524
      %vm1534 = vcmask 523264
      %v1536 = vsel %vm1534, %v1502, 0
      %1538 = vmatprep.subr.bf16.mxu0 0
      %1539 = vmatpush1.bf16.msra.mxu0 %v1526
      %1540 = vmatprep.subr.bf16.mxu0 0
      %1541 = vmatpush1.bf16.msra.mxu0 %v1527
      %1542 = vmatprep.subr.bf16.mxu0 0
      %1543 = vmatpush1.bf16.msra.mxu0 %v1528
      %1544 = vmatprep.subr.bf16.mxu0 0
      %1545 = vmatpush1.bf16.msra.mxu0 %v1529
      %1546 = vmatprep.subr.bf16.mxu0 0
      %1547 = vmatpush1.bf16.msra.mxu0 0
      %1548 = vmatprep.subr.bf16.mxu0 0
      %1549 = vmatpush1.bf16.msra.mxu0 0
      %1550 = vmatprep.subr.bf16.mxu0 0
      %1551 = vmatpush1.bf16.msra.mxu0 0
      %1552 = vmatprep.subr.bf16.mxu0 0
      %1553 = vmatpush1.bf16.msra.mxu0 0
      %1554 = vmatprep.subr.bf16.mxu0 0
      %1555 = vmatpush1.bf16.msra.mxu0 0
      %1556 = vmatprep.subr.bf16.mxu0 0
      %1557 = vmatpush1.bf16.msra.mxu0 0
      %1558 = vmatprep.subr.bf16.mxu0 0
      %1559 = vmatpush1.bf16.msra.mxu0 0
      %1560 = vmatprep.subr.bf16.mxu0 0
      %1561 = vmatpush1.bf16.msra.mxu0 0
      %1562 = vmatprep.subr.bf16.mxu0 0
      %1563 = vmatpush1.bf16.msra.mxu0 0
      %1564 = vmatprep.subr.bf16.mxu0 0
      %1565 = vmatpush1.bf16.msra.mxu0 0
      %1566 = vmatprep.subr.bf16.mxu0 0
      %1567 = vmatpush1.bf16.msra.mxu0 0
      %1568 = vmatprep.subr.bf16.mxu0 0
      %1569 = vmatpush1.bf16.msra.mxu0 0
      %1570 = vmatprep.mubr.bf16.mxu0 0
      %1571 = vmatmul.mubr.bf16.gmra.mrb[0].mxu0 %v1536
      %v1572 = vpop.f32.mrb[0].mxu0
      %v1573 = vadd.f32 %v1508, %v1572
      %v1574 = vpop.f32.mrb[0].mxu0
      %v1575 = vpop.f32.mrb[0].mxu0
      %v1576 = vpop.f32.mrb[0].mxu0
      %1577 = vdwg.mxu0
      %v1578 = vadd.f32 %v1425, %v1573
      %v1579 = vld [vmem:[%s856] sm:$0x1]
      %v1580 = vld [vmem:[%s859] sm:$0x1]
      %v1581 = vsel %vm896, %v1578, 0.0
      %1582 = vadd.xlane.f32.xlu0 %v1581
      %v1583 = vpop.xlane.xlu0 %1582
      %v1584 = vmul.f32 %v1583, %v1401
      %v1585 = vsub.f32 %v1578, %v1584
      %v1586 = vmul.f32 %v1585, %v1585
      %v1587 = vsel %vm896, %v1586, 0.0
      %1588 = vadd.xlane.f32.xlu0 %v1587
      %v1589 = vpop.xlane.xlu0 %1588
      %v1590 = vmul.f32 %v1589, %v1401
      %v1591 = vadd.f32 %v1590, 1e-05
      %v1592 = vrsqrt.pop %v1591
      %v1593 = vmul.f32 %v1585, %v1592
      %v1595 = vlaneseq
      %v1596 = vshrl.u32 %v1595, 7
      %v1597 = vsub.s32 0, %v1596
      %v1598 = vrot.slane %v1579, %v1597
      %v1600 = vmul.f32 %v1593, %v1598
      %v1602 = vlaneseq
      %v1603 = vshrl.u32 %v1602, 7
      %v1604 = vsub.s32 0, %v1603
      %v1605 = vrot.slane %v1580, %v1604
      %v1607 = vadd.f32 %v1600, %v1605
      %1608 = vst.msk [vmem:[%s867] sm:$0xff] %vm896, %v1607
      %p1609 = scmp.lt.s32.totalorder %s33, 1
      %s1610 = scalar_select %p1609, %s33, 1
      %p1611 = scmp.lt.s32.totalorder %s32, 1
      %s1612 = scalar_select %p1611, %s32, 1
      %s1613 = smul.addr %s1610, 2
      %s1614 = sadd.s32 %s1612, %s1613
      %s1615 = smul.addr %s1614, 8
      %s1616 = scalar_lea.vmem %s17, %s1615
      // Predicated region
      $region89: #{_lambda_.10} parent=87 // pred_check
        %p1617 = pneg %p508
      $region90: #{_lambda_.10} parent=87 // pred_check_branch
        %1619 = sbr.rel (%p1617) target = $region92
      $region91: #{_lambda_.10} parent=87 // pred_region
        _
      $region92: #{_lambda_.10} parent=87 // pred_fallthru
        _
    $region88: #{_lambda_.10} parent=5 // pred_fallthru
      _
    %p1620 = scmp.le.s32.totalorder 2, %s23
    // Predicated region
    $region93: #{_lambda_.10} parent=5 // pred_check
      %p1621 = pneg %p1620
    $region94: #{_lambda_.10} parent=5 // pred_check_branch
      %1623 = sbr.rel (%p1621) target = $region96
    $region95: #{_lambda_.10} parent=5 // pred_region
      %s1624 = ssub.s32 %s23, 2
      // Predicated region
      $region97: #{_lambda_.10} parent=95 // pred_check
        %p1625 = pneg %p514
      $region98: #{_lambda_.10} parent=95 // pred_check_branch
        %1627 = sbr.rel (%p1625) target = $region100
      $region99: #{_lambda_.10} parent=95 // pred_region
        %p1628 = scmp.lt.s32.totalorder %s35, 1
        %s1629 = scalar_select %p1628, %s35, 1
        %p1630 = scmp.lt.s32.totalorder %s34, 1
        %s1631 = scalar_select %p1630, %s34, 1
        %s1632 = smul.addr %s1629, 2
        %s1633 = sadd.s32 %s1631, %s1632
        %s1634 = smul.addr %s1633, 8
        %s1635 = scalar_lea.vmem %s17, %s1634
      $region100: #{_lambda_.10} parent=95 // pred_fallthru
        _
    $region96: #{_lambda_.10} parent=5 // pred_fallthru
      _
  $region6: #{_lambda_.10} parent=0 // loop_footer
    %s27 = sadd.s32 1, %s23
  $region7: #{_lambda_.10} parent=0 // loop_footer_branch
    %22 = sbr.rel target = $region3
  $region8: #{_lambda_.10} parent=0 // loop_exit
    _

</llo_original>
